<compile_context>
chip_gen: v7x
topology: tpu7x:2x2x1
jax: 0.10.0
libtpu: 0.0.40
codegen_flags: <defaults>
</compile_context>

<pallas_src>
import functools

import jax
import jax.numpy as jnp
from jax.experimental import pallas as pl
from jax.experimental.pallas import tpu as pltpu

NEG_SLOPE = 0.01          # F.leaky_relu default negative slope
BN_EPS = 1e-5             # nn.BatchNorm2d default eps

ROW_ALIGN = 16            # sublane alignment safe for bf16 (16, 128) tiling
TM_TARGET = 512           # output-row tile (sublane axis)
TC_TARGET = 512           # output-channel tile (lane axis)
VMEM_LIMIT_BYTES = 48 * 1024 * 1024   # headroom under v7x's 64 MiB physical VMEM


def _round_up(x, m):
    return (x + m - 1) // m * m


def _leaky(y):
    return jnp.where(y >= 0, y, NEG_SLOPE * y)


def _plan_rows(m_count):
    """Row-tile plan: pad M up to a tile multiple instead of shrinking the tile,
    and keep >= 2 row blocks when possible so both v7x TensorCores get work."""
    m_align = _round_up(m_count, ROW_ALIGN)
    if m_align >= 2 * TM_TARGET:
        tm = TM_TARGET
    else:
        tm = min(m_align, max(ROW_ALIGN, _round_up((m_count + 1) // 2, ROW_ALIGN)))
    return tm, _round_up(m_count, tm)


def _plan_cols(c):
    """Channel tile: full padded width up to 512 (single lane-dense block)."""
    c_pad = _round_up(c, 128)
    if c_pad <= TC_TARGET:
        return c_pad, c_pad
    tc = TC_TARGET
    while c_pad % tc:
        tc -= 128
    return max(tc, 128), c_pad


# ---------------------------------------------------------------------------
# Pallas kernel: tap-fused conv (shifted-window matmuls) + folded BN + leaky
#                (+ residual add + final leaky)
# ---------------------------------------------------------------------------
def _tap_conv_kernel(*refs, shifts, tm, slab_rows, apply_lrelu, add_skip):
    if add_skip:
        (x_hbm, w_ref, s_ref, b_ref, skip_ref, o_ref,
         slab_ref, acc_ref, sem) = refs
    else:
        (x_hbm, w_ref, s_ref, b_ref, o_ref,
         slab_ref, acc_ref, sem) = refs

    # One DMA per grid step fetches this M tile's activation rows plus the tap
    # halo; every tap then reads a statically shifted window of this single VMEM
    # copy, so the activation is pulled from HBM once per tile (no im2col).
    row0 = pl.multiple_of(pl.program_id(0) * tm, ROW_ALIGN)
    cp = pltpu.make_async_copy(x_hbm.at[pl.ds(row0, slab_rows)], slab_ref, sem.at[0])
    cp.start()
    cp.wait()

    for t, shift in enumerate(shifts):
        contrib = jnp.dot(slab_ref[shift:shift + tm, :], w_ref[t],
                          preferred_element_type=jnp.float32)
        if t == 0:
            acc_ref[...] = contrib
        else:
            acc_ref[...] += contrib

    # folded BatchNorm (eval mode): y = acc * scale + bias (per output channel)
    y = acc_ref[...] * s_ref[...] + b_ref[...]
    if apply_lrelu:
        y = _leaky(y)
    if add_skip:
        # dropout = identity in eval mode; residual add in f32, final leaky_relu
        y = _leaky(y + skip_ref[...].astype(jnp.float32))
    o_ref[...] = y.astype(o_ref.dtype)


def fused_tap_conv(xflat, w_taps, scale, bias, m_count, shifts, *,
                   skip=None, apply_lrelu=True, out_dtype=jnp.float32):
    """Fused conv-as-shifted-matmul + folded BN + leaky_relu (+ residual).

    xflat : (m_count, K) activation rows (flattened, spatially zero-padded).
    w_taps: (T, K, C) weights, tap-major (matching `shifts`).
    scale, bias: (C,) folded BatchNorm affine.
    shifts: length-T tuple of static row shifts into xflat, one per tap.
    skip  : optional (m_count, C) residual, row-aligned with the output.
    Returns (m_count, C) array of out_dtype.
    """
    R0, K = xflat.shape
    T, K2, C = w_taps.shape
    assert K == K2 and len(shifts) == T and R0 == m_count

    tm, m_pad = _plan_rows(m_count)
    tc, c_pad = _plan_cols(C)
    k_pad = _round_up(K, 128)
    halo_pad = _round_up(max(shifts), ROW_ALIGN)
    slab_rows = tm + halo_pad
    rows_needed = m_pad + halo_pad

    # bf16 operands for the MXU; f32 epilogue operands.
    x = jnp.pad(xflat.astype(jnp.bfloat16),
                ((0, rows_needed - R0), (0, k_pad - K)))
    w = jnp.pad(w_taps.astype(jnp.bfloat16),
                ((0, 0), (0, k_pad - K), (0, c_pad - C)))
    s = jnp.pad(scale.astype(jnp.float32).reshape(1, C), ((0, 0), (0, c_pad - C)))
    b = jnp.pad(bias.astype(jnp.float32).reshape(1, C), ((0, 0), (0, c_pad - C)))

    args = [x, w, s, b]
    in_specs = [
        pl.BlockSpec(memory_space=pl.ANY),                      # activation rows (HBM)
        pl.BlockSpec((T, k_pad, tc), lambda m, c: (0, 0, c)),   # tap-major weights
        pl.BlockSpec((1, tc), lambda m, c: (0, c)),             # BN scale
        pl.BlockSpec((1, tc), lambda m, c: (0, c)),             # BN bias
    ]
    add_skip = skip is not None
    if add_skip:
        assert skip.shape[0] == m_count and skip.shape[1] == C
        args.append(jnp.pad(skip.astype(jnp.bfloat16),
                            ((0, m_pad - m_count), (0, c_pad - C))))
        in_specs.append(pl.BlockSpec((tm, tc), lambda m, c: (m, c)))

    grid = (m_pad // tm, c_pad // tc)
    kernel = functools.partial(_tap_conv_kernel, shifts=tuple(shifts), tm=tm,
                               slab_rows=slab_rows,
                               apply_lrelu=apply_lrelu, add_skip=add_skip)

    out_itemsize = jnp.dtype(out_dtype).itemsize
    bytes_accessed = (grid[1] * grid[0] * slab_rows * k_pad * 2
                      + T * k_pad * c_pad * 2
                      + m_pad * c_pad * out_itemsize
                      + (m_pad * c_pad * 2 if add_skip else 0)
                      + 2 * c_pad * 4)

    out = pl.pallas_call(
        kernel,
        out_shape=jax.ShapeDtypeStruct((m_pad, c_pad), out_dtype),
        grid_spec=pltpu.PrefetchScalarGridSpec(
            num_scalar_prefetch=0,
            grid=grid,
            in_specs=in_specs,
            out_specs=pl.BlockSpec((tm, tc), lambda m, c: (m, c)),
            scratch_shapes=[
                pltpu.VMEM((slab_rows, k_pad), jnp.bfloat16),   # activation slab
                pltpu.VMEM((tm, tc), jnp.float32),              # f32 accumulator
                pltpu.SemaphoreType.DMA((1,)),
            ],
        ),
        compiler_params=pltpu.CompilerParams(
            dimension_semantics=("parallel", "parallel"),
            vmem_limit_bytes=VMEM_LIMIT_BYTES),
        cost_estimate=pl.CostEstimate(
            flops=2 * T * m_pad * k_pad * c_pad,
            transcendentals=0,
            bytes_accessed=bytes_accessed),
    )(*args)

    return out[:m_count, :C]


# ---------------------------------------------------------------------------
# JAX glue: activation flattening, weight reshapes, BN folding, params
# ---------------------------------------------------------------------------
def conv3x3_s1_prep(x_nhwc):
    """Prep for a stride-1, pad-1, 3x3 conv as shifted matmuls.

    Returns (xflat, shifts, m_count, (Hp, Wp)) where xflat are the rows of the
    spatially zero-padded activation and the output lives on the extended
    (N, Hp, Wp) grid (valid region [:H, :W])."""
    N, H, W, C = x_nhwc.shape
    Hp, Wp = H + 2, W + 2
    xp = jnp.pad(x_nhwc.astype(jnp.bfloat16), ((0, 0), (1, 1), (1, 1), (0, 0)))
    xflat = xp.reshape(N * Hp * Wp, C)
    shifts = tuple(ki * Wp + kj for ki in range(3) for kj in range(3))
    return xflat, shifts, N * Hp * Wp, (Hp, Wp)


def im2col_nhwc(x, kh, kw, stride, pad):
    """x: (N,H,W,C) -> (N*Ho*Wo, kh*kw*C), K index = (ki*kw + kj)*C + c."""
    N, H, W, C = x.shape
    xp = jnp.pad(x, ((0, 0), (pad, pad), (pad, pad), (0, 0)))
    Ho = (H + 2 * pad - kh) // stride + 1
    Wo = (W + 2 * pad - kw) // stride + 1
    taps = [xp[:, i:i + stride * Ho:stride, j:j + stride * Wo:stride, :]
            for i in range(kh) for j in range(kw)]
    cols = jnp.stack(taps, axis=3)                      # (N, Ho, Wo, kh*kw, C)
    return cols.reshape(N * Ho * Wo, kh * kw * C), Ho, Wo


def _w3x3_taps(w):      # OIHW (Cout, Cin, 3, 3) -> (9, Cin, Cout), tap-major
    cout, cin = w.shape[0], w.shape[1]
    return jnp.transpose(w, (2, 3, 1, 0)).reshape(9, cin, cout)


def _w1x1_taps(w):      # (Cout, Cin, 1, 1) -> (1, Cin, Cout)
    return jnp.transpose(w, (2, 3, 1, 0)).reshape(1, w.shape[1], w.shape[0])


def _w3x3_im2col(w):    # (Cout, Cin, 3, 3) -> (1, 9*Cin, Cout), matches im2col K order
    cout, cin = w.shape[0], w.shape[1]
    return jnp.transpose(w, (2, 3, 1, 0)).reshape(1, 9 * cin, cout)


def fold_bn(bn):
    scale = bn["gamma"] / jnp.sqrt(bn["var"] + BN_EPS)
    bias = bn["beta"] - bn["mean"] * scale
    return scale, bias


def init_params(key, cin, cout, use_1x1_conv):
    ks = jax.random.split(key, 8)

    def bn_params(k):
        k1, k2, k3, k4 = jax.random.split(k, 4)
        return {
            "gamma": 1.0 + 0.1 * jax.random.normal(k1, (cout,), jnp.float32),
            "beta": 0.1 * jax.random.normal(k2, (cout,), jnp.float32),
            "mean": 0.1 * jax.random.normal(k3, (cout,), jnp.float32),
            "var": 0.5 + jnp.abs(jax.random.normal(k4, (cout,), jnp.float32)),
        }

    params = {
        "w1": 0.1 * jax.random.normal(ks[0], (cout, cin, 3, 3), jnp.float32),
        "bn1": bn_params(ks[1]),
        "w2": 0.1 * jax.random.normal(ks[2], (cout, cout, 3, 3), jnp.float32),
        "bn2": bn_params(ks[3]),
    }
    if use_1x1_conv:
        params["w3"] = 0.1 * jax.random.normal(ks[4], (cout, cin, 1, 1), jnp.float32)
        params["bn3"] = bn_params(ks[5])
    return params


# ---------------------------------------------------------------------------
# ResNet_Block forward (Pallas)
# ---------------------------------------------------------------------------
def resnet_block_forward(x_nchw, params, *, stride, use_1x1_conv):
    N, Cin, H, W = x_nchw.shape
    Cout = params["w1"].shape[0]
    Ho = (H - 1) // stride + 1
    Wo = (W - 1) // stride + 1

    # single layout change at the boundary: NCHW -> NHWC (channels = lane axis)
    x = jnp.transpose(x_nchw, (0, 2, 3, 1))
    s1, b1 = fold_bn(params["bn1"])
    s2, b2 = fold_bn(params["bn2"])

    # --- main path, conv1 + bn1 + leaky_relu (bf16 output for conv2) ---
    if stride == 1:
        xflat, shifts1, m1, (hp1, wp1) = conv3x3_s1_prep(x)
        y1e = fused_tap_conv(xflat, _w3x3_taps(params["w1"]), s1, b1, m1, shifts1,
                             apply_lrelu=True, out_dtype=jnp.bfloat16)
        y1 = y1e.reshape(N, hp1, wp1, Cout)[:, :H, :W, :]
    else:
        # TODO(synk): stride-2 conv1 still uses a materialized bf16 im2col matrix.
        patches, ho2, wo2 = im2col_nhwc(x.astype(jnp.bfloat16), 3, 3, stride, 1)
        y1f = fused_tap_conv(patches, _w3x3_im2col(params["w1"]), s1, b1,
                             patches.shape[0], (0,),
                             apply_lrelu=True, out_dtype=jnp.bfloat16)
        y1 = y1f.reshape(N, Ho, Wo, Cout)

    # --- identity / downsample path, laid out on conv2's extended grid so it can
    #     be fed straight into conv2's fused residual epilogue ---
    Hp2, Wp2 = Ho + 2, Wo + 2
    m2 = N * Hp2 * Wp2
    if use_1x1_conv:
        s3, b3 = fold_bn(params["bn3"])
        xs = x[:, ::stride, ::stride, :][:, :Ho, :Wo, :]
        xs_ext = jnp.pad(xs.astype(jnp.bfloat16),
                         ((0, 0), (0, 2), (0, 2), (0, 0))).reshape(m2, Cin)
        skip = fused_tap_conv(xs_ext, _w1x1_taps(params["w3"]), s3, b3, m2, (0,),
                              apply_lrelu=False, out_dtype=jnp.bfloat16)
    else:
        assert Cin == Cout and stride == 1
        skip = jnp.pad(x.astype(jnp.bfloat16),
                       ((0, 0), (0, 2), (0, 2), (0, 0))).reshape(m2, Cout)

    # --- conv2 + bn2 + leaky (+ dropout id) + residual + final leaky, fused ---
    y1flat, shifts2, m2b, (hp2, wp2) = conv3x3_s1_prep(y1)
    assert m2b == m2
    out_ext = fused_tap_conv(y1flat, _w3x3_taps(params["w2"]), s2, b2, m2, shifts2,
                             skip=skip, apply_lrelu=True, out_dtype=jnp.float32)
    out = out_ext.reshape(N, hp2, wp2, Cout)[:, :Ho, :Wo, :]
    return jnp.transpose(out, (0, 3, 1, 2))                       # back to NCHW


# ---------------------------------------------------------------------------
# Pure-JAX reference (same eval-mode, bf16-matmul semantics) for correctness
# ---------------------------------------------------------------------------
def reference_forward(x, params, *, stride, use_1x1_conv):
    def conv(inp, w, s, pad):
        return jax.lax.conv_general_dilated(
            inp.astype(jnp.bfloat16), w.astype(jnp.bfloat16), (s, s),
            [(pad, pad), (pad, pad)],
            dimension_numbers=("NCHW", "OIHW", "NCHW"),
            preferred_element_type=jnp.float32,
        )

    def bn(y, p):
        sc = p["gamma"] / jnp.sqrt(p["var"] + BN_EPS)
        bi = p["beta"] - p["mean"] * sc
        return y * sc[None, :, None, None] + bi[None, :, None, None]

    y = _leaky(bn(conv(x, params["w1"], stride, 1), params["bn1"]))
    y = _leaky(bn(conv(y, params["w2"], 1, 1), params["bn2"]))
    if use_1x1_conv:
        xs = bn(conv(x, params["w3"], stride, 0), params["bn3"])
    else:
        xs = x
    return _leaky(y + xs)


if __name__ == "__main__":
    key = jax.random.PRNGKey(0)
    k_x, k_p, k_p2 = jax.random.split(key, 3)

    # 1) downsampling block: stride 2 with 1x1 projection
    N, Cin, H, W = 2, 4, 16, 16
    Cout, stride, use_1x1 = 8, 2, True
    x = jax.random.normal(k_x, (N, Cin, H, W), jnp.float32)
    params = init_params(k_p, Cin, Cout, use_1x1)

    fwd = jax.jit(functools.partial(resnet_block_forward,
                                    stride=stride, use_1x1_conv=use_1x1))
    out = jax.block_until_ready(fwd(x, params))
    ref = reference_forward(x, params, stride=stride, use_1x1_conv=use_1x1)
    assert out.shape == ref.shape == (N, Cout, H // stride, W // stride)
    assert jnp.allclose(out, ref, rtol=3e-2, atol=3e-2), "mismatch (downsample block)"

    # 2) identity block: stride 1, no projection
    x2 = jax.random.normal(k_x, (N, Cout, H, W), jnp.float32)
    params2 = init_params(k_p2, Cout, Cout, False)
    fwd2 = jax.jit(functools.partial(resnet_block_forward,
                                     stride=1, use_1x1_conv=False))
    out2 = jax.block_until_ready(fwd2(x2, params2))
    ref2 = reference_forward(x2, params2, stride=1, use_1x1_conv=False)
    assert out2.shape == ref2.shape == (N, Cout, H, W)
    assert jnp.allclose(out2, ref2, rtol=3e-2, atol=3e-2), "mismatch (identity block)"

    print("KERNEL_OK")
</pallas_src>

<mosaic_0001>
module attributes {stable_mosaic.version = 11 : i64} {
  func.func @_tap_conv_kernel(%arg0: i32, %arg1: i32, %arg2: memref<128x128xbf16, #tpu.memory_space<any>>, %arg3: memref<1x128x128xbf16, #tpu.memory_space<vmem>>, %arg4: memref<1x128xf32, #tpu.memory_space<vmem>>, %arg5: memref<1x128xf32, #tpu.memory_space<vmem>>, %arg6: memref<64x128xbf16, #tpu.memory_space<vmem>>, %arg7: memref<64x128xbf16, #tpu.memory_space<vmem>>, %arg8: memref<64x128xf32, #tpu.memory_space<vmem>>, %arg9: memref<1x!tpu.dma_semaphore, #tpu.memory_space<semaphore_mem>>) attributes {dimension_semantics = [#tpu.dimension_semantics<parallel>, #tpu.dimension_semantics<parallel>], iteration_bounds = array<i64: 2, 1>, scalar_prefetch = 0 : i64, scratch_operands = 3 : i64, tpu.core_type = #tpu.core_type<tc>, window_params = [{}, {transform_indices = @transform_1, window_bounds = array<i64: 1, 128, 128>}, {transform_indices = @transform_2, window_bounds = array<i64: 1, 128>}, {transform_indices = @transform_3, window_bounds = array<i64: 1, 128>}, {transform_indices = @transform_4, window_bounds = array<i64: 64, 128>}]} {
    %c64_i32 = arith.constant 64 : i32
    %0 = arith.muli %arg0, %c64_i32 : i32
    %1 = tpu.assume_multiple %0, 16 : i32
    %c0_i32 = arith.constant 0 : i32
    %c0_i32_0 = arith.constant 0 : i32
    %2 = tpu.memref_slice %arg2[%1, %c0_i32_0] : memref<128x128xbf16, #tpu.memory_space<any>> -> memref<64x128xbf16, #tpu.memory_space<any>>
    %3 = tpu.memref_slice %arg9[%c0_i32] : memref<1x!tpu.dma_semaphore, #tpu.memory_space<semaphore_mem>> -> memref<1x!tpu.dma_semaphore, #tpu.memory_space<semaphore_mem>>
    %4 = tpu.memref_squeeze %3 : memref<1x!tpu.dma_semaphore, #tpu.memory_space<semaphore_mem>> -> memref<!tpu.dma_semaphore, #tpu.memory_space<semaphore_mem>>
    tpu.enqueue_dma source(%2 : memref<64x128xbf16, #tpu.memory_space<any>>) target(%arg7 : memref<64x128xbf16, #tpu.memory_space<vmem>>) target_semaphore(%4 : memref<!tpu.dma_semaphore, #tpu.memory_space<semaphore_mem>>)
    %c0_i32_1 = arith.constant 0 : i32
    %c0_i32_2 = arith.constant 0 : i32
    %5 = tpu.memref_slice %arg2[%1, %c0_i32_2] : memref<128x128xbf16, #tpu.memory_space<any>> -> memref<64x128xbf16, #tpu.memory_space<any>>
    %6 = tpu.memref_slice %arg9[%c0_i32_1] : memref<1x!tpu.dma_semaphore, #tpu.memory_space<semaphore_mem>> -> memref<1x!tpu.dma_semaphore, #tpu.memory_space<semaphore_mem>>
    %7 = tpu.memref_squeeze %6 : memref<1x!tpu.dma_semaphore, #tpu.memory_space<semaphore_mem>> -> memref<!tpu.dma_semaphore, #tpu.memory_space<semaphore_mem>>
    tpu.wait_dma2 semaphore(%7 : memref<!tpu.dma_semaphore, #tpu.memory_space<semaphore_mem>>) src(%5 : memref<64x128xbf16, #tpu.memory_space<any>>) dst(%arg7 : memref<64x128xbf16, #tpu.memory_space<vmem>>)
    %c0 = arith.constant 0 : index
    %c0_3 = arith.constant 0 : index
    %8 = vector.load %arg7[%c0, %c0_3] : memref<64x128xbf16, #tpu.memory_space<vmem>>, vector<64x128xbf16>
    %c0_4 = arith.constant 0 : index
    %c0_5 = arith.constant 0 : index
    %c0_6 = arith.constant 0 : index
    %9 = vector.load %arg3[%c0_4, %c0_5, %c0_6] : memref<1x128x128xbf16, #tpu.memory_space<vmem>>, vector<1x128x128xbf16>
    %10 = vector.shape_cast %9 : vector<1x128x128xbf16> to vector<128x128xbf16>
    %cst = arith.constant dense<0.000000e+00> : vector<64x128xf32>
    %11 = tpu.matmul %8, %10, %cst {dimension_numbers = #tpu.dot_dimension_numbers<[1], [0], [0], [1], [0, 0, 1, 1], [], []>} : vector<64x128xbf16>, vector<128x128xbf16>, vector<64x128xf32> -> vector<64x128xf32>
    %c0_7 = arith.constant 0 : index
    %c0_8 = arith.constant 0 : index
    %12 = vector.load %arg8[%c0_7, %c0_8] : memref<64x128xf32, #tpu.memory_space<vmem>>, vector<64x128xf32>
    tpu.vector_store %arg8[%c0_7, %c0_8], %11 {strides = array<i32>} : memref<64x128xf32, #tpu.memory_space<vmem>>, vector<64x128xf32>,
    %c0_9 = arith.constant 0 : index
    %c0_10 = arith.constant 0 : index
    %13 = vector.load %arg8[%c0_9, %c0_10] : memref<64x128xf32, #tpu.memory_space<vmem>>, vector<64x128xf32>
    %c0_11 = arith.constant 0 : index
    %c0_12 = arith.constant 0 : index
    %14 = vector.load %arg4[%c0_11, %c0_12] : memref<1x128xf32, #tpu.memory_space<vmem>>, vector<1x128xf32>
    %15 = vector.broadcast %14 : vector<1x128xf32> to vector<64x128xf32>
    %16 = arith.mulf %13, %15 : vector<64x128xf32>
    %c0_13 = arith.constant 0 : index
    %c0_14 = arith.constant 0 : index
    %17 = vector.load %arg5[%c0_13, %c0_14] : memref<1x128xf32, #tpu.memory_space<vmem>>, vector<1x128xf32>
    %18 = vector.broadcast %17 : vector<1x128xf32> to vector<64x128xf32>
    %19 = arith.addf %16, %18 : vector<64x128xf32>
    %cst_15 = arith.constant 0.000000e+00 : f32
    %20 = vector.broadcast %cst_15 : f32 to vector<64x128xf32>
    %21 = arith.cmpf oge, %19, %20 : vector<64x128xf32>
    %cst_16 = arith.constant 0.00999999977 : f32
    %22 = vector.broadcast %cst_16 : f32 to vector<64x128xf32>
    %23 = arith.mulf %22, %19 : vector<64x128xf32>
    %24 = arith.select %21, %19, %23 : vector<64x128xi1>, vector<64x128xf32>
    %25 = arith.truncf %24 : vector<64x128xf32> to vector<64x128xbf16>
    %c0_17 = arith.constant 0 : index
    %c0_18 = arith.constant 0 : index
    %26 = vector.load %arg6[%c0_17, %c0_18] : memref<64x128xbf16, #tpu.memory_space<vmem>>, vector<64x128xbf16>
    tpu.vector_store %arg6[%c0_17, %c0_18], %25 {strides = array<i32>} : memref<64x128xbf16, #tpu.memory_space<vmem>>, vector<64x128xbf16>,
    return
  }
  func.func @transform_1(%arg0: i32, %arg1: i32) -> (i32, i32, i32) {
    %c0_i32 = arith.constant 0 : i32
    %c0_i32_0 = arith.constant 0 : i32
    %c0_i32_1 = arith.constant 0 : i32
    return %c0_i32, %c0_i32_0, %arg1 : i32, i32, i32
  }
  func.func @transform_2(%arg0: i32, %arg1: i32) -> (i32, i32) {
    %c0_i32 = arith.constant 0 : i32
    %c0_i32_0 = arith.constant 0 : i32
    return %c0_i32, %arg1 : i32, i32
  }
  func.func @transform_3(%arg0: i32, %arg1: i32) -> (i32, i32) {
    %c0_i32 = arith.constant 0 : i32
    %c0_i32_0 = arith.constant 0 : i32
    return %c0_i32, %arg1 : i32, i32
  }
  func.func @transform_4(%arg0: i32, %arg1: i32) -> (i32, i32) {
    %c0_i32 = arith.constant 0 : i32
    return %arg0, %arg1 : i32, i32
  }
}

module attributes {stable_mosaic.version = 11 : i64} {
  func.func @_tap_conv_kernel(%arg0: i32, %arg1: i32, %arg2: memref<224x128xbf16, #tpu.memory_space<any>>, %arg3: memref<1x128x128xbf16, #tpu.memory_space<vmem>>, %arg4: memref<1x128xf32, #tpu.memory_space<vmem>>, %arg5: memref<1x128xf32, #tpu.memory_space<vmem>>, %arg6: memref<112x128xbf16, #tpu.memory_space<vmem>>, %arg7: memref<112x128xbf16, #tpu.memory_space<vmem>>, %arg8: memref<112x128xf32, #tpu.memory_space<vmem>>, %arg9: memref<1x!tpu.dma_semaphore, #tpu.memory_space<semaphore_mem>>) attributes {dimension_semantics = [#tpu.dimension_semantics<parallel>, #tpu.dimension_semantics<parallel>], iteration_bounds = array<i64: 2, 1>, scalar_prefetch = 0 : i64, scratch_operands = 3 : i64, tpu.core_type = #tpu.core_type<tc>, window_params = [{}, {transform_indices = @transform_1, window_bounds = array<i64: 1, 128, 128>}, {transform_indices = @transform_2, window_bounds = array<i64: 1, 128>}, {transform_indices = @transform_3, window_bounds = array<i64: 1, 128>}, {transform_indices = @transform_4, window_bounds = array<i64: 112, 128>}]} {
    %c112_i32 = arith.constant 112 : i32
    %0 = arith.muli %arg0, %c112_i32 : i32
    %1 = tpu.assume_multiple %0, 16 : i32
    %c0_i32 = arith.constant 0 : i32
    %c0_i32_0 = arith.constant 0 : i32
    %2 = tpu.memref_slice %arg2[%1, %c0_i32_0] : memref<224x128xbf16, #tpu.memory_space<any>> -> memref<112x128xbf16, #tpu.memory_space<any>>
    %3 = tpu.memref_slice %arg9[%c0_i32] : memref<1x!tpu.dma_semaphore, #tpu.memory_space<semaphore_mem>> -> memref<1x!tpu.dma_semaphore, #tpu.memory_space<semaphore_mem>>
    %4 = tpu.memref_squeeze %3 : memref<1x!tpu.dma_semaphore, #tpu.memory_space<semaphore_mem>> -> memref<!tpu.dma_semaphore, #tpu.memory_space<semaphore_mem>>
    tpu.enqueue_dma source(%2 : memref<112x128xbf16, #tpu.memory_space<any>>) target(%arg7 : memref<112x128xbf16, #tpu.memory_space<vmem>>) target_semaphore(%4 : memref<!tpu.dma_semaphore, #tpu.memory_space<semaphore_mem>>)
    %c0_i32_1 = arith.constant 0 : i32
    %c0_i32_2 = arith.constant 0 : i32
    %5 = tpu.memref_slice %arg2[%1, %c0_i32_2] : memref<224x128xbf16, #tpu.memory_space<any>> -> memref<112x128xbf16, #tpu.memory_space<any>>
    %6 = tpu.memref_slice %arg9[%c0_i32_1] : memref<1x!tpu.dma_semaphore, #tpu.memory_space<semaphore_mem>> -> memref<1x!tpu.dma_semaphore, #tpu.memory_space<semaphore_mem>>
    %7 = tpu.memref_squeeze %6 : memref<1x!tpu.dma_semaphore, #tpu.memory_space<semaphore_mem>> -> memref<!tpu.dma_semaphore, #tpu.memory_space<semaphore_mem>>
    tpu.wait_dma2 semaphore(%7 : memref<!tpu.dma_semaphore, #tpu.memory_space<semaphore_mem>>) src(%5 : memref<112x128xbf16, #tpu.memory_space<any>>) dst(%arg7 : memref<112x128xbf16, #tpu.memory_space<vmem>>)
    %c0 = arith.constant 0 : index
    %c0_3 = arith.constant 0 : index
    %8 = vector.load %arg7[%c0, %c0_3] : memref<112x128xbf16, #tpu.memory_space<vmem>>, vector<112x128xbf16>
    %c0_4 = arith.constant 0 : index
    %c0_5 = arith.constant 0 : index
    %c0_6 = arith.constant 0 : index
    %9 = vector.load %arg3[%c0_4, %c0_5, %c0_6] : memref<1x128x128xbf16, #tpu.memory_space<vmem>>, vector<1x128x128xbf16>
    %10 = vector.shape_cast %9 : vector<1x128x128xbf16> to vector<128x128xbf16>
    %cst = arith.constant dense<0.000000e+00> : vector<112x128xf32>
    %11 = tpu.matmul %8, %10, %cst {dimension_numbers = #tpu.dot_dimension_numbers<[1], [0], [0], [1], [0, 0, 1, 1], [], []>} : vector<112x128xbf16>, vector<128x128xbf16>, vector<112x128xf32> -> vector<112x128xf32>
    %c0_7 = arith.constant 0 : index
    %c0_8 = arith.constant 0 : index
    %12 = vector.load %arg8[%c0_7, %c0_8] : memref<112x128xf32, #tpu.memory_space<vmem>>, vector<112x128xf32>
    tpu.vector_store %arg8[%c0_7, %c0_8], %11 {strides = array<i32>} : memref<112x128xf32, #tpu.memory_space<vmem>>, vector<112x128xf32>,
    %c0_9 = arith.constant 0 : index
    %c0_10 = arith.constant 0 : index
    %13 = vector.load %arg8[%c0_9, %c0_10] : memref<112x128xf32, #tpu.memory_space<vmem>>, vector<112x128xf32>
    %c0_11 = arith.constant 0 : index
    %c0_12 = arith.constant 0 : index
    %14 = vector.load %arg4[%c0_11, %c0_12] : memref<1x128xf32, #tpu.memory_space<vmem>>, vector<1x128xf32>
    %15 = vector.broadcast %14 : vector<1x128xf32> to vector<112x128xf32>
    %16 = arith.mulf %13, %15 : vector<112x128xf32>
    %c0_13 = arith.constant 0 : index
    %c0_14 = arith.constant 0 : index
    %17 = vector.load %arg5[%c0_13, %c0_14] : memref<1x128xf32, #tpu.memory_space<vmem>>, vector<1x128xf32>
    %18 = vector.broadcast %17 : vector<1x128xf32> to vector<112x128xf32>
    %19 = arith.addf %16, %18 : vector<112x128xf32>
    %20 = arith.truncf %19 : vector<112x128xf32> to vector<112x128xbf16>
    %c0_15 = arith.constant 0 : index
    %c0_16 = arith.constant 0 : index
    %21 = vector.load %arg6[%c0_15, %c0_16] : memref<112x128xbf16, #tpu.memory_space<vmem>>, vector<112x128xbf16>
    tpu.vector_store %arg6[%c0_15, %c0_16], %20 {strides = array<i32>} : memref<112x128xbf16, #tpu.memory_space<vmem>>, vector<112x128xbf16>,
    return
  }
  func.func @transform_1(%arg0: i32, %arg1: i32) -> (i32, i32, i32) {
    %c0_i32 = arith.constant 0 : i32
    %c0_i32_0 = arith.constant 0 : i32
    %c0_i32_1 = arith.constant 0 : i32
    return %c0_i32, %c0_i32_0, %arg1 : i32, i32, i32
  }
  func.func @transform_2(%arg0: i32, %arg1: i32) -> (i32, i32) {
    %c0_i32 = arith.constant 0 : i32
    %c0_i32_0 = arith.constant 0 : i32
    return %c0_i32, %arg1 : i32, i32
  }
  func.func @transform_3(%arg0: i32, %arg1: i32) -> (i32, i32) {
    %c0_i32 = arith.constant 0 : i32
    %c0_i32_0 = arith.constant 0 : i32
    return %c0_i32, %arg1 : i32, i32
  }
  func.func @transform_4(%arg0: i32, %arg1: i32) -> (i32, i32) {
    %c0_i32 = arith.constant 0 : i32
    return %arg0, %arg1 : i32, i32
  }
}

module attributes {stable_mosaic.version = 11 : i64} {
  func.func @_tap_conv_kernel(%arg0: i32, %arg1: i32, %arg2: memref<256x128xbf16, #tpu.memory_space<any>>, %arg3: memref<9x128x128xbf16, #tpu.memory_space<vmem>>, %arg4: memref<1x128xf32, #tpu.memory_space<vmem>>, %arg5: memref<1x128xf32, #tpu.memory_space<vmem>>, %arg6: memref<112x128xbf16, #tpu.memory_space<vmem>>, %arg7: memref<112x128xf32, #tpu.memory_space<vmem>>, %arg8: memref<144x128xbf16, #tpu.memory_space<vmem>>, %arg9: memref<112x128xf32, #tpu.memory_space<vmem>>, %arg10: memref<1x!tpu.dma_semaphore, #tpu.memory_space<semaphore_mem>>) attributes {dimension_semantics = [#tpu.dimension_semantics<parallel>, #tpu.dimension_semantics<parallel>], iteration_bounds = array<i64: 2, 1>, scalar_prefetch = 0 : i64, scratch_operands = 3 : i64, tpu.core_type = #tpu.core_type<tc>, window_params = [{}, {transform_indices = @transform_1, window_bounds = array<i64: 9, 128, 128>}, {transform_indices = @transform_2, window_bounds = array<i64: 1, 128>}, {transform_indices = @transform_3, window_bounds = array<i64: 1, 128>}, {transform_indices = @transform_4, window_bounds = array<i64: 112, 128>}, {transform_indices = @transform_5, window_bounds = array<i64: 112, 128>}]} {
    %c112_i32 = arith.constant 112 : i32
    %0 = arith.muli %arg0, %c112_i32 : i32
    %1 = tpu.assume_multiple %0, 16 : i32
    %c0_i32 = arith.constant 0 : i32
    %c0_i32_0 = arith.constant 0 : i32
    %2 = tpu.memref_slice %arg2[%1, %c0_i32_0] : memref<256x128xbf16, #tpu.memory_space<any>> -> memref<144x128xbf16, #tpu.memory_space<any>>
    %3 = tpu.memref_slice %arg10[%c0_i32] : memref<1x!tpu.dma_semaphore, #tpu.memory_space<semaphore_mem>> -> memref<1x!tpu.dma_semaphore, #tpu.memory_space<semaphore_mem>>
    %4 = tpu.memref_squeeze %3 : memref<1x!tpu.dma_semaphore, #tpu.memory_space<semaphore_mem>> -> memref<!tpu.dma_semaphore, #tpu.memory_space<semaphore_mem>>
    tpu.enqueue_dma source(%2 : memref<144x128xbf16, #tpu.memory_space<any>>) target(%arg8 : memref<144x128xbf16, #tpu.memory_space<vmem>>) target_semaphore(%4 : memref<!tpu.dma_semaphore, #tpu.memory_space<semaphore_mem>>)
    %c0_i32_1 = arith.constant 0 : i32
    %c0_i32_2 = arith.constant 0 : i32
    %5 = tpu.memref_slice %arg2[%1, %c0_i32_2] : memref<256x128xbf16, #tpu.memory_space<any>> -> memref<144x128xbf16, #tpu.memory_space<any>>
    %6 = tpu.memref_slice %arg10[%c0_i32_1] : memref<1x!tpu.dma_semaphore, #tpu.memory_space<semaphore_mem>> -> memref<1x!tpu.dma_semaphore, #tpu.memory_space<semaphore_mem>>
    %7 = tpu.memref_squeeze %6 : memref<1x!tpu.dma_semaphore, #tpu.memory_space<semaphore_mem>> -> memref<!tpu.dma_semaphore, #tpu.memory_space<semaphore_mem>>
    tpu.wait_dma2 semaphore(%7 : memref<!tpu.dma_semaphore, #tpu.memory_space<semaphore_mem>>) src(%5 : memref<144x128xbf16, #tpu.memory_space<any>>) dst(%arg8 : memref<144x128xbf16, #tpu.memory_space<vmem>>)
    %c0 = arith.constant 0 : index
    %c0_3 = arith.constant 0 : index
    %8 = vector.load %arg8[%c0, %c0_3] : memref<144x128xbf16, #tpu.memory_space<vmem>>, vector<112x128xbf16>
    %c0_4 = arith.constant 0 : index
    %c0_5 = arith.constant 0 : index
    %c0_6 = arith.constant 0 : index
    %9 = vector.load %arg3[%c0_4, %c0_5, %c0_6] : memref<9x128x128xbf16, #tpu.memory_space<vmem>>, vector<1x128x128xbf16>
    %10 = vector.shape_cast %9 : vector<1x128x128xbf16> to vector<128x128xbf16>
    %cst = arith.constant dense<0.000000e+00> : vector<112x128xf32>
    %11 = tpu.matmul %8, %10, %cst {dimension_numbers = #tpu.dot_dimension_numbers<[1], [0], [0], [1], [0, 0, 1, 1], [], []>} : vector<112x128xbf16>, vector<128x128xbf16>, vector<112x128xf32> -> vector<112x128xf32>
    %c0_7 = arith.constant 0 : index
    %c0_8 = arith.constant 0 : index
    %12 = vector.load %arg9[%c0_7, %c0_8] : memref<112x128xf32, #tpu.memory_space<vmem>>, vector<112x128xf32>
    tpu.vector_store %arg9[%c0_7, %c0_8], %11 {strides = array<i32>} : memref<112x128xf32, #tpu.memory_space<vmem>>, vector<112x128xf32>,
    %c1 = arith.constant 1 : index
    %c0_9 = arith.constant 0 : index
    %13 = vector.load %arg8[%c1, %c0_9] : memref<144x128xbf16, #tpu.memory_space<vmem>>, vector<112x128xbf16>
    %c1_10 = arith.constant 1 : index
    %c0_11 = arith.constant 0 : index
    %c0_12 = arith.constant 0 : index
    %14 = vector.load %arg3[%c1_10, %c0_11, %c0_12] : memref<9x128x128xbf16, #tpu.memory_space<vmem>>, vector<1x128x128xbf16>
    %15 = vector.shape_cast %14 : vector<1x128x128xbf16> to vector<128x128xbf16>
    %cst_13 = arith.constant dense<0.000000e+00> : vector<112x128xf32>
    %16 = tpu.matmul %13, %15, %cst_13 {dimension_numbers = #tpu.dot_dimension_numbers<[1], [0], [0], [1], [0, 0, 1, 1], [], []>} : vector<112x128xbf16>, vector<128x128xbf16>, vector<112x128xf32> -> vector<112x128xf32>
    %c0_14 = arith.constant 0 : index
    %c0_15 = arith.constant 0 : index
    %17 = vector.load %arg9[%c0_14, %c0_15] : memref<112x128xf32, #tpu.memory_space<vmem>>, vector<112x128xf32>
    %18 = arith.addf %17, %16 : vector<112x128xf32>
    %c0_16 = arith.constant 0 : index
    %c0_17 = arith.constant 0 : index
    %19 = vector.load %arg9[%c0_16, %c0_17] : memref<112x128xf32, #tpu.memory_space<vmem>>, vector<112x128xf32>
    tpu.vector_store %arg9[%c0_16, %c0_17], %18 {strides = array<i32>} : memref<112x128xf32, #tpu.memory_space<vmem>>, vector<112x128xf32>,
    %c2 = arith.constant 2 : index
    %c0_18 = arith.constant 0 : index
    %20 = vector.load %arg8[%c2, %c0_18] : memref<144x128xbf16, #tpu.memory_space<vmem>>, vector<112x128xbf16>
    %c2_19 = arith.constant 2 : index
    %c0_20 = arith.constant 0 : index
    %c0_21 = arith.constant 0 : index
    %21 = vector.load %arg3[%c2_19, %c0_20, %c0_21] : memref<9x128x128xbf16, #tpu.memory_space<vmem>>, vector<1x128x128xbf16>
    %22 = vector.shape_cast %21 : vector<1x128x128xbf16> to vector<128x128xbf16>
    %cst_22 = arith.constant dense<0.000000e+00> : vector<112x128xf32>
    %23 = tpu.matmul %20, %22, %cst_22 {dimension_numbers = #tpu.dot_dimension_numbers<[1], [0], [0], [1], [0, 0, 1, 1], [], []>} : vector<112x128xbf16>, vector<128x128xbf16>, vector<112x128xf32> -> vector<112x128xf32>
    %c0_23 = arith.constant 0 : index
    %c0_24 = arith.constant 0 : index
    %24 = vector.load %arg9[%c0_23, %c0_24] : memref<112x128xf32, #tpu.memory_space<vmem>>, vector<112x128xf32>
    %25 = arith.addf %24, %23 : vector<112x128xf32>
    %c0_25 = arith.constant 0 : index
    %c0_26 = arith.constant 0 : index
    %26 = vector.load %arg9[%c0_25, %c0_26] : memref<112x128xf32, #tpu.memory_space<vmem>>, vector<112x128xf32>
    tpu.vector_store %arg9[%c0_25, %c0_26], %25 {strides = array<i32>} : memref<112x128xf32, #tpu.memory_space<vmem>>, vector<112x128xf32>,
    %c10 = arith.constant 10 : index
    %c0_27 = arith.constant 0 : index
    %27 = vector.load %arg8[%c10, %c0_27] : memref<144x128xbf16, #tpu.memory_space<vmem>>, vector<112x128xbf16>
    %c3 = arith.constant 3 : index
    %c0_28 = arith.constant 0 : index
    %c0_29 = arith.constant 0 : index
    %28 = vector.load %arg3[%c3, %c0_28, %c0_29] : memref<9x128x128xbf16, #tpu.memory_space<vmem>>, vector<1x128x128xbf16>
    %29 = vector.shape_cast %28 : vector<1x128x128xbf16> to vector<128x128xbf16>
    %cst_30 = arith.constant dense<0.000000e+00> : vector<112x128xf32>
    %30 = tpu.matmul %27, %29, %cst_30 {dimension_numbers = #tpu.dot_dimension_numbers<[1], [0], [0], [1], [0, 0, 1, 1], [], []>} : vector<112x128xbf16>, vector<128x128xbf16>, vector<112x128xf32> -> vector<112x128xf32>
    %c0_31 = arith.constant 0 : index
    %c0_32 = arith.constant 0 : index
    %31 = vector.load %arg9[%c0_31, %c0_32] : memref<112x128xf32, #tpu.memory_space<vmem>>, vector<112x128xf32>
    %32 = arith.addf %31, %30 : vector<112x128xf32>
    %c0_33 = arith.constant 0 : index
    %c0_34 = arith.constant 0 : index
    %33 = vector.load %arg9[%c0_33, %c0_34] : memref<112x128xf32, #tpu.memory_space<vmem>>, vector<112x128xf32>
    tpu.vector_store %arg9[%c0_33, %c0_34], %32 {strides = array<i32>} : memref<112x128xf32, #tpu.memory_space<vmem>>, vector<112x128xf32>,
    %c11 = arith.constant 11 : index
    %c0_35 = arith.constant 0 : index
    %34 = vector.load %arg8[%c11, %c0_35] : memref<144x128xbf16, #tpu.memory_space<vmem>>, vector<112x128xbf16>
    %c4 = arith.constant 4 : index
    %c0_36 = arith.constant 0 : index
    %c0_37 = arith.constant 0 : index
    %35 = vector.load %arg3[%c4, %c0_36, %c0_37] : memref<9x128x128xbf16, #tpu.memory_space<vmem>>, vector<1x128x128xbf16>
    %36 = vector.shape_cast %35 : vector<1x128x128xbf16> to vector<128x128xbf16>
    %cst_38 = arith.constant dense<0.000000e+00> : vector<112x128xf32>
    %37 = tpu.matmul %34, %36, %cst_38 {dimension_numbers = #tpu.dot_dimension_numbers<[1], [0], [0], [1], [0, 0, 1, 1], [], []>} : vector<112x128xbf16>, vector<128x128xbf16>, vector<112x128xf32> -> vector<112x128xf32>
    %c0_39 = arith.constant 0 : index
    %c0_40 = arith.constant 0 : index
    %38 = vector.load %arg9[%c0_39, %c0_40] : memref<112x128xf32, #tpu.memory_space<vmem>>, vector<112x128xf32>
    %39 = arith.addf %38, %37 : vector<112x128xf32>
    %c0_41 = arith.constant 0 : index
    %c0_42 = arith.constant 0 : index
    %40 = vector.load %arg9[%c0_41, %c0_42] : memref<112x128xf32, #tpu.memory_space<vmem>>, vector<112x128xf32>
    tpu.vector_store %arg9[%c0_41, %c0_42], %39 {strides = array<i32>} : memref<112x128xf32, #tpu.memory_space<vmem>>, vector<112x128xf32>,
    %c12 = arith.constant 12 : index
    %c0_43 = arith.constant 0 : index
    %41 = vector.load %arg8[%c12, %c0_43] : memref<144x128xbf16, #tpu.memory_space<vmem>>, vector<112x128xbf16>
    %c5 = arith.constant 5 : index
    %c0_44 = arith.constant 0 : index
    %c0_45 = arith.constant 0 : index
    %42 = vector.load %arg3[%c5, %c0_44, %c0_45] : memref<9x128x128xbf16, #tpu.memory_space<vmem>>, vector<1x128x128xbf16>
    %43 = vector.shape_cast %42 : vector<1x128x128xbf16> to vector<128x128xbf16>
    %cst_46 = arith.constant dense<0.000000e+00> : vector<112x128xf32>
    %44 = tpu.matmul %41, %43, %cst_46 {dimension_numbers = #tpu.dot_dimension_numbers<[1], [0], [0], [1], [0, 0, 1, 1], [], []>} : vector<112x128xbf16>, vector<128x128xbf16>, vector<112x128xf32> -> vector<112x128xf32>
    %c0_47 = arith.constant 0 : index
    %c0_48 = arith.constant 0 : index
    %45 = vector.load %arg9[%c0_47, %c0_48] : memref<112x128xf32, #tpu.memory_space<vmem>>, vector<112x128xf32>
    %46 = arith.addf %45, %44 : vector<112x128xf32>
    %c0_49 = arith.constant 0 : index
    %c0_50 = arith.constant 0 : index
    %47 = vector.load %arg9[%c0_49, %c0_50] : memref<112x128xf32, #tpu.memory_space<vmem>>, vector<112x128xf32>
    tpu.vector_store %arg9[%c0_49, %c0_50], %46 {strides = array<i32>} : memref<112x128xf32, #tpu.memory_space<vmem>>, vector<112x128xf32>,
    %c20 = arith.constant 20 : index
    %c0_51 = arith.constant 0 : index
    %48 = vector.load %arg8[%c20, %c0_51] : memref<144x128xbf16, #tpu.memory_space<vmem>>, vector<112x128xbf16>
    %c6 = arith.constant 6 : index
    %c0_52 = arith.constant 0 : index
    %c0_53 = arith.constant 0 : index
    %49 = vector.load %arg3[%c6, %c0_52, %c0_53] : memref<9x128x128xbf16, #tpu.memory_space<vmem>>, vector<1x128x128xbf16>
    %50 = vector.shape_cast %49 : vector<1x128x128xbf16> to vector<128x128xbf16>
    %cst_54 = arith.constant dense<0.000000e+00> : vector<112x128xf32>
    %51 = tpu.matmul %48, %50, %cst_54 {dimension_numbers = #tpu.dot_dimension_numbers<[1], [0], [0], [1], [0, 0, 1, 1], [], []>} : vector<112x128xbf16>, vector<128x128xbf16>, vector<112x128xf32> -> vector<112x128xf32>
    %c0_55 = arith.constant 0 : index
    %c0_56 = arith.constant 0 : index
    %52 = vector.load %arg9[%c0_55, %c0_56] : memref<112x128xf32, #tpu.memory_space<vmem>>, vector<112x128xf32>
    %53 = arith.addf %52, %51 : vector<112x128xf32>
    %c0_57 = arith.constant 0 : index
    %c0_58 = arith.constant 0 : index
    %54 = vector.load %arg9[%c0_57, %c0_58] : memref<112x128xf32, #tpu.memory_space<vmem>>, vector<112x128xf32>
    tpu.vector_store %arg9[%c0_57, %c0_58], %53 {strides = array<i32>} : memref<112x128xf32, #tpu.memory_space<vmem>>, vector<112x128xf32>,
    %c21 = arith.constant 21 : index
    %c0_59 = arith.constant 0 : index
    %55 = vector.load %arg8[%c21, %c0_59] : memref<144x128xbf16, #tpu.memory_space<vmem>>, vector<112x128xbf16>
    %c7 = arith.constant 7 : index
    %c0_60 = arith.constant 0 : index
    %c0_61 = arith.constant 0 : index
    %56 = vector.load %arg3[%c7, %c0_60, %c0_61] : memref<9x128x128xbf16, #tpu.memory_space<vmem>>, vector<1x128x128xbf16>
    %57 = vector.shape_cast %56 : vector<1x128x128xbf16> to vector<128x128xbf16>
    %cst_62 = arith.constant dense<0.000000e+00> : vector<112x128xf32>
    %58 = tpu.matmul %55, %57, %cst_62 {dimension_numbers = #tpu.dot_dimension_numbers<[1], [0], [0], [1], [0, 0, 1, 1], [], []>} : vector<112x128xbf16>, vector<128x128xbf16>, vector<112x128xf32> -> vector<112x128xf32>
    %c0_63 = arith.constant 0 : index
    %c0_64 = arith.constant 0 : index
    %59 = vector.load %arg9[%c0_63, %c0_64] : memref<112x128xf32, #tpu.memory_space<vmem>>, vector<112x128xf32>
    %60 = arith.addf %59, %58 : vector<112x128xf32>
    %c0_65 = arith.constant 0 : index
    %c0_66 = arith.constant 0 : index
    %61 = vector.load %arg9[%c0_65, %c0_66] : memref<112x128xf32, #tpu.memory_space<vmem>>, vector<112x128xf32>
    tpu.vector_store %arg9[%c0_65, %c0_66], %60 {strides = array<i32>} : memref<112x128xf32, #tpu.memory_space<vmem>>, vector<112x128xf32>,
    %c22 = arith.constant 22 : index
    %c0_67 = arith.constant 0 : index
    %62 = vector.load %arg8[%c22, %c0_67] : memref<144x128xbf16, #tpu.memory_space<vmem>>, vector<112x128xbf16>
    %c8 = arith.constant 8 : index
    %c0_68 = arith.constant 0 : index
    %c0_69 = arith.constant 0 : index
    %63 = vector.load %arg3[%c8, %c0_68, %c0_69] : memref<9x128x128xbf16, #tpu.memory_space<vmem>>, vector<1x128x128xbf16>
    %64 = vector.shape_cast %63 : vector<1x128x128xbf16> to vector<128x128xbf16>
    %cst_70 = arith.constant dense<0.000000e+00> : vector<112x128xf32>
    %65 = tpu.matmul %62, %64, %cst_70 {dimension_numbers = #tpu.dot_dimension_numbers<[1], [0], [0], [1], [0, 0, 1, 1], [], []>} : vector<112x128xbf16>, vector<128x128xbf16>, vector<112x128xf32> -> vector<112x128xf32>
    %c0_71 = arith.constant 0 : index
    %c0_72 = arith.constant 0 : index
    %66 = vector.load %arg9[%c0_71, %c0_72] : memref<112x128xf32, #tpu.memory_space<vmem>>, vector<112x128xf32>
    %67 = arith.addf %66, %65 : vector<112x128xf32>
    %c0_73 = arith.constant 0 : index
    %c0_74 = arith.constant 0 : index
    %68 = vector.load %arg9[%c0_73, %c0_74] : memref<112x128xf32, #tpu.memory_space<vmem>>, vector<112x128xf32>
    tpu.vector_store %arg9[%c0_73, %c0_74], %67 {strides = array<i32>} : memref<112x128xf32, #tpu.memory_space<vmem>>, vector<112x128xf32>,
    %c0_75 = arith.constant 0 : index
    %c0_76 = arith.constant 0 : index
    %69 = vector.load %arg9[%c0_75, %c0_76] : memref<112x128xf32, #tpu.memory_space<vmem>>, vector<112x128xf32>
    %c0_77 = arith.constant 0 : index
    %c0_78 = arith.constant 0 : index
    %70 = vector.load %arg4[%c0_77, %c0_78] : memref<1x128xf32, #tpu.memory_space<vmem>>, vector<1x128xf32>
    %71 = vector.broadcast %70 : vector<1x128xf32> to vector<112x128xf32>
    %72 = arith.mulf %69, %71 : vector<112x128xf32>
    %c0_79 = arith.constant 0 : index
    %c0_80 = arith.constant 0 : index
    %73 = vector.load %arg5[%c0_79, %c0_80] : memref<1x128xf32, #tpu.memory_space<vmem>>, vector<1x128xf32>
    %74 = vector.broadcast %73 : vector<1x128xf32> to vector<112x128xf32>
    %75 = arith.addf %72, %74 : vector<112x128xf32>
    %cst_81 = arith.constant 0.000000e+00 : f32
    %76 = vector.broadcast %cst_81 : f32 to vector<112x128xf32>
    %77 = arith.cmpf oge, %75, %76 : vector<112x128xf32>
    %cst_82 = arith.constant 0.00999999977 : f32
    %78 = vector.broadcast %cst_82 : f32 to vector<112x128xf32>
    %79 = arith.mulf %78, %75 : vector<112x128xf32>
    %80 = arith.select %77, %75, %79 : vector<112x128xi1>, vector<112x128xf32>
    %c0_83 = arith.constant 0 : index
    %c0_84 = arith.constant 0 : index
    %81 = vector.load %arg6[%c0_83, %c0_84] : memref<112x128xbf16, #tpu.memory_space<vmem>>, vector<112x128xbf16>
    %82 = arith.extf %81 : vector<112x128xbf16> to vector<112x128xf32>
    %83 = arith.addf %80, %82 : vector<112x128xf32>
    %cst_85 = arith.constant 0.000000e+00 : f32
    %84 = vector.broadcast %cst_85 : f32 to vector<112x128xf32>
    %85 = arith.cmpf oge, %83, %84 : vector<112x128xf32>
    %cst_86 = arith.constant 0.00999999977 : f32
    %86 = vector.broadcast %cst_86 : f32 to vector<112x128xf32>
    %87 = arith.mulf %86, %83 : vector<112x128xf32>
    %88 = arith.select %85, %83, %87 : vector<112x128xi1>, vector<112x128xf32>
    %c0_87 = arith.constant 0 : index
    %c0_88 = arith.constant 0 : index
    %89 = vector.load %arg7[%c0_87, %c0_88] : memref<112x128xf32, #tpu.memory_space<vmem>>, vector<112x128xf32>
    tpu.vector_store %arg7[%c0_87, %c0_88], %88 {strides = array<i32>} : memref<112x128xf32, #tpu.memory_space<vmem>>, vector<112x128xf32>,
    return
  }
  func.func @transform_1(%arg0: i32, %arg1: i32) -> (i32, i32, i32) {
    %c0_i32 = arith.constant 0 : i32
    %c0_i32_0 = arith.constant 0 : i32
    %c0_i32_1 = arith.constant 0 : i32
    return %c0_i32, %c0_i32_0, %arg1 : i32, i32, i32
  }
  func.func @transform_2(%arg0: i32, %arg1: i32) -> (i32, i32) {
    %c0_i32 = arith.constant 0 : i32
    %c0_i32_0 = arith.constant 0 : i32
    return %c0_i32, %arg1 : i32, i32
  }
  func.func @transform_3(%arg0: i32, %arg1: i32) -> (i32, i32) {
    %c0_i32 = arith.constant 0 : i32
    %c0_i32_0 = arith.constant 0 : i32
    return %c0_i32, %arg1 : i32, i32
  }
  func.func @transform_4(%arg0: i32, %arg1: i32) -> (i32, i32) {
    %c0_i32 = arith.constant 0 : i32
    return %arg0, %arg1 : i32, i32
  }
  func.func @transform_5(%arg0: i32, %arg1: i32) -> (i32, i32) {
    %c0_i32 = arith.constant 0 : i32
    return %arg0, %arg1 : i32, i32
  }
}

</mosaic_0001>

<llo_original>
// kernel: resnet_block_forward.3
$region0: #{resnet_block_forward.3}
  #allocation0 [shape = 'u32[]', space=smem, size = 0x4, offset = 0x4, fixed_abs, tag = 'smem constant byte address 0x4 - core index']
  #allocation1 [shape = 'u32[144,128]{1,0:T(1,128)}', space=vmem, size = 0x12000, scoped, tag = 'internal scratch']
  #allocation2 [shape = 'bf16[64,128]{1,0:T(16,128)(2,1)}', space=vmem, size = 0x4000, scoped, tag = 'scratch operand']
  #allocation3 [shape = 'f32[64,128]{1,0:T(8,128)}', space=vmem, size = 0x8000, scoped, tag = 'scratch operand']
  #allocation4 [shape = 's32[1]{0}', space=sflag, size = 0x4, scoped, tag = 'scratch operand']
  #allocation5 [shape = 's32[]', space=sflag, size = 0x4, offset = 0, fixed_abs, tag = 'sflag constant byte address 0x0 - dummy sync flag']
  %s0 = inlined_call_operand.vmem [shape: bf16[128,128], index: 0, kind: input, shape index: {}]
  %s1 = inlined_call_operand.vmem [shape: bf16[1,128,128], index: 1, kind: input, shape index: {}]
  %s2 = inlined_call_operand.vmem [shape: f32[1,128], index: 2, kind: input, shape index: {}]
  %s3 = inlined_call_operand.vmem [shape: f32[1,128], index: 3, kind: input, shape index: {}]
  %s4 = inlined_call_operand.vmem [shape: bf16[128,128], index: 4, kind: output, shape index: {}]
  %s5 = sld [smem:[#allocation0]]
  $region79: #{resnet_block_forward.3} parent=0
    _
  %s7 = ssub.s32 1, %s5
  %s8 = scalar_select 0, %s7, %s5
  loop: start=0, step=1, limit=4
  $region2: #{resnet_block_forward.3} parent=0 // loop_pre_header
    _
  $region3: #{resnet_block_forward.3} parent=0 // loop_header
    %s10 = sphi 0, %s14
    %p11 = scmp.ge.s32.totalorder %s10, 4
    %s17 = sphi 0, %s29
    %s18 = sphi 0, %s25
    %s19 = sphi 0, %s17
    %s20 = sphi 0, %s18
    %s21 = sphi 0, %s19
    %s22 = sphi 0, %s20
    %s32 = sphi 0, %s34
    %s35 = sphi 0, %s32
    %s36 = sphi 0, %s35
    %s52 = sphi 0, %s36
    %s58 = sphi 0, %s60
    %s61 = sphi 0, %s58
    %s62 = sphi 0, %s61
    %s78 = sphi 0, %s62
    %s84 = sphi 0, %s86
    %s87 = sphi 0, %s84
    %s88 = sphi 0, %s87
    %s104 = sphi 0, %s88
    %s112 = sphi 0, %s114
    %s115 = sphi 0, %s112
    %s116 = sphi 0, %s115
    %s132 = sphi 0, %s116
  $region4: #{resnet_block_forward.3} parent=0 // loop_header_branch
    %13 = sbr.rel (%p11) target = $region8
  $region5: #{resnet_block_forward.3} parent=0 // loop_body
    %s15 = ssub.s32 %s10, 1
    %s16 = ssub.s32 %s10, 2
    %s23 = sadd.s32 1, %s18
    %p24 = scmp.ge.s32.totalorder %s23, 1
    %s25 = scalar_select %p24, 0, %s23
    %s26 = sadd.s32 1, %s17
    %s27 = scalar_select %p24, %s26, %s17
    %p28 = scmp.ge.s32.totalorder %s27, 2
    %s29 = scalar_select %p28, 0, %s27
    %s30 = ssub.s32 %s18, %s25
    %p31 = scmp.eq.s32.totalorder %s30, 0
    %s33 = sadd.s32 %s32, 1
    %s34 = scalar_select %p31, %s32, %s33
    %p37 = pneg %p31
    %p38 = scmp.eq.s32.totalorder %s10, 1
    %p39 = por %p37, %p38
    %p40 = scmp.ne.s32.totalorder %s32, %s35
    %p41 = scmp.eq.s32.totalorder %s10, 0
    %p42 = por %p40, %p41
    %p43 = scmp.ne.s32.totalorder %s32, %s35
    %p44 = scmp.eq.s32.totalorder %s15, 1
    %p45 = por %p43, %p44
    %p46 = scmp.ne.s32.totalorder %s35, %s36
    %p47 = scmp.eq.s32.totalorder %s15, 0
    %p48 = por %p46, %p47
    %p49 = scmp.ne.s32.totalorder %s35, %s36
    %p50 = scmp.eq.s32.totalorder %s16, 1
    %p51 = por %p49, %p50
    %p53 = scmp.ne.s32.totalorder %s36, %s52
    %p54 = scmp.eq.s32.totalorder %s16, 0
    %p55 = por %p53, %p54
    %s56 = ssub.s32 %s18, %s25
    %p57 = scmp.eq.s32.totalorder %s56, 0
    %s59 = sadd.s32 %s58, 1
    %s60 = scalar_select %p57, %s58, %s59
    %p63 = pneg %p57
    %p64 = scmp.eq.s32.totalorder %s10, 1
    %p65 = por %p63, %p64
    %p66 = scmp.ne.s32.totalorder %s58, %s61
    %p67 = scmp.eq.s32.totalorder %s10, 0
    %p68 = por %p66, %p67
    %p69 = scmp.ne.s32.totalorder %s58, %s61
    %p70 = scmp.eq.s32.totalorder %s15, 1
    %p71 = por %p69, %p70
    %p72 = scmp.ne.s32.totalorder %s61, %s62
    %p73 = scmp.eq.s32.totalorder %s15, 0
    %p74 = por %p72, %p73
    %p75 = scmp.ne.s32.totalorder %s61, %s62
    %p76 = scmp.eq.s32.totalorder %s16, 1
    %p77 = por %p75, %p76
    %p79 = scmp.ne.s32.totalorder %s62, %s78
    %p80 = scmp.eq.s32.totalorder %s16, 0
    %p81 = por %p79, %p80
    %s82 = ssub.s32 %s18, %s25
    %p83 = scmp.eq.s32.totalorder %s82, 0
    %s85 = sadd.s32 %s84, 1
    %s86 = scalar_select %p83, %s84, %s85
    %p89 = pneg %p83
    %p90 = scmp.eq.s32.totalorder %s10, 1
    %p91 = por %p89, %p90
    %p92 = scmp.ne.s32.totalorder %s84, %s87
    %p93 = scmp.eq.s32.totalorder %s10, 0
    %p94 = por %p92, %p93
    %p95 = scmp.ne.s32.totalorder %s84, %s87
    %p96 = scmp.eq.s32.totalorder %s15, 1
    %p97 = por %p95, %p96
    %p98 = scmp.ne.s32.totalorder %s87, %s88
    %p99 = scmp.eq.s32.totalorder %s15, 0
    %p100 = por %p98, %p99
    %p101 = scmp.ne.s32.totalorder %s87, %s88
    %p102 = scmp.eq.s32.totalorder %s16, 1
    %p103 = por %p101, %p102
    %p105 = scmp.ne.s32.totalorder %s88, %s104
    %p106 = scmp.eq.s32.totalorder %s16, 0
    %p107 = por %p105, %p106
    %s108 = ssub.s32 %s17, %s29
    %s109 = ssub.s32 %s18, %s25
    %s110 = sor.u32 %s108, %s109
    %p111 = scmp.eq.s32.totalorder %s110, 0
    %s113 = sadd.s32 %s112, 1
    %s114 = scalar_select %p111, %s112, %s113
    %p117 = pneg %p111
    %p118 = scmp.eq.s32.totalorder %s10, 1
    %p119 = por %p117, %p118
    %p120 = scmp.ne.s32.totalorder %s112, %s115
    %p121 = scmp.eq.s32.totalorder %s10, 0
    %p122 = por %p120, %p121
    %p123 = scmp.ne.s32.totalorder %s112, %s115
    %p124 = scmp.eq.s32.totalorder %s15, 1
    %p125 = por %p123, %p124
    %p126 = scmp.ne.s32.totalorder %s115, %s116
    %p127 = scmp.eq.s32.totalorder %s15, 0
    %p128 = por %p126, %p127
    %p129 = scmp.ne.s32.totalorder %s115, %s116
    %p130 = scmp.eq.s32.totalorder %s16, 1
    %p131 = por %p129, %p130
    %p133 = scmp.ne.s32.totalorder %s116, %s132
    %p134 = scmp.eq.s32.totalorder %s16, 0
    %p135 = por %p133, %p134
    %p136 = scmp.le.s32.totalorder 1, %s10
    %p137 = scmp.lt.s32.totalorder %s10, 3
    %p138 = pnand %p136, %p137
    %p139 = pneg %p138
    // Predicated region
    $region9: #{resnet_block_forward.3} parent=5 // pred_check
      _
    $region10: #{resnet_block_forward.3} parent=5 // pred_check_branch
      %141 = sbr.rel (%p138) target = $region12
    $region11: #{resnet_block_forward.3} parent=5 // pred_region
      %s142 = ssub.s32 %s10, 1
      // Predicated region
      $region13: #{resnet_block_forward.3} parent=11 // pred_check
        %p143 = pneg %p48
      $region14: #{resnet_block_forward.3} parent=11 // pred_check_branch
        %145 = sbr.rel (%p143) target = $region16
      $region15: #{resnet_block_forward.3} parent=11 // pred_region
        %p146 = scmp.lt.s32.totalorder %s20, 0
        %s147 = scalar_select %p146, %s20, 0
        %s148 = smul.addr %s147, 4
        %s149 = scalar_lea.vmem %s1, %s148
      $region16: #{resnet_block_forward.3} parent=11 // pred_fallthru
        _
      // Predicated region
      $region17: #{resnet_block_forward.3} parent=11 // pred_check
        %p150 = pneg %p74
      $region18: #{resnet_block_forward.3} parent=11 // pred_check_branch
        %152 = sbr.rel (%p150) target = $region20
      $region19: #{resnet_block_forward.3} parent=11 // pred_region
        %p153 = scmp.lt.s32.totalorder %s20, 0
        %s154 = scalar_select %p153, %s20, 0
        %s155 = scalar_lea.vmem %s2, %s154
      $region20: #{resnet_block_forward.3} parent=11 // pred_fallthru
        _
      // Predicated region
      $region21: #{resnet_block_forward.3} parent=11 // pred_check
        %p156 = pneg %p100
      $region22: #{resnet_block_forward.3} parent=11 // pred_check_branch
        %158 = sbr.rel (%p156) target = $region24
      $region23: #{resnet_block_forward.3} parent=11 // pred_region
        %p159 = scmp.lt.s32.totalorder %s20, 0
        %s160 = scalar_select %p159, %s20, 0
        %s161 = scalar_lea.vmem %s3, %s160
      $region24: #{resnet_block_forward.3} parent=11 // pred_fallthru
        _
    $region12: #{resnet_block_forward.3} parent=5 // pred_fallthru
      _
    %p162 = scmp.lt.s32.totalorder %s10, 2
    // Predicated region
    $region25: #{resnet_block_forward.3} parent=5 // pred_check
      %p163 = pneg %p162
    $region26: #{resnet_block_forward.3} parent=5 // pred_check_branch
      %165 = sbr.rel (%p163) target = $region28
    $region27: #{resnet_block_forward.3} parent=5 // pred_region
      _
    $region28: #{resnet_block_forward.3} parent=5 // pred_fallthru
      _
    %p166 = scmp.le.s32.totalorder 1, %s10
    %p167 = scmp.lt.s32.totalorder %s10, 3
    %p168 = pnand %p166, %p167
    %p169 = pneg %p168
    // Predicated region
    $region29: #{resnet_block_forward.3} parent=5 // pred_check
      _
    $region30: #{resnet_block_forward.3} parent=5 // pred_check_branch
      %171 = sbr.rel (%p168) target = $region32
    $region31: #{resnet_block_forward.3} parent=5 // pred_region
      %s172 = ssub.s32 %s10, 1
      %p173 = scmp.lt.s32.totalorder %s20, 0
      %s174 = scalar_select %p173, %s20, 0
      %s175 = smul.addr %s174, 4
      %s176 = scalar_lea.vmem %s1, %s175
      %p177 = pneg %p48
      %p178 = pneg %p45
      %p179 = scmp.lt.s32.totalorder %s20, 0
      %s180 = scalar_select %p179, %s20, 0
      %s181 = scalar_lea.vmem %s2, %s180
      %p182 = pneg %p74
      %p183 = pneg %p71
      %p184 = scmp.lt.s32.totalorder %s20, 0
      %s185 = scalar_select %p184, %s20, 0
      %s186 = scalar_lea.vmem %s3, %s185
      %p187 = pneg %p100
      %p188 = pneg %p97
      %p189 = pneg %p128
      %p190 = pneg %p125
      %s191 = smul.u32 8, %s19
      %p192 = scmp.lt.s32.totalorder %s191, 15
      %s193 = scalar_select %p192, %s191, 15
      %p194 = scmp.lt.s32.totalorder %s20, 0
      %s195 = scalar_select %p194, %s20, 0
      %s196 = sadd.s32 %s195, %s193
      %s197 = smul.addr %s196, 4
      %s198 = scalar_lea.vmem %s4, %s197
      %p199 = scmp.lt.s32.totalorder %s20, 0
      %s200 = scalar_select %p199, %s20, 0
      %s201 = smul.addr %s200, 4
      %s202 = scalar_lea.vmem %s1, %s201
      %p203 = scmp.lt.s32.totalorder %s20, 0
      %s204 = scalar_select %p203, %s20, 0
      %s205 = scalar_lea.vmem %s2, %s204
      %p206 = scmp.lt.s32.totalorder %s20, 0
      %s207 = scalar_select %p206, %s20, 0
      %s208 = scalar_lea.vmem %s3, %s207
      %s209 = smul.u32 8, %s19
      %p210 = scmp.lt.s32.totalorder %s209, 15
      %s211 = scalar_select %p210, %s209, 15
      %p212 = scmp.lt.s32.totalorder %s20, 0
      %s213 = scalar_select %p212, %s20, 0
      %s214 = sadd.s32 %s213, %s211
      %s215 = smul.addr %s214, 4
      %s216 = scalar_lea.vmem %s4, %s215
      %s217 = smul.u32 8, %s19
      %s219 = smul.u32 %s19, 64
      %s220 = sshra.s32 %s219, 3
      %s221 = sand.u32 %s219, 7
      %s222 = smul.addr %s220, 4
      %s223 = scalar_lea.vmem %s0, %s222
      %p225 = scmp.lt.u32.totalorder 32, 8
      %p226 = pneg %p225
      // Predicated region
      $region33: #{resnet_block_forward.3} parent=31 // pred_check
        _
      $region34: #{resnet_block_forward.3} parent=31 // pred_check_branch
        %228 = sbr.rel (%p225) target = $region36
      $region35: #{resnet_block_forward.3} parent=31 // pred_region
        %s243 = sand.u32 32, 7
        %p244 = scmp.eq.s32.totalorder %s243, 0
        // Predicated region
        $region48: #{resnet_block_forward.3} parent=35 // pred_check
          %p245 = pneg %p244
        $region49: #{resnet_block_forward.3} parent=35 // pred_check_branch
          %247 = sbr.rel (%p245) target = $region51
        $region50: #{resnet_block_forward.3} parent=35 // pred_region
          loop: start=0, step=1, limit=1
          $region52: #{resnet_block_forward.3} parent=50 // loop_pre_header
            _
          $region53: #{resnet_block_forward.3} parent=50 // loop_header
            %s249 = sphi 0, %s253
            %p250 = scmp.ge.s32.totalorder %s249, 1
            %s254 = sphi %s223, %s223
            %s255 = sphi [#allocation2], [#allocation2]
          $region54: #{resnet_block_forward.3} parent=50 // loop_header_branch
            %252 = sbr.rel (%p250) target = $region58
          $region55: #{resnet_block_forward.3} parent=50 // loop_body
            %v256 = vld [vmem:[%s254] sm:$0xff]
            %257 = vst [vmem:[%s255] sm:$0xff] %v256
            %v258 = vld [vmem:[%s254 + $0x8] sm:$0xff]
            %259 = vst [vmem:[%s255 + $0x8] sm:$0xff] %v258
            %v260 = vld [vmem:[%s254 + $0x10] sm:$0xff]
            %261 = vst [vmem:[%s255 + $0x10] sm:$0xff] %v260
            %v262 = vld [vmem:[%s254 + $0x18] sm:$0xff]
            %263 = vst [vmem:[%s255 + $0x18] sm:$0xff] %v262
          $region56: #{resnet_block_forward.3} parent=50 // loop_footer
            %s253 = sadd.s32 1, %s249
          $region57: #{resnet_block_forward.3} parent=50 // loop_footer_branch
            %248 = sbr.rel target = $region53
          $region58: #{resnet_block_forward.3} parent=50 // loop_exit
            _
        $region51: #{resnet_block_forward.3} parent=35 // pred_fallthru
          _
        %p264 = pneg %p244
        // Predicated region
        $region59: #{resnet_block_forward.3} parent=35 // pred_check
          _
        $region60: #{resnet_block_forward.3} parent=35 // pred_check_branch
          %266 = sbr.rel (%p244) target = $region62
        $region61: #{resnet_block_forward.3} parent=35 // pred_region
          %s267 = sand.u32 32, 7
        $region62: #{resnet_block_forward.3} parent=35 // pred_fallthru
          _
      $region36: #{resnet_block_forward.3} parent=31 // pred_fallthru
        _
      // Predicated region
      $region37: #{resnet_block_forward.3} parent=31 // pred_check
        %p229 = pneg %p225
      $region38: #{resnet_block_forward.3} parent=31 // pred_check_branch
        %231 = sbr.rel (%p229) target = $region40
      $region39: #{resnet_block_forward.3} parent=31 // pred_region
        %s232 = sshllo.u32 0, 32
        loop: start=0, step=1, limit=1
        $region41: #{resnet_block_forward.3} parent=39 // loop_pre_header
          _
        $region42: #{resnet_block_forward.3} parent=39 // loop_header
          %s234 = sphi 0, %s238
          %p235 = scmp.ge.s32.totalorder %s234, 1
          %s239 = sphi %s223, %s223
          %s240 = sphi [#allocation2], [#allocation2]
        $region43: #{resnet_block_forward.3} parent=39 // loop_header_branch
          %237 = sbr.rel (%p235) target = $region47
        $region44: #{resnet_block_forward.3} parent=39 // loop_body
          %v241 = vld [vmem:[%s239] sm:%s232]
          %242 = vst [vmem:[%s240] sm:%s232] %v241
        $region45: #{resnet_block_forward.3} parent=39 // loop_footer
          %s238 = sadd.s32 1, %s234
        $region46: #{resnet_block_forward.3} parent=39 // loop_footer_branch
          %233 = sbr.rel target = $region42
        $region47: #{resnet_block_forward.3} parent=39 // loop_exit
          _
      $region40: #{resnet_block_forward.3} parent=31 // pred_fallthru
        _
      // Predicated region
      $region63: #{resnet_block_forward.3} parent=31 // pred_check
        _
      $region64: #{resnet_block_forward.3} parent=31 // pred_check_branch
        %270 = sbr.rel (0) target = $region66
      $region65: #{resnet_block_forward.3} parent=31 // pred_region
        %271 = vsyncadd [#allocation4], 512
      $region66: #{resnet_block_forward.3} parent=31 // pred_fallthru
        _
      %s272 = smul.u32 4, 8
      %s273 = smul.u32 %s272, 1
      %s274 = sshll.u32 %s273, 4
      %275 = dma.done [#allocation4], %s274
      %v276 = vld [vmem:[#allocation2] sm:$0xff]
      %v277 = vld [vmem:[#allocation2 + $0x8] sm:$0xff]
      %v278 = vld [vmem:[#allocation2 + $0x10] sm:$0xff]
      %v279 = vld [vmem:[#allocation2 + $0x18] sm:$0xff]
      %v280 = vld [vmem:[%s202] sm:$0xf]
      %v281 = vld [vmem:[%s202 + $0x4] sm:$0xf]
      %v282 = vld [vmem:[%s202 + $0x8] sm:$0xf]
      %v283 = vld [vmem:[%s202 + $0xc] sm:$0xf]
      %v284 = vld [vmem:[%s202 + $0x10] sm:$0xf]
      %v285 = vld [vmem:[%s202 + $0x14] sm:$0xf]
      %v286 = vld [vmem:[%s202 + $0x18] sm:$0xf]
      %v287 = vld [vmem:[%s202 + $0x1c] sm:$0xf]
      %v288 = vld [vmem:[%s202 + $0x20] sm:$0xf]
      %v289 = vld [vmem:[%s202 + $0x24] sm:$0xf]
      %v290 = vld [vmem:[%s202 + $0x28] sm:$0xf]
      %v291 = vld [vmem:[%s202 + $0x2c] sm:$0xf]
      %v292 = vld [vmem:[%s202 + $0x30] sm:$0xf]
      %v293 = vld [vmem:[%s202 + $0x34] sm:$0xf]
      %v294 = vld [vmem:[%s202 + $0x38] sm:$0xf]
      %v295 = vld [vmem:[%s202 + $0x3c] sm:$0xf]
      %v312 = vunpack.c.l.b16 %v280
      %v313 = vunpack.c.l.b16 %v281
      %v314 = vunpack.c.l.b16 %v282
      %v315 = vunpack.c.l.b16 %v283
      %v316 = vunpack.c.l.b16 %v284
      %v317 = vunpack.c.l.b16 %v285
      %v318 = vunpack.c.l.b16 %v286
      %v319 = vunpack.c.l.b16 %v287
      %v320 = vunpack.c.l.b16 %v288
      %v321 = vunpack.c.l.b16 %v289
      %v322 = vunpack.c.l.b16 %v290
      %v323 = vunpack.c.l.b16 %v291
      %v324 = vunpack.c.l.b16 %v292
      %v325 = vunpack.c.l.b16 %v293
      %v326 = vunpack.c.l.b16 %v294
      %v327 = vunpack.c.l.b16 %v295
      %v328 = vpack.c.b16 %v313, %v312
      %v329 = vpack.c.b16 %v315, %v314
      %v330 = vpack.c.b16 %v317, %v316
      %v331 = vpack.c.b16 %v319, %v318
      %v332 = vpack.c.b16 %v321, %v320
      %v333 = vpack.c.b16 %v323, %v322
      %v334 = vpack.c.b16 %v325, %v324
      %v335 = vpack.c.b16 %v327, %v326
      %344 = vmatprep.subr.bf16.mxu0 0
      %345 = vmatpush1.bf16.msra.mxu0 %v328
      %346 = vmatprep.subr.bf16.mxu0 0
      %347 = vmatpush1.bf16.msra.mxu0 %v329
      %348 = vmatprep.subr.bf16.mxu0 0
      %349 = vmatpush1.bf16.msra.mxu0 %v330
      %350 = vmatprep.subr.bf16.mxu0 0
      %351 = vmatpush1.bf16.msra.mxu0 %v331
      %352 = vmatprep.subr.bf16.mxu0 0
      %353 = vmatpush1.bf16.msra.mxu0 %v332
      %354 = vmatprep.subr.bf16.mxu0 0
      %355 = vmatpush1.bf16.msra.mxu0 %v333
      %356 = vmatprep.subr.bf16.mxu0 0
      %357 = vmatpush1.bf16.msra.mxu0 %v334
      %358 = vmatprep.subr.bf16.mxu0 0
      %359 = vmatpush1.bf16.msra.mxu0 %v335
      %360 = vmatprep.subr.bf16.mxu0 0
      %361 = vmatpush1.bf16.msra.mxu0 0
      %362 = vmatprep.subr.bf16.mxu0 0
      %363 = vmatpush1.bf16.msra.mxu0 0
      %364 = vmatprep.subr.bf16.mxu0 0
      %365 = vmatpush1.bf16.msra.mxu0 0
      %366 = vmatprep.subr.bf16.mxu0 0
      %367 = vmatpush1.bf16.msra.mxu0 0
      %368 = vmatprep.subr.bf16.mxu0 0
      %369 = vmatpush1.bf16.msra.mxu0 0
      %370 = vmatprep.subr.bf16.mxu0 0
      %371 = vmatpush1.bf16.msra.mxu0 0
      %372 = vmatprep.subr.bf16.mxu0 0
      %373 = vmatpush1.bf16.msra.mxu0 0
      %374 = vmatprep.subr.bf16.mxu0 0
      %375 = vmatpush1.bf16.msra.mxu0 0
      %376 = vmatprep.mubr.bf16.mxu0 0
      %377 = vmatmul.mubr.bf16.gmra.mrb[0].mxu0 %v276
      %v378 = vpop.f32.mrb[0].mxu0
      %v379 = vadd.f32 0.0, %v378
      %v380 = vpop.f32.mrb[0].mxu0
      %v381 = vpop.f32.mrb[0].mxu0
      %v382 = vadd.f32 0.0, %v381
      %v383 = vpop.f32.mrb[0].mxu0
      %384 = vmatprep.mubr.bf16.mxu0 0
      %385 = vmatmul.mubr.bf16.gmra.mrb[0].mxu0 %v277
      %v386 = vpop.f32.mrb[0].mxu0
      %v387 = vadd.f32 0.0, %v386
      %v388 = vpop.f32.mrb[0].mxu0
      %v389 = vpop.f32.mrb[0].mxu0
      %v390 = vadd.f32 0.0, %v389
      %v391 = vpop.f32.mrb[0].mxu0
      %392 = vmatprep.mubr.bf16.mxu0 0
      %393 = vmatmul.mubr.bf16.gmra.mrb[0].mxu0 %v278
      %v394 = vpop.f32.mrb[0].mxu0
      %v395 = vadd.f32 0.0, %v394
      %v396 = vpop.f32.mrb[0].mxu0
      %v397 = vpop.f32.mrb[0].mxu0
      %v398 = vadd.f32 0.0, %v397
      %v399 = vpop.f32.mrb[0].mxu0
      %400 = vmatprep.mubr.bf16.mxu0 0
      %401 = vmatmul.mubr.bf16.gmra.mrb[0].mxu0 %v279
      %v402 = vpop.f32.mrb[0].mxu0
      %v403 = vadd.f32 0.0, %v402
      %v404 = vpop.f32.mrb[0].mxu0
      %v405 = vpop.f32.mrb[0].mxu0
      %v406 = vadd.f32 0.0, %v405
      %v407 = vpop.f32.mrb[0].mxu0
      %408 = vdwg.mxu0
      %409 = vst [vmem:[#allocation3] sm:$0xff] %v379
      %410 = vst [vmem:[#allocation3 + $0x8] sm:$0xff] %v382
      %411 = vst [vmem:[#allocation3 + $0x10] sm:$0xff] %v387
      %412 = vst [vmem:[#allocation3 + $0x18] sm:$0xff] %v390
      %413 = vst [vmem:[#allocation3 + $0x20] sm:$0xff] %v395
      %414 = vst [vmem:[#allocation3 + $0x28] sm:$0xff] %v398
      %415 = vst [vmem:[#allocation3 + $0x30] sm:$0xff] %v403
      %416 = vst [vmem:[#allocation3 + $0x38] sm:$0xff] %v406
      %v417 = vld [vmem:[#allocation3] sm:$0xff]
      %v418 = vld [vmem:[#allocation3 + $0x8] sm:$0xff]
      %v419 = vld [vmem:[#allocation3 + $0x10] sm:$0xff]
      %v420 = vld [vmem:[#allocation3 + $0x18] sm:$0xff]
      %v421 = vld [vmem:[#allocation3 + $0x20] sm:$0xff]
      %v422 = vld [vmem:[#allocation3 + $0x28] sm:$0xff]
      %v423 = vld [vmem:[#allocation3 + $0x30] sm:$0xff]
      %v424 = vld [vmem:[#allocation3 + $0x38] sm:$0xff]
      %v425 = vld [vmem:[%s205] sm:$0x1]
      %v427 = vlaneseq
      %v428 = vshrl.u32 %v427, 7
      %v429 = vsub.s32 0, %v428
      %v430 = vrot.slane %v425, %v429
      %v432 = vmul.f32 %v417, %v430
      %v433 = vmul.f32 %v418, %v430
      %v434 = vmul.f32 %v419, %v430
      %v435 = vmul.f32 %v420, %v430
      %v436 = vmul.f32 %v421, %v430
      %v437 = vmul.f32 %v422, %v430
      %v438 = vmul.f32 %v423, %v430
      %v439 = vmul.f32 %v424, %v430
      %v440 = vld [vmem:[%s208] sm:$0x1]
      %v442 = vlaneseq
      %v443 = vshrl.u32 %v442, 7
      %v444 = vsub.s32 0, %v443
      %v445 = vrot.slane %v440, %v444
      %v447 = vadd.f32 %v432, %v445
      %v448 = vadd.f32 %v433, %v445
      %v449 = vadd.f32 %v434, %v445
      %v450 = vadd.f32 %v435, %v445
      %v451 = vadd.f32 %v436, %v445
      %v452 = vadd.f32 %v437, %v445
      %v453 = vadd.f32 %v438, %v445
      %v454 = vadd.f32 %v439, %v445
      %vm455 = vcmp.ge.f32.partialorder %v447, 0.0
      %vm456 = vcmp.ge.f32.partialorder %v448, 0.0
      %vm457 = vcmp.ge.f32.partialorder %v449, 0.0
      %vm458 = vcmp.ge.f32.partialorder %v450, 0.0
      %vm459 = vcmp.ge.f32.partialorder %v451, 0.0
      %vm460 = vcmp.ge.f32.partialorder %v452, 0.0
      %vm461 = vcmp.ge.f32.partialorder %v453, 0.0
      %vm462 = vcmp.ge.f32.partialorder %v454, 0.0
      %v463 = vmul.f32 %v447, 0.01
      %v464 = vmul.f32 %v448, 0.01
      %v465 = vmul.f32 %v449, 0.01
      %v466 = vmul.f32 %v450, 0.01
      %v467 = vmul.f32 %v451, 0.01
      %v468 = vmul.f32 %v452, 0.01
      %v469 = vmul.f32 %v453, 0.01
      %v470 = vmul.f32 %v454, 0.01
      %v471 = vsel %vm455, %v447, %v463
      %v472 = vsel %vm456, %v448, %v464
      %v473 = vsel %vm457, %v449, %v465
      %v474 = vsel %vm458, %v450, %v466
      %v475 = vsel %vm459, %v451, %v467
      %v476 = vsel %vm460, %v452, %v468
      %v477 = vsel %vm461, %v453, %v469
      %v478 = vsel %vm462, %v454, %v470
      %v479 = vpack.c.bf16 %v472, %v471
      %v480 = vpack.c.bf16 %v474, %v473
      %v481 = vpack.c.bf16 %v476, %v475
      %v482 = vpack.c.bf16 %v478, %v477
      %v487 = vunpack.c.l.b16 %v479
      %v488 = vunpack.c.h.b16 %v479
      %v489 = vunpack.c.l.b16 %v480
      %v490 = vunpack.c.h.b16 %v480
      %v491 = vunpack.c.l.b16 %v481
      %v492 = vunpack.c.h.b16 %v481
      %v493 = vunpack.c.l.b16 %v482
      %v494 = vunpack.c.h.b16 %v482
      %v495 = vpack.c.b16 %v487, %v487
      %v496 = vpack.c.b16 %v488, %v488
      %v497 = vpack.c.b16 %v489, %v489
      %v498 = vpack.c.b16 %v490, %v490
      %v499 = vpack.c.b16 %v491, %v491
      %v500 = vpack.c.b16 %v492, %v492
      %v501 = vpack.c.b16 %v493, %v493
      %v502 = vpack.c.b16 %v494, %v494
      %511 = vst [vmem:[%s216] sm:$0xf] %v495
      %512 = vst [vmem:[%s216 + $0x4] sm:$0xf] %v496
      %513 = vst [vmem:[%s216 + $0x8] sm:$0xf] %v497
      %514 = vst [vmem:[%s216 + $0xc] sm:$0xf] %v498
      %515 = vst [vmem:[%s216 + $0x10] sm:$0xf] %v499
      %516 = vst [vmem:[%s216 + $0x14] sm:$0xf] %v500
      %517 = vst [vmem:[%s216 + $0x18] sm:$0xf] %v501
      %518 = vst [vmem:[%s216 + $0x1c] sm:$0xf] %v502
      %s519 = smul.u32 8, %s19
      %p520 = scmp.lt.s32.totalorder %s519, 15
      %s521 = scalar_select %p520, %s519, 15
      %p522 = scmp.lt.s32.totalorder %s20, 0
      %s523 = scalar_select %p522, %s20, 0
      %s524 = sadd.s32 %s523, %s521
      %s525 = smul.addr %s524, 4
      %s526 = scalar_lea.vmem %s4, %s525
      // Predicated region
      $region67: #{resnet_block_forward.3} parent=31 // pred_check
        %p527 = pneg %p125
      $region68: #{resnet_block_forward.3} parent=31 // pred_check_branch
        %529 = sbr.rel (%p527) target = $region70
      $region69: #{resnet_block_forward.3} parent=31 // pred_region
        %s530 = smul.u32 8, %s19
      $region70: #{resnet_block_forward.3} parent=31 // pred_fallthru
        _
    $region32: #{resnet_block_forward.3} parent=5 // pred_fallthru
      _
    %p531 = scmp.le.s32.totalorder 2, %s10
    // Predicated region
    $region71: #{resnet_block_forward.3} parent=5 // pred_check
      %p532 = pneg %p531
    $region72: #{resnet_block_forward.3} parent=5 // pred_check_branch
      %534 = sbr.rel (%p532) target = $region74
    $region73: #{resnet_block_forward.3} parent=5 // pred_region
      %s535 = ssub.s32 %s10, 2
      // Predicated region
      $region75: #{resnet_block_forward.3} parent=73 // pred_check
        %p536 = pneg %p131
      $region76: #{resnet_block_forward.3} parent=73 // pred_check_branch
        %538 = sbr.rel (%p536) target = $region78
      $region77: #{resnet_block_forward.3} parent=73 // pred_region
        %s539 = smul.u32 8, %s21
        %p540 = scmp.lt.s32.totalorder %s539, 15
        %s541 = scalar_select %p540, %s539, 15
        %p542 = scmp.lt.s32.totalorder %s22, 0
        %s543 = scalar_select %p542, %s22, 0
        %s544 = sadd.s32 %s543, %s541
        %s545 = smul.addr %s544, 4
        %s546 = scalar_lea.vmem %s4, %s545
      $region78: #{resnet_block_forward.3} parent=73 // pred_fallthru
        _
    $region74: #{resnet_block_forward.3} parent=5 // pred_fallthru
      _
  $region6: #{resnet_block_forward.3} parent=0 // loop_footer
    %s14 = sadd.s32 1, %s10
  $region7: #{resnet_block_forward.3} parent=0 // loop_footer_branch
    %9 = sbr.rel target = $region3
  $region8: #{resnet_block_forward.3} parent=0 // loop_exit
    _
  %547 = vsyncmov [#allocation4]
  %s548 = vpop.sfrf %547
  %p549 = scmp.eq.s32.totalorder %s548, 0
  %p550 = pneg %p549
  %552 = shalt.err (%p550)

// kernel: resnet_block_forward.4
$region0: #{resnet_block_forward.4}
  #allocation0 [shape = 'u32[]', space=smem, size = 0x4, offset = 0x4, fixed_abs, tag = 'smem constant byte address 0x4 - core index']
  #allocation1 [shape = 'u32[144,128]{1,0:T(1,128)}', space=vmem, size = 0x12000, scoped, tag = 'internal scratch']
  #allocation2 [shape = 'bf16[112,128]{1,0:T(16,128)(2,1)}', space=vmem, size = 0x7000, scoped, tag = 'scratch operand']
  #allocation3 [shape = 'f32[112,128]{1,0:T(8,128)}', space=vmem, size = 0xe000, scoped, tag = 'scratch operand']
  #allocation4 [shape = 's32[1]{0}', space=sflag, size = 0x4, scoped, tag = 'scratch operand']
  #allocation5 [shape = 's32[]', space=sflag, size = 0x4, offset = 0, fixed_abs, tag = 'sflag constant byte address 0x0 - dummy sync flag']
  %s0 = inlined_call_operand.vmem [shape: bf16[224,128], index: 0, kind: input, shape index: {}]
  %s1 = inlined_call_operand.vmem [shape: bf16[1,128,128], index: 1, kind: input, shape index: {}]
  %s2 = inlined_call_operand.vmem [shape: f32[1,128], index: 2, kind: input, shape index: {}]
  %s3 = inlined_call_operand.vmem [shape: f32[1,128], index: 3, kind: input, shape index: {}]
  %s4 = inlined_call_operand.vmem [shape: bf16[224,128], index: 4, kind: output, shape index: {}]
  %s5 = sld [smem:[#allocation0]]
  $region79: #{resnet_block_forward.4} parent=0
    _
  %s7 = ssub.s32 1, %s5
  %s8 = scalar_select 0, %s7, %s5
  loop: start=0, step=1, limit=4
  $region2: #{resnet_block_forward.4} parent=0 // loop_pre_header
    _
  $region3: #{resnet_block_forward.4} parent=0 // loop_header
    %s10 = sphi 0, %s14
    %p11 = scmp.ge.s32.totalorder %s10, 4
    %s17 = sphi 0, %s29
    %s18 = sphi 0, %s25
    %s19 = sphi 0, %s17
    %s20 = sphi 0, %s18
    %s21 = sphi 0, %s19
    %s22 = sphi 0, %s20
    %s32 = sphi 0, %s34
    %s35 = sphi 0, %s32
    %s36 = sphi 0, %s35
    %s52 = sphi 0, %s36
    %s58 = sphi 0, %s60
    %s61 = sphi 0, %s58
    %s62 = sphi 0, %s61
    %s78 = sphi 0, %s62
    %s84 = sphi 0, %s86
    %s87 = sphi 0, %s84
    %s88 = sphi 0, %s87
    %s104 = sphi 0, %s88
    %s112 = sphi 0, %s114
    %s115 = sphi 0, %s112
    %s116 = sphi 0, %s115
    %s132 = sphi 0, %s116
  $region4: #{resnet_block_forward.4} parent=0 // loop_header_branch
    %13 = sbr.rel (%p11) target = $region8
  $region5: #{resnet_block_forward.4} parent=0 // loop_body
    %s15 = ssub.s32 %s10, 1
    %s16 = ssub.s32 %s10, 2
    %s23 = sadd.s32 1, %s18
    %p24 = scmp.ge.s32.totalorder %s23, 1
    %s25 = scalar_select %p24, 0, %s23
    %s26 = sadd.s32 1, %s17
    %s27 = scalar_select %p24, %s26, %s17
    %p28 = scmp.ge.s32.totalorder %s27, 2
    %s29 = scalar_select %p28, 0, %s27
    %s30 = ssub.s32 %s18, %s25
    %p31 = scmp.eq.s32.totalorder %s30, 0
    %s33 = sadd.s32 %s32, 1
    %s34 = scalar_select %p31, %s32, %s33
    %p37 = pneg %p31
    %p38 = scmp.eq.s32.totalorder %s10, 1
    %p39 = por %p37, %p38
    %p40 = scmp.ne.s32.totalorder %s32, %s35
    %p41 = scmp.eq.s32.totalorder %s10, 0
    %p42 = por %p40, %p41
    %p43 = scmp.ne.s32.totalorder %s32, %s35
    %p44 = scmp.eq.s32.totalorder %s15, 1
    %p45 = por %p43, %p44
    %p46 = scmp.ne.s32.totalorder %s35, %s36
    %p47 = scmp.eq.s32.totalorder %s15, 0
    %p48 = por %p46, %p47
    %p49 = scmp.ne.s32.totalorder %s35, %s36
    %p50 = scmp.eq.s32.totalorder %s16, 1
    %p51 = por %p49, %p50
    %p53 = scmp.ne.s32.totalorder %s36, %s52
    %p54 = scmp.eq.s32.totalorder %s16, 0
    %p55 = por %p53, %p54
    %s56 = ssub.s32 %s18, %s25
    %p57 = scmp.eq.s32.totalorder %s56, 0
    %s59 = sadd.s32 %s58, 1
    %s60 = scalar_select %p57, %s58, %s59
    %p63 = pneg %p57
    %p64 = scmp.eq.s32.totalorder %s10, 1
    %p65 = por %p63, %p64
    %p66 = scmp.ne.s32.totalorder %s58, %s61
    %p67 = scmp.eq.s32.totalorder %s10, 0
    %p68 = por %p66, %p67
    %p69 = scmp.ne.s32.totalorder %s58, %s61
    %p70 = scmp.eq.s32.totalorder %s15, 1
    %p71 = por %p69, %p70
    %p72 = scmp.ne.s32.totalorder %s61, %s62
    %p73 = scmp.eq.s32.totalorder %s15, 0
    %p74 = por %p72, %p73
    %p75 = scmp.ne.s32.totalorder %s61, %s62
    %p76 = scmp.eq.s32.totalorder %s16, 1
    %p77 = por %p75, %p76
    %p79 = scmp.ne.s32.totalorder %s62, %s78
    %p80 = scmp.eq.s32.totalorder %s16, 0
    %p81 = por %p79, %p80
    %s82 = ssub.s32 %s18, %s25
    %p83 = scmp.eq.s32.totalorder %s82, 0
    %s85 = sadd.s32 %s84, 1
    %s86 = scalar_select %p83, %s84, %s85
    %p89 = pneg %p83
    %p90 = scmp.eq.s32.totalorder %s10, 1
    %p91 = por %p89, %p90
    %p92 = scmp.ne.s32.totalorder %s84, %s87
    %p93 = scmp.eq.s32.totalorder %s10, 0
    %p94 = por %p92, %p93
    %p95 = scmp.ne.s32.totalorder %s84, %s87
    %p96 = scmp.eq.s32.totalorder %s15, 1
    %p97 = por %p95, %p96
    %p98 = scmp.ne.s32.totalorder %s87, %s88
    %p99 = scmp.eq.s32.totalorder %s15, 0
    %p100 = por %p98, %p99
    %p101 = scmp.ne.s32.totalorder %s87, %s88
    %p102 = scmp.eq.s32.totalorder %s16, 1
    %p103 = por %p101, %p102
    %p105 = scmp.ne.s32.totalorder %s88, %s104
    %p106 = scmp.eq.s32.totalorder %s16, 0
    %p107 = por %p105, %p106
    %s108 = ssub.s32 %s17, %s29
    %s109 = ssub.s32 %s18, %s25
    %s110 = sor.u32 %s108, %s109
    %p111 = scmp.eq.s32.totalorder %s110, 0
    %s113 = sadd.s32 %s112, 1
    %s114 = scalar_select %p111, %s112, %s113
    %p117 = pneg %p111
    %p118 = scmp.eq.s32.totalorder %s10, 1
    %p119 = por %p117, %p118
    %p120 = scmp.ne.s32.totalorder %s112, %s115
    %p121 = scmp.eq.s32.totalorder %s10, 0
    %p122 = por %p120, %p121
    %p123 = scmp.ne.s32.totalorder %s112, %s115
    %p124 = scmp.eq.s32.totalorder %s15, 1
    %p125 = por %p123, %p124
    %p126 = scmp.ne.s32.totalorder %s115, %s116
    %p127 = scmp.eq.s32.totalorder %s15, 0
    %p128 = por %p126, %p127
    %p129 = scmp.ne.s32.totalorder %s115, %s116
    %p130 = scmp.eq.s32.totalorder %s16, 1
    %p131 = por %p129, %p130
    %p133 = scmp.ne.s32.totalorder %s116, %s132
    %p134 = scmp.eq.s32.totalorder %s16, 0
    %p135 = por %p133, %p134
    %p136 = scmp.le.s32.totalorder 1, %s10
    %p137 = scmp.lt.s32.totalorder %s10, 3
    %p138 = pnand %p136, %p137
    %p139 = pneg %p138
    // Predicated region
    $region9: #{resnet_block_forward.4} parent=5 // pred_check
      _
    $region10: #{resnet_block_forward.4} parent=5 // pred_check_branch
      %141 = sbr.rel (%p138) target = $region12
    $region11: #{resnet_block_forward.4} parent=5 // pred_region
      %s142 = ssub.s32 %s10, 1
      // Predicated region
      $region13: #{resnet_block_forward.4} parent=11 // pred_check
        %p143 = pneg %p48
      $region14: #{resnet_block_forward.4} parent=11 // pred_check_branch
        %145 = sbr.rel (%p143) target = $region16
      $region15: #{resnet_block_forward.4} parent=11 // pred_region
        %p146 = scmp.lt.s32.totalorder %s20, 0
        %s147 = scalar_select %p146, %s20, 0
        %s148 = smul.addr %s147, 4
        %s149 = scalar_lea.vmem %s1, %s148
      $region16: #{resnet_block_forward.4} parent=11 // pred_fallthru
        _
      // Predicated region
      $region17: #{resnet_block_forward.4} parent=11 // pred_check
        %p150 = pneg %p74
      $region18: #{resnet_block_forward.4} parent=11 // pred_check_branch
        %152 = sbr.rel (%p150) target = $region20
      $region19: #{resnet_block_forward.4} parent=11 // pred_region
        %p153 = scmp.lt.s32.totalorder %s20, 0
        %s154 = scalar_select %p153, %s20, 0
        %s155 = scalar_lea.vmem %s2, %s154
      $region20: #{resnet_block_forward.4} parent=11 // pred_fallthru
        _
      // Predicated region
      $region21: #{resnet_block_forward.4} parent=11 // pred_check
        %p156 = pneg %p100
      $region22: #{resnet_block_forward.4} parent=11 // pred_check_branch
        %158 = sbr.rel (%p156) target = $region24
      $region23: #{resnet_block_forward.4} parent=11 // pred_region
        %p159 = scmp.lt.s32.totalorder %s20, 0
        %s160 = scalar_select %p159, %s20, 0
        %s161 = scalar_lea.vmem %s3, %s160
      $region24: #{resnet_block_forward.4} parent=11 // pred_fallthru
        _
    $region12: #{resnet_block_forward.4} parent=5 // pred_fallthru
      _
    %p162 = scmp.lt.s32.totalorder %s10, 2
    // Predicated region
    $region25: #{resnet_block_forward.4} parent=5 // pred_check
      %p163 = pneg %p162
    $region26: #{resnet_block_forward.4} parent=5 // pred_check_branch
      %165 = sbr.rel (%p163) target = $region28
    $region27: #{resnet_block_forward.4} parent=5 // pred_region
      _
    $region28: #{resnet_block_forward.4} parent=5 // pred_fallthru
      _
    %p166 = scmp.le.s32.totalorder 1, %s10
    %p167 = scmp.lt.s32.totalorder %s10, 3
    %p168 = pnand %p166, %p167
    %p169 = pneg %p168
    // Predicated region
    $region29: #{resnet_block_forward.4} parent=5 // pred_check
      _
    $region30: #{resnet_block_forward.4} parent=5 // pred_check_branch
      %171 = sbr.rel (%p168) target = $region32
    $region31: #{resnet_block_forward.4} parent=5 // pred_region
      %s172 = ssub.s32 %s10, 1
      %p173 = scmp.lt.s32.totalorder %s20, 0
      %s174 = scalar_select %p173, %s20, 0
      %s175 = smul.addr %s174, 4
      %s176 = scalar_lea.vmem %s1, %s175
      %p177 = pneg %p48
      %p178 = pneg %p45
      %p179 = scmp.lt.s32.totalorder %s20, 0
      %s180 = scalar_select %p179, %s20, 0
      %s181 = scalar_lea.vmem %s2, %s180
      %p182 = pneg %p74
      %p183 = pneg %p71
      %p184 = scmp.lt.s32.totalorder %s20, 0
      %s185 = scalar_select %p184, %s20, 0
      %s186 = scalar_lea.vmem %s3, %s185
      %p187 = pneg %p100
      %p188 = pneg %p97
      %p189 = pneg %p128
      %p190 = pneg %p125
      %s191 = smul.u32 14, %s19
      %p192 = scmp.lt.s32.totalorder %s191, 27
      %s193 = scalar_select %p192, %s191, 27
      %p194 = scmp.lt.s32.totalorder %s20, 0
      %s195 = scalar_select %p194, %s20, 0
      %s196 = sadd.s32 %s195, %s193
      %s197 = smul.addr %s196, 4
      %s198 = scalar_lea.vmem %s4, %s197
      %p199 = scmp.lt.s32.totalorder %s20, 0
      %s200 = scalar_select %p199, %s20, 0
      %s201 = smul.addr %s200, 4
      %s202 = scalar_lea.vmem %s1, %s201
      %p203 = scmp.lt.s32.totalorder %s20, 0
      %s204 = scalar_select %p203, %s20, 0
      %s205 = scalar_lea.vmem %s2, %s204
      %p206 = scmp.lt.s32.totalorder %s20, 0
      %s207 = scalar_select %p206, %s20, 0
      %s208 = scalar_lea.vmem %s3, %s207
      %s209 = smul.u32 14, %s19
      %p210 = scmp.lt.s32.totalorder %s209, 27
      %s211 = scalar_select %p210, %s209, 27
      %p212 = scmp.lt.s32.totalorder %s20, 0
      %s213 = scalar_select %p212, %s20, 0
      %s214 = sadd.s32 %s213, %s211
      %s215 = smul.addr %s214, 4
      %s216 = scalar_lea.vmem %s4, %s215
      %s217 = smul.u32 14, %s19
      %s219 = smul.u32 %s19, 112
      %s220 = sshra.s32 %s219, 3
      %s221 = sand.u32 %s219, 7
      %s222 = smul.addr %s220, 4
      %s223 = scalar_lea.vmem %s0, %s222
      %p225 = scmp.lt.u32.totalorder 56, 8
      %p226 = pneg %p225
      // Predicated region
      $region33: #{resnet_block_forward.4} parent=31 // pred_check
        _
      $region34: #{resnet_block_forward.4} parent=31 // pred_check_branch
        %228 = sbr.rel (%p225) target = $region36
      $region35: #{resnet_block_forward.4} parent=31 // pred_region
        %s243 = sand.u32 56, 7
        %p244 = scmp.eq.s32.totalorder %s243, 0
        // Predicated region
        $region48: #{resnet_block_forward.4} parent=35 // pred_check
          %p245 = pneg %p244
        $region49: #{resnet_block_forward.4} parent=35 // pred_check_branch
          %247 = sbr.rel (%p245) target = $region51
        $region50: #{resnet_block_forward.4} parent=35 // pred_region
          loop: start=0, step=1, limit=1
          $region52: #{resnet_block_forward.4} parent=50 // loop_pre_header
            _
          $region53: #{resnet_block_forward.4} parent=50 // loop_header
            %s249 = sphi 0, %s253
            %p250 = scmp.ge.s32.totalorder %s249, 1
            %s254 = sphi %s223, %s223
            %s255 = sphi [#allocation2], [#allocation2]
          $region54: #{resnet_block_forward.4} parent=50 // loop_header_branch
            %252 = sbr.rel (%p250) target = $region58
          $region55: #{resnet_block_forward.4} parent=50 // loop_body
            %v256 = vld [vmem:[%s254] sm:$0xff]
            %257 = vst [vmem:[%s255] sm:$0xff] %v256
            %v258 = vld [vmem:[%s254 + $0x8] sm:$0xff]
            %259 = vst [vmem:[%s255 + $0x8] sm:$0xff] %v258
            %v260 = vld [vmem:[%s254 + $0x10] sm:$0xff]
            %261 = vst [vmem:[%s255 + $0x10] sm:$0xff] %v260
            %v262 = vld [vmem:[%s254 + $0x18] sm:$0xff]
            %263 = vst [vmem:[%s255 + $0x18] sm:$0xff] %v262
            %v264 = vld [vmem:[%s254 + $0x20] sm:$0xff]
            %265 = vst [vmem:[%s255 + $0x20] sm:$0xff] %v264
            %v266 = vld [vmem:[%s254 + $0x28] sm:$0xff]
            %267 = vst [vmem:[%s255 + $0x28] sm:$0xff] %v266
            %v268 = vld [vmem:[%s254 + $0x30] sm:$0xff]
            %269 = vst [vmem:[%s255 + $0x30] sm:$0xff] %v268
          $region56: #{resnet_block_forward.4} parent=50 // loop_footer
            %s253 = sadd.s32 1, %s249
          $region57: #{resnet_block_forward.4} parent=50 // loop_footer_branch
            %248 = sbr.rel target = $region53
          $region58: #{resnet_block_forward.4} parent=50 // loop_exit
            _
        $region51: #{resnet_block_forward.4} parent=35 // pred_fallthru
          _
        %p270 = pneg %p244
        // Predicated region
        $region59: #{resnet_block_forward.4} parent=35 // pred_check
          _
        $region60: #{resnet_block_forward.4} parent=35 // pred_check_branch
          %272 = sbr.rel (%p244) target = $region62
        $region61: #{resnet_block_forward.4} parent=35 // pred_region
          %s273 = sand.u32 56, 7
        $region62: #{resnet_block_forward.4} parent=35 // pred_fallthru
          _
      $region36: #{resnet_block_forward.4} parent=31 // pred_fallthru
        _
      // Predicated region
      $region37: #{resnet_block_forward.4} parent=31 // pred_check
        %p229 = pneg %p225
      $region38: #{resnet_block_forward.4} parent=31 // pred_check_branch
        %231 = sbr.rel (%p229) target = $region40
      $region39: #{resnet_block_forward.4} parent=31 // pred_region
        %s232 = sshllo.u32 0, 56
        loop: start=0, step=1, limit=1
        $region41: #{resnet_block_forward.4} parent=39 // loop_pre_header
          _
        $region42: #{resnet_block_forward.4} parent=39 // loop_header
          %s234 = sphi 0, %s238
          %p235 = scmp.ge.s32.totalorder %s234, 1
          %s239 = sphi %s223, %s223
          %s240 = sphi [#allocation2], [#allocation2]
        $region43: #{resnet_block_forward.4} parent=39 // loop_header_branch
          %237 = sbr.rel (%p235) target = $region47
        $region44: #{resnet_block_forward.4} parent=39 // loop_body
          %v241 = vld [vmem:[%s239] sm:%s232]
          %242 = vst [vmem:[%s240] sm:%s232] %v241
        $region45: #{resnet_block_forward.4} parent=39 // loop_footer
          %s238 = sadd.s32 1, %s234
        $region46: #{resnet_block_forward.4} parent=39 // loop_footer_branch
          %233 = sbr.rel target = $region42
        $region47: #{resnet_block_forward.4} parent=39 // loop_exit
          _
      $region40: #{resnet_block_forward.4} parent=31 // pred_fallthru
        _
      // Predicated region
      $region63: #{resnet_block_forward.4} parent=31 // pred_check
        _
      $region64: #{resnet_block_forward.4} parent=31 // pred_check_branch
        %276 = sbr.rel (0) target = $region66
      $region65: #{resnet_block_forward.4} parent=31 // pred_region
        %277 = vsyncadd [#allocation4], 896
      $region66: #{resnet_block_forward.4} parent=31 // pred_fallthru
        _
      %s278 = smul.u32 4, 14
      %s279 = smul.u32 %s278, 1
      %s280 = sshll.u32 %s279, 4
      %281 = dma.done [#allocation4], %s280
      %v282 = vld [vmem:[#allocation2] sm:$0xff]
      %v283 = vld [vmem:[#allocation2 + $0x8] sm:$0xff]
      %v284 = vld [vmem:[#allocation2 + $0x10] sm:$0xff]
      %v285 = vld [vmem:[#allocation2 + $0x18] sm:$0xff]
      %v286 = vld [vmem:[#allocation2 + $0x20] sm:$0xff]
      %v287 = vld [vmem:[#allocation2 + $0x28] sm:$0xff]
      %v288 = vld [vmem:[#allocation2 + $0x30] sm:$0xff]
      %v289 = vld [vmem:[%s202] sm:$0xf]
      %v290 = vld [vmem:[%s202 + $0x4] sm:$0xf]
      %v291 = vld [vmem:[%s202 + $0x8] sm:$0xf]
      %v292 = vld [vmem:[%s202 + $0xc] sm:$0xf]
      %v293 = vld [vmem:[%s202 + $0x10] sm:$0xf]
      %v294 = vld [vmem:[%s202 + $0x14] sm:$0xf]
      %v295 = vld [vmem:[%s202 + $0x18] sm:$0xf]
      %v296 = vld [vmem:[%s202 + $0x1c] sm:$0xf]
      %v297 = vld [vmem:[%s202 + $0x20] sm:$0xf]
      %v298 = vld [vmem:[%s202 + $0x24] sm:$0xf]
      %v299 = vld [vmem:[%s202 + $0x28] sm:$0xf]
      %v300 = vld [vmem:[%s202 + $0x2c] sm:$0xf]
      %v301 = vld [vmem:[%s202 + $0x30] sm:$0xf]
      %v302 = vld [vmem:[%s202 + $0x34] sm:$0xf]
      %v303 = vld [vmem:[%s202 + $0x38] sm:$0xf]
      %v304 = vld [vmem:[%s202 + $0x3c] sm:$0xf]
      %v321 = vunpack.c.l.b16 %v289
      %v322 = vunpack.c.l.b16 %v290
      %v323 = vunpack.c.l.b16 %v291
      %v324 = vunpack.c.l.b16 %v292
      %v325 = vunpack.c.l.b16 %v293
      %v326 = vunpack.c.l.b16 %v294
      %v327 = vunpack.c.l.b16 %v295
      %v328 = vunpack.c.l.b16 %v296
      %v329 = vunpack.c.l.b16 %v297
      %v330 = vunpack.c.l.b16 %v298
      %v331 = vunpack.c.l.b16 %v299
      %v332 = vunpack.c.l.b16 %v300
      %v333 = vunpack.c.l.b16 %v301
      %v334 = vunpack.c.l.b16 %v302
      %v335 = vunpack.c.l.b16 %v303
      %v336 = vunpack.c.l.b16 %v304
      %v337 = vpack.c.b16 %v322, %v321
      %v338 = vpack.c.b16 %v324, %v323
      %v339 = vpack.c.b16 %v326, %v325
      %v340 = vpack.c.b16 %v328, %v327
      %v341 = vpack.c.b16 %v330, %v329
      %v342 = vpack.c.b16 %v332, %v331
      %v343 = vpack.c.b16 %v334, %v333
      %v344 = vpack.c.b16 %v336, %v335
      %353 = vmatprep.subr.bf16.mxu0 0
      %354 = vmatpush1.bf16.msra.mxu0 %v337
      %355 = vmatprep.subr.bf16.mxu0 0
      %356 = vmatpush1.bf16.msra.mxu0 %v338
      %357 = vmatprep.subr.bf16.mxu0 0
      %358 = vmatpush1.bf16.msra.mxu0 %v339
      %359 = vmatprep.subr.bf16.mxu0 0
      %360 = vmatpush1.bf16.msra.mxu0 %v340
      %361 = vmatprep.subr.bf16.mxu0 0
      %362 = vmatpush1.bf16.msra.mxu0 %v341
      %363 = vmatprep.subr.bf16.mxu0 0
      %364 = vmatpush1.bf16.msra.mxu0 %v342
      %365 = vmatprep.subr.bf16.mxu0 0
      %366 = vmatpush1.bf16.msra.mxu0 %v343
      %367 = vmatprep.subr.bf16.mxu0 0
      %368 = vmatpush1.bf16.msra.mxu0 %v344
      %369 = vmatprep.subr.bf16.mxu0 0
      %370 = vmatpush1.bf16.msra.mxu0 0
      %371 = vmatprep.subr.bf16.mxu0 0
      %372 = vmatpush1.bf16.msra.mxu0 0
      %373 = vmatprep.subr.bf16.mxu0 0
      %374 = vmatpush1.bf16.msra.mxu0 0
      %375 = vmatprep.subr.bf16.mxu0 0
      %376 = vmatpush1.bf16.msra.mxu0 0
      %377 = vmatprep.subr.bf16.mxu0 0
      %378 = vmatpush1.bf16.msra.mxu0 0
      %379 = vmatprep.subr.bf16.mxu0 0
      %380 = vmatpush1.bf16.msra.mxu0 0
      %381 = vmatprep.subr.bf16.mxu0 0
      %382 = vmatpush1.bf16.msra.mxu0 0
      %383 = vmatprep.subr.bf16.mxu0 0
      %384 = vmatpush1.bf16.msra.mxu0 0
      %385 = vmatprep.mubr.bf16.mxu0 0
      %386 = vmatmul.mubr.bf16.gmra.mrb[0].mxu0 %v282
      %v387 = vpop.f32.mrb[0].mxu0
      %v388 = vadd.f32 0.0, %v387
      %v389 = vpop.f32.mrb[0].mxu0
      %v390 = vpop.f32.mrb[0].mxu0
      %v391 = vadd.f32 0.0, %v390
      %v392 = vpop.f32.mrb[0].mxu0
      %393 = vmatprep.mubr.bf16.mxu0 0
      %394 = vmatmul.mubr.bf16.gmra.mrb[0].mxu0 %v283
      %v395 = vpop.f32.mrb[0].mxu0
      %v396 = vadd.f32 0.0, %v395
      %v397 = vpop.f32.mrb[0].mxu0
      %v398 = vpop.f32.mrb[0].mxu0
      %v399 = vadd.f32 0.0, %v398
      %v400 = vpop.f32.mrb[0].mxu0
      %401 = vmatprep.mubr.bf16.mxu0 0
      %402 = vmatmul.mubr.bf16.gmra.mrb[0].mxu0 %v284
      %v403 = vpop.f32.mrb[0].mxu0
      %v404 = vadd.f32 0.0, %v403
      %v405 = vpop.f32.mrb[0].mxu0
      %v406 = vpop.f32.mrb[0].mxu0
      %v407 = vadd.f32 0.0, %v406
      %v408 = vpop.f32.mrb[0].mxu0
      %409 = vmatprep.mubr.bf16.mxu0 0
      %410 = vmatmul.mubr.bf16.gmra.mrb[0].mxu0 %v285
      %v411 = vpop.f32.mrb[0].mxu0
      %v412 = vadd.f32 0.0, %v411
      %v413 = vpop.f32.mrb[0].mxu0
      %v414 = vpop.f32.mrb[0].mxu0
      %v415 = vadd.f32 0.0, %v414
      %v416 = vpop.f32.mrb[0].mxu0
      %417 = vmatprep.mubr.bf16.mxu0 0
      %418 = vmatmul.mubr.bf16.gmra.mrb[0].mxu0 %v286
      %v419 = vpop.f32.mrb[0].mxu0
      %v420 = vadd.f32 0.0, %v419
      %v421 = vpop.f32.mrb[0].mxu0
      %v422 = vpop.f32.mrb[0].mxu0
      %v423 = vadd.f32 0.0, %v422
      %v424 = vpop.f32.mrb[0].mxu0
      %425 = vmatprep.mubr.bf16.mxu0 0
      %426 = vmatmul.mubr.bf16.gmra.mrb[0].mxu0 %v287
      %v427 = vpop.f32.mrb[0].mxu0
      %v428 = vadd.f32 0.0, %v427
      %v429 = vpop.f32.mrb[0].mxu0
      %v430 = vpop.f32.mrb[0].mxu0
      %v431 = vadd.f32 0.0, %v430
      %v432 = vpop.f32.mrb[0].mxu0
      %433 = vmatprep.mubr.bf16.mxu0 0
      %434 = vmatmul.mubr.bf16.gmra.mrb[0].mxu0 %v288
      %v435 = vpop.f32.mrb[0].mxu0
      %v436 = vadd.f32 0.0, %v435
      %v437 = vpop.f32.mrb[0].mxu0
      %v438 = vpop.f32.mrb[0].mxu0
      %v439 = vadd.f32 0.0, %v438
      %v440 = vpop.f32.mrb[0].mxu0
      %441 = vdwg.mxu0
      %442 = vst [vmem:[#allocation3] sm:$0xff] %v388
      %443 = vst [vmem:[#allocation3 + $0x8] sm:$0xff] %v391
      %444 = vst [vmem:[#allocation3 + $0x10] sm:$0xff] %v396
      %445 = vst [vmem:[#allocation3 + $0x18] sm:$0xff] %v399
      %446 = vst [vmem:[#allocation3 + $0x20] sm:$0xff] %v404
      %447 = vst [vmem:[#allocation3 + $0x28] sm:$0xff] %v407
      %448 = vst [vmem:[#allocation3 + $0x30] sm:$0xff] %v412
      %449 = vst [vmem:[#allocation3 + $0x38] sm:$0xff] %v415
      %450 = vst [vmem:[#allocation3 + $0x40] sm:$0xff] %v420
      %451 = vst [vmem:[#allocation3 + $0x48] sm:$0xff] %v423
      %452 = vst [vmem:[#allocation3 + $0x50] sm:$0xff] %v428
      %453 = vst [vmem:[#allocation3 + $0x58] sm:$0xff] %v431
      %454 = vst [vmem:[#allocation3 + $0x60] sm:$0xff] %v436
      %455 = vst [vmem:[#allocation3 + $0x68] sm:$0xff] %v439
      %v456 = vld [vmem:[#allocation3] sm:$0xff]
      %v457 = vld [vmem:[#allocation3 + $0x8] sm:$0xff]
      %v458 = vld [vmem:[#allocation3 + $0x10] sm:$0xff]
      %v459 = vld [vmem:[#allocation3 + $0x18] sm:$0xff]
      %v460 = vld [vmem:[#allocation3 + $0x20] sm:$0xff]
      %v461 = vld [vmem:[#allocation3 + $0x28] sm:$0xff]
      %v462 = vld [vmem:[#allocation3 + $0x30] sm:$0xff]
      %v463 = vld [vmem:[#allocation3 + $0x38] sm:$0xff]
      %v464 = vld [vmem:[#allocation3 + $0x40] sm:$0xff]
      %v465 = vld [vmem:[#allocation3 + $0x48] sm:$0xff]
      %v466 = vld [vmem:[#allocation3 + $0x50] sm:$0xff]
      %v467 = vld [vmem:[#allocation3 + $0x58] sm:$0xff]
      %v468 = vld [vmem:[#allocation3 + $0x60] sm:$0xff]
      %v469 = vld [vmem:[#allocation3 + $0x68] sm:$0xff]
      %v470 = vld [vmem:[%s205] sm:$0x1]
      %v472 = vlaneseq
      %v473 = vshrl.u32 %v472, 7
      %v474 = vsub.s32 0, %v473
      %v475 = vrot.slane %v470, %v474
      %v477 = vmul.f32 %v456, %v475
      %v478 = vmul.f32 %v457, %v475
      %v479 = vmul.f32 %v458, %v475
      %v480 = vmul.f32 %v459, %v475
      %v481 = vmul.f32 %v460, %v475
      %v482 = vmul.f32 %v461, %v475
      %v483 = vmul.f32 %v462, %v475
      %v484 = vmul.f32 %v463, %v475
      %v485 = vmul.f32 %v464, %v475
      %v486 = vmul.f32 %v465, %v475
      %v487 = vmul.f32 %v466, %v475
      %v488 = vmul.f32 %v467, %v475
      %v489 = vmul.f32 %v468, %v475
      %v490 = vmul.f32 %v469, %v475
      %v491 = vld [vmem:[%s208] sm:$0x1]
      %v493 = vlaneseq
      %v494 = vshrl.u32 %v493, 7
      %v495 = vsub.s32 0, %v494
      %v496 = vrot.slane %v491, %v495
      %v498 = vadd.f32 %v477, %v496
      %v499 = vadd.f32 %v478, %v496
      %v500 = vadd.f32 %v479, %v496
      %v501 = vadd.f32 %v480, %v496
      %v502 = vadd.f32 %v481, %v496
      %v503 = vadd.f32 %v482, %v496
      %v504 = vadd.f32 %v483, %v496
      %v505 = vadd.f32 %v484, %v496
      %v506 = vadd.f32 %v485, %v496
      %v507 = vadd.f32 %v486, %v496
      %v508 = vadd.f32 %v487, %v496
      %v509 = vadd.f32 %v488, %v496
      %v510 = vadd.f32 %v489, %v496
      %v511 = vadd.f32 %v490, %v496
      %v512 = vpack.c.bf16 %v499, %v498
      %v513 = vpack.c.bf16 %v501, %v500
      %v514 = vpack.c.bf16 %v503, %v502
      %v515 = vpack.c.bf16 %v505, %v504
      %v516 = vpack.c.bf16 %v507, %v506
      %v517 = vpack.c.bf16 %v509, %v508
      %v518 = vpack.c.bf16 %v511, %v510
      %v526 = vunpack.c.l.b16 %v512
      %v527 = vunpack.c.h.b16 %v512
      %v528 = vunpack.c.l.b16 %v513
      %v529 = vunpack.c.h.b16 %v513
      %v530 = vunpack.c.l.b16 %v514
      %v531 = vunpack.c.h.b16 %v514
      %v532 = vunpack.c.l.b16 %v515
      %v533 = vunpack.c.h.b16 %v515
      %v534 = vunpack.c.l.b16 %v516
      %v535 = vunpack.c.h.b16 %v516
      %v536 = vunpack.c.l.b16 %v517
      %v537 = vunpack.c.h.b16 %v517
      %v538 = vunpack.c.l.b16 %v518
      %v539 = vunpack.c.h.b16 %v518
      %v540 = vpack.c.b16 %v526, %v526
      %v541 = vpack.c.b16 %v527, %v527
      %v542 = vpack.c.b16 %v528, %v528
      %v543 = vpack.c.b16 %v529, %v529
      %v544 = vpack.c.b16 %v530, %v530
      %v545 = vpack.c.b16 %v531, %v531
      %v546 = vpack.c.b16 %v532, %v532
      %v547 = vpack.c.b16 %v533, %v533
      %v548 = vpack.c.b16 %v534, %v534
      %v549 = vpack.c.b16 %v535, %v535
      %v550 = vpack.c.b16 %v536, %v536
      %v551 = vpack.c.b16 %v537, %v537
      %v552 = vpack.c.b16 %v538, %v538
      %v553 = vpack.c.b16 %v539, %v539
      %568 = vst [vmem:[%s216] sm:$0xf] %v540
      %569 = vst [vmem:[%s216 + $0x4] sm:$0xf] %v541
      %570 = vst [vmem:[%s216 + $0x8] sm:$0xf] %v542
      %571 = vst [vmem:[%s216 + $0xc] sm:$0xf] %v543
      %572 = vst [vmem:[%s216 + $0x10] sm:$0xf] %v544
      %573 = vst [vmem:[%s216 + $0x14] sm:$0xf] %v545
      %574 = vst [vmem:[%s216 + $0x18] sm:$0xf] %v546
      %575 = vst [vmem:[%s216 + $0x1c] sm:$0xf] %v547
      %576 = vst [vmem:[%s216 + $0x20] sm:$0xf] %v548
      %577 = vst [vmem:[%s216 + $0x24] sm:$0xf] %v549
      %578 = vst [vmem:[%s216 + $0x28] sm:$0xf] %v550
      %579 = vst [vmem:[%s216 + $0x2c] sm:$0xf] %v551
      %580 = vst [vmem:[%s216 + $0x30] sm:$0xf] %v552
      %581 = vst [vmem:[%s216 + $0x34] sm:$0xf] %v553
      %s582 = smul.u32 14, %s19
      %p583 = scmp.lt.s32.totalorder %s582, 27
      %s584 = scalar_select %p583, %s582, 27
      %p585 = scmp.lt.s32.totalorder %s20, 0
      %s586 = scalar_select %p585, %s20, 0
      %s587 = sadd.s32 %s586, %s584
      %s588 = smul.addr %s587, 4
      %s589 = scalar_lea.vmem %s4, %s588
      // Predicated region
      $region67: #{resnet_block_forward.4} parent=31 // pred_check
        %p590 = pneg %p125
      $region68: #{resnet_block_forward.4} parent=31 // pred_check_branch
        %592 = sbr.rel (%p590) target = $region70
      $region69: #{resnet_block_forward.4} parent=31 // pred_region
        %s593 = smul.u32 14, %s19
      $region70: #{resnet_block_forward.4} parent=31 // pred_fallthru
        _
    $region32: #{resnet_block_forward.4} parent=5 // pred_fallthru
      _
    %p594 = scmp.le.s32.totalorder 2, %s10
    // Predicated region
    $region71: #{resnet_block_forward.4} parent=5 // pred_check
      %p595 = pneg %p594
    $region72: #{resnet_block_forward.4} parent=5 // pred_check_branch
      %597 = sbr.rel (%p595) target = $region74
    $region73: #{resnet_block_forward.4} parent=5 // pred_region
      %s598 = ssub.s32 %s10, 2
      // Predicated region
      $region75: #{resnet_block_forward.4} parent=73 // pred_check
        %p599 = pneg %p131
      $region76: #{resnet_block_forward.4} parent=73 // pred_check_branch
        %601 = sbr.rel (%p599) target = $region78
      $region77: #{resnet_block_forward.4} parent=73 // pred_region
        %s602 = smul.u32 14, %s21
        %p603 = scmp.lt.s32.totalorder %s602, 27
        %s604 = scalar_select %p603, %s602, 27
        %p605 = scmp.lt.s32.totalorder %s22, 0
        %s606 = scalar_select %p605, %s22, 0
        %s607 = sadd.s32 %s606, %s604
        %s608 = smul.addr %s607, 4
        %s609 = scalar_lea.vmem %s4, %s608
      $region78: #{resnet_block_forward.4} parent=73 // pred_fallthru
        _
    $region74: #{resnet_block_forward.4} parent=5 // pred_fallthru
      _
  $region6: #{resnet_block_forward.4} parent=0 // loop_footer
    %s14 = sadd.s32 1, %s10
  $region7: #{resnet_block_forward.4} parent=0 // loop_footer_branch
    %9 = sbr.rel target = $region3
  $region8: #{resnet_block_forward.4} parent=0 // loop_exit
    _
  %610 = vsyncmov [#allocation4]
  %s611 = vpop.sfrf %610
  %p612 = scmp.eq.s32.totalorder %s611, 0
  %p613 = pneg %p612
  %615 = shalt.err (%p613)

// kernel: resnet_block_forward.5
$region0: #{resnet_block_forward.5}
  #allocation0 [shape = 'u32[]', space=smem, size = 0x4, offset = 0x4, fixed_abs, tag = 'smem constant byte address 0x4 - core index']
  #allocation1 [shape = 'u32[144,128]{1,0:T(1,128)}', space=vmem, size = 0x12000, scoped, tag = 'internal scratch']
  #allocation2 [shape = 'bf16[144,128]{1,0:T(16,128)(2,1)}', space=vmem, size = 0x9000, scoped, tag = 'scratch operand']
  #allocation3 [shape = 'f32[112,128]{1,0:T(8,128)}', space=vmem, size = 0xe000, scoped, tag = 'scratch operand']
  #allocation4 [shape = 's32[1]{0}', space=sflag, size = 0x4, scoped, tag = 'scratch operand']
  #allocation5 [shape = 's32[]', space=sflag, size = 0x4, offset = 0, fixed_abs, tag = 'sflag constant byte address 0x0 - dummy sync flag']
  %s0 = inlined_call_operand.vmem [shape: bf16[256,128], index: 0, kind: input, shape index: {}]
  %s1 = inlined_call_operand.vmem [shape: bf16[9,128,128], index: 1, kind: input, shape index: {}]
  %s2 = inlined_call_operand.vmem [shape: f32[1,128], index: 2, kind: input, shape index: {}]
  %s3 = inlined_call_operand.vmem [shape: f32[1,128], index: 3, kind: input, shape index: {}]
  %s4 = inlined_call_operand.vmem [shape: bf16[224,128], index: 4, kind: input, shape index: {}]
  %s5 = inlined_call_operand.vmem [shape: f32[224,128], index: 5, kind: output, shape index: {}]
  %s6 = sld [smem:[#allocation0]]
  $region83: #{resnet_block_forward.5} parent=0
    _
  %s8 = ssub.s32 1, %s6
  %s9 = scalar_select 0, %s8, %s6
  loop: start=0, step=1, limit=4
  $region2: #{resnet_block_forward.5} parent=0 // loop_pre_header
    _
  $region3: #{resnet_block_forward.5} parent=0 // loop_header
    %s11 = sphi 0, %s15
    %p12 = scmp.ge.s32.totalorder %s11, 4
    %s18 = sphi 0, %s30
    %s19 = sphi 0, %s26
    %s20 = sphi 0, %s18
    %s21 = sphi 0, %s19
    %s22 = sphi 0, %s20
    %s23 = sphi 0, %s21
    %s33 = sphi 0, %s35
    %s36 = sphi 0, %s33
    %s37 = sphi 0, %s36
    %s53 = sphi 0, %s37
    %s59 = sphi 0, %s61
    %s62 = sphi 0, %s59
    %s63 = sphi 0, %s62
    %s79 = sphi 0, %s63
    %s85 = sphi 0, %s87
    %s88 = sphi 0, %s85
    %s89 = sphi 0, %s88
    %s105 = sphi 0, %s89
    %s113 = sphi 0, %s115
    %s116 = sphi 0, %s113
    %s117 = sphi 0, %s116
    %s133 = sphi 0, %s117
    %s141 = sphi 0, %s143
    %s144 = sphi 0, %s141
    %s145 = sphi 0, %s144
    %s161 = sphi 0, %s145
  $region4: #{resnet_block_forward.5} parent=0 // loop_header_branch
    %14 = sbr.rel (%p12) target = $region8
  $region5: #{resnet_block_forward.5} parent=0 // loop_body
    %s16 = ssub.s32 %s11, 1
    %s17 = ssub.s32 %s11, 2
    %s24 = sadd.s32 1, %s19
    %p25 = scmp.ge.s32.totalorder %s24, 1
    %s26 = scalar_select %p25, 0, %s24
    %s27 = sadd.s32 1, %s18
    %s28 = scalar_select %p25, %s27, %s18
    %p29 = scmp.ge.s32.totalorder %s28, 2
    %s30 = scalar_select %p29, 0, %s28
    %s31 = ssub.s32 %s19, %s26
    %p32 = scmp.eq.s32.totalorder %s31, 0
    %s34 = sadd.s32 %s33, 1
    %s35 = scalar_select %p32, %s33, %s34
    %p38 = pneg %p32
    %p39 = scmp.eq.s32.totalorder %s11, 1
    %p40 = por %p38, %p39
    %p41 = scmp.ne.s32.totalorder %s33, %s36
    %p42 = scmp.eq.s32.totalorder %s11, 0
    %p43 = por %p41, %p42
    %p44 = scmp.ne.s32.totalorder %s33, %s36
    %p45 = scmp.eq.s32.totalorder %s16, 1
    %p46 = por %p44, %p45
    %p47 = scmp.ne.s32.totalorder %s36, %s37
    %p48 = scmp.eq.s32.totalorder %s16, 0
    %p49 = por %p47, %p48
    %p50 = scmp.ne.s32.totalorder %s36, %s37
    %p51 = scmp.eq.s32.totalorder %s17, 1
    %p52 = por %p50, %p51
    %p54 = scmp.ne.s32.totalorder %s37, %s53
    %p55 = scmp.eq.s32.totalorder %s17, 0
    %p56 = por %p54, %p55
    %s57 = ssub.s32 %s19, %s26
    %p58 = scmp.eq.s32.totalorder %s57, 0
    %s60 = sadd.s32 %s59, 1
    %s61 = scalar_select %p58, %s59, %s60
    %p64 = pneg %p58
    %p65 = scmp.eq.s32.totalorder %s11, 1
    %p66 = por %p64, %p65
    %p67 = scmp.ne.s32.totalorder %s59, %s62
    %p68 = scmp.eq.s32.totalorder %s11, 0
    %p69 = por %p67, %p68
    %p70 = scmp.ne.s32.totalorder %s59, %s62
    %p71 = scmp.eq.s32.totalorder %s16, 1
    %p72 = por %p70, %p71
    %p73 = scmp.ne.s32.totalorder %s62, %s63
    %p74 = scmp.eq.s32.totalorder %s16, 0
    %p75 = por %p73, %p74
    %p76 = scmp.ne.s32.totalorder %s62, %s63
    %p77 = scmp.eq.s32.totalorder %s17, 1
    %p78 = por %p76, %p77
    %p80 = scmp.ne.s32.totalorder %s63, %s79
    %p81 = scmp.eq.s32.totalorder %s17, 0
    %p82 = por %p80, %p81
    %s83 = ssub.s32 %s19, %s26
    %p84 = scmp.eq.s32.totalorder %s83, 0
    %s86 = sadd.s32 %s85, 1
    %s87 = scalar_select %p84, %s85, %s86
    %p90 = pneg %p84
    %p91 = scmp.eq.s32.totalorder %s11, 1
    %p92 = por %p90, %p91
    %p93 = scmp.ne.s32.totalorder %s85, %s88
    %p94 = scmp.eq.s32.totalorder %s11, 0
    %p95 = por %p93, %p94
    %p96 = scmp.ne.s32.totalorder %s85, %s88
    %p97 = scmp.eq.s32.totalorder %s16, 1
    %p98 = por %p96, %p97
    %p99 = scmp.ne.s32.totalorder %s88, %s89
    %p100 = scmp.eq.s32.totalorder %s16, 0
    %p101 = por %p99, %p100
    %p102 = scmp.ne.s32.totalorder %s88, %s89
    %p103 = scmp.eq.s32.totalorder %s17, 1
    %p104 = por %p102, %p103
    %p106 = scmp.ne.s32.totalorder %s89, %s105
    %p107 = scmp.eq.s32.totalorder %s17, 0
    %p108 = por %p106, %p107
    %s109 = ssub.s32 %s18, %s30
    %s110 = ssub.s32 %s19, %s26
    %s111 = sor.u32 %s109, %s110
    %p112 = scmp.eq.s32.totalorder %s111, 0
    %s114 = sadd.s32 %s113, 1
    %s115 = scalar_select %p112, %s113, %s114
    %p118 = pneg %p112
    %p119 = scmp.eq.s32.totalorder %s11, 1
    %p120 = por %p118, %p119
    %p121 = scmp.ne.s32.totalorder %s113, %s116
    %p122 = scmp.eq.s32.totalorder %s11, 0
    %p123 = por %p121, %p122
    %p124 = scmp.ne.s32.totalorder %s113, %s116
    %p125 = scmp.eq.s32.totalorder %s16, 1
    %p126 = por %p124, %p125
    %p127 = scmp.ne.s32.totalorder %s116, %s117
    %p128 = scmp.eq.s32.totalorder %s16, 0
    %p129 = por %p127, %p128
    %p130 = scmp.ne.s32.totalorder %s116, %s117
    %p131 = scmp.eq.s32.totalorder %s17, 1
    %p132 = por %p130, %p131
    %p134 = scmp.ne.s32.totalorder %s117, %s133
    %p135 = scmp.eq.s32.totalorder %s17, 0
    %p136 = por %p134, %p135
    %s137 = ssub.s32 %s18, %s30
    %s138 = ssub.s32 %s19, %s26
    %s139 = sor.u32 %s137, %s138
    %p140 = scmp.eq.s32.totalorder %s139, 0
    %s142 = sadd.s32 %s141, 1
    %s143 = scalar_select %p140, %s141, %s142
    %p146 = pneg %p140
    %p147 = scmp.eq.s32.totalorder %s11, 1
    %p148 = por %p146, %p147
    %p149 = scmp.ne.s32.totalorder %s141, %s144
    %p150 = scmp.eq.s32.totalorder %s11, 0
    %p151 = por %p149, %p150
    %p152 = scmp.ne.s32.totalorder %s141, %s144
    %p153 = scmp.eq.s32.totalorder %s16, 1
    %p154 = por %p152, %p153
    %p155 = scmp.ne.s32.totalorder %s144, %s145
    %p156 = scmp.eq.s32.totalorder %s16, 0
    %p157 = por %p155, %p156
    %p158 = scmp.ne.s32.totalorder %s144, %s145
    %p159 = scmp.eq.s32.totalorder %s17, 1
    %p160 = por %p158, %p159
    %p162 = scmp.ne.s32.totalorder %s145, %s161
    %p163 = scmp.eq.s32.totalorder %s17, 0
    %p164 = por %p162, %p163
    %p165 = scmp.le.s32.totalorder 1, %s11
    %p166 = scmp.lt.s32.totalorder %s11, 3
    %p167 = pnand %p165, %p166
    %p168 = pneg %p167
    // Predicated region
    $region9: #{resnet_block_forward.5} parent=5 // pred_check
      _
    $region10: #{resnet_block_forward.5} parent=5 // pred_check_branch
      %170 = sbr.rel (%p167) target = $region12
    $region11: #{resnet_block_forward.5} parent=5 // pred_region
      %s171 = ssub.s32 %s11, 1
      // Predicated region
      $region13: #{resnet_block_forward.5} parent=11 // pred_check
        %p172 = pneg %p49
      $region14: #{resnet_block_forward.5} parent=11 // pred_check_branch
        %174 = sbr.rel (%p172) target = $region16
      $region15: #{resnet_block_forward.5} parent=11 // pred_region
        %p175 = scmp.lt.s32.totalorder %s21, 0
        %s176 = scalar_select %p175, %s21, 0
        %s177 = smul.addr %s176, 4
        %s178 = scalar_lea.vmem %s1, %s177
      $region16: #{resnet_block_forward.5} parent=11 // pred_fallthru
        _
      // Predicated region
      $region17: #{resnet_block_forward.5} parent=11 // pred_check
        %p179 = pneg %p75
      $region18: #{resnet_block_forward.5} parent=11 // pred_check_branch
        %181 = sbr.rel (%p179) target = $region20
      $region19: #{resnet_block_forward.5} parent=11 // pred_region
        %p182 = scmp.lt.s32.totalorder %s21, 0
        %s183 = scalar_select %p182, %s21, 0
        %s184 = scalar_lea.vmem %s2, %s183
      $region20: #{resnet_block_forward.5} parent=11 // pred_fallthru
        _
      // Predicated region
      $region21: #{resnet_block_forward.5} parent=11 // pred_check
        %p185 = pneg %p101
      $region22: #{resnet_block_forward.5} parent=11 // pred_check_branch
        %187 = sbr.rel (%p185) target = $region24
      $region23: #{resnet_block_forward.5} parent=11 // pred_region
        %p188 = scmp.lt.s32.totalorder %s21, 0
        %s189 = scalar_select %p188, %s21, 0
        %s190 = scalar_lea.vmem %s3, %s189
      $region24: #{resnet_block_forward.5} parent=11 // pred_fallthru
        _
    $region12: #{resnet_block_forward.5} parent=5 // pred_fallthru
      _
    %p191 = scmp.lt.s32.totalorder %s11, 2
    // Predicated region
    $region25: #{resnet_block_forward.5} parent=5 // pred_check
      %p192 = pneg %p191
    $region26: #{resnet_block_forward.5} parent=5 // pred_check_branch
      %194 = sbr.rel (%p192) target = $region28
    $region27: #{resnet_block_forward.5} parent=5 // pred_region
      // Predicated region
      $region29: #{resnet_block_forward.5} parent=27 // pred_check
        %p195 = pneg %p123
      $region30: #{resnet_block_forward.5} parent=27 // pred_check_branch
        %197 = sbr.rel (%p195) target = $region32
      $region31: #{resnet_block_forward.5} parent=27 // pred_region
        %s198 = smul.u32 14, %s18
        %p199 = scmp.lt.s32.totalorder %s198, 27
        %s200 = scalar_select %p199, %s198, 27
        %p201 = scmp.lt.s32.totalorder %s19, 0
        %s202 = scalar_select %p201, %s19, 0
        %s203 = sadd.s32 %s202, %s200
        %s204 = smul.addr %s203, 4
        %s205 = scalar_lea.vmem %s4, %s204
        %s206 = smul.u32 14, %s18
      $region32: #{resnet_block_forward.5} parent=27 // pred_fallthru
        _
    $region28: #{resnet_block_forward.5} parent=5 // pred_fallthru
      _
    %p207 = scmp.le.s32.totalorder 1, %s11
    %p208 = scmp.lt.s32.totalorder %s11, 3
    %p209 = pnand %p207, %p208
    %p210 = pneg %p209
    // Predicated region
    $region33: #{resnet_block_forward.5} parent=5 // pred_check
      _
    $region34: #{resnet_block_forward.5} parent=5 // pred_check_branch
      %212 = sbr.rel (%p209) target = $region36
    $region35: #{resnet_block_forward.5} parent=5 // pred_region
      %s213 = ssub.s32 %s11, 1
      %p214 = scmp.lt.s32.totalorder %s21, 0
      %s215 = scalar_select %p214, %s21, 0
      %s216 = smul.addr %s215, 4
      %s217 = scalar_lea.vmem %s1, %s216
      %p218 = pneg %p49
      %p219 = pneg %p46
      %p220 = scmp.lt.s32.totalorder %s21, 0
      %s221 = scalar_select %p220, %s21, 0
      %s222 = scalar_lea.vmem %s2, %s221
      %p223 = pneg %p75
      %p224 = pneg %p72
      %p225 = scmp.lt.s32.totalorder %s21, 0
      %s226 = scalar_select %p225, %s21, 0
      %s227 = scalar_lea.vmem %s3, %s226
      %p228 = pneg %p101
      %p229 = pneg %p98
      %s230 = smul.u32 14, %s20
      %p231 = scmp.lt.s32.totalorder %s230, 27
      %s232 = scalar_select %p231, %s230, 27
      %p233 = scmp.lt.s32.totalorder %s21, 0
      %s234 = scalar_select %p233, %s21, 0
      %s235 = sadd.s32 %s234, %s232
      %s236 = smul.addr %s235, 4
      %s237 = scalar_lea.vmem %s4, %s236
      %p238 = pneg %p129
      %p239 = pneg %p126
      %p240 = pneg %p157
      %p241 = pneg %p154
      %s242 = smul.u32 14, %s20
      %p243 = scmp.lt.s32.totalorder %s242, 27
      %s244 = scalar_select %p243, %s242, 27
      %p245 = scmp.lt.s32.totalorder %s21, 0
      %s246 = scalar_select %p245, %s21, 0
      %s247 = sadd.s32 %s246, %s244
      %s248 = smul.addr %s247, 8
      %s249 = scalar_lea.vmem %s5, %s248
      %p250 = scmp.lt.s32.totalorder %s21, 0
      %s251 = scalar_select %p250, %s21, 0
      %s252 = smul.addr %s251, 4
      %s253 = scalar_lea.vmem %s1, %s252
      %p254 = scmp.lt.s32.totalorder %s21, 0
      %s255 = scalar_select %p254, %s21, 0
      %s256 = scalar_lea.vmem %s2, %s255
      %p257 = scmp.lt.s32.totalorder %s21, 0
      %s258 = scalar_select %p257, %s21, 0
      %s259 = scalar_lea.vmem %s3, %s258
      %s260 = smul.u32 14, %s20
      %p261 = scmp.lt.s32.totalorder %s260, 27
      %s262 = scalar_select %p261, %s260, 27
      %p263 = scmp.lt.s32.totalorder %s21, 0
      %s264 = scalar_select %p263, %s21, 0
      %s265 = sadd.s32 %s264, %s262
      %s266 = smul.addr %s265, 4
      %s267 = scalar_lea.vmem %s4, %s266
      %s268 = smul.u32 14, %s20
      %s269 = smul.u32 14, %s20
      %p270 = scmp.lt.s32.totalorder %s269, 27
      %s271 = scalar_select %p270, %s269, 27
      %p272 = scmp.lt.s32.totalorder %s21, 0
      %s273 = scalar_select %p272, %s21, 0
      %s274 = sadd.s32 %s273, %s271
      %s275 = smul.addr %s274, 8
      %s276 = scalar_lea.vmem %s5, %s275
      %s277 = smul.u32 14, %s20
      %s279 = smul.u32 %s20, 112
      %s280 = sshra.s32 %s279, 3
      %s281 = sand.u32 %s279, 7
      %s282 = smul.addr %s280, 4
      %s283 = scalar_lea.vmem %s0, %s282
      %p285 = scmp.lt.u32.totalorder 72, 8
      %p286 = pneg %p285
      // Predicated region
      $region37: #{resnet_block_forward.5} parent=35 // pred_check
        _
      $region38: #{resnet_block_forward.5} parent=35 // pred_check_branch
        %288 = sbr.rel (%p285) target = $region40
      $region39: #{resnet_block_forward.5} parent=35 // pred_region
        %s303 = sand.u32 72, 7
        %p304 = scmp.eq.s32.totalorder %s303, 0
        // Predicated region
        $region52: #{resnet_block_forward.5} parent=39 // pred_check
          %p305 = pneg %p304
        $region53: #{resnet_block_forward.5} parent=39 // pred_check_branch
          %307 = sbr.rel (%p305) target = $region55
        $region54: #{resnet_block_forward.5} parent=39 // pred_region
          loop: start=0, step=1, limit=1
          $region56: #{resnet_block_forward.5} parent=54 // loop_pre_header
            _
          $region57: #{resnet_block_forward.5} parent=54 // loop_header
            %s309 = sphi 0, %s313
            %p310 = scmp.ge.s32.totalorder %s309, 1
            %s314 = sphi %s283, %s283
            %s315 = sphi [#allocation2], [#allocation2]
          $region58: #{resnet_block_forward.5} parent=54 // loop_header_branch
            %312 = sbr.rel (%p310) target = $region62
          $region59: #{resnet_block_forward.5} parent=54 // loop_body
            %v316 = vld [vmem:[%s314] sm:$0xff]
            %317 = vst [vmem:[%s315] sm:$0xff] %v316
            %v318 = vld [vmem:[%s314 + $0x8] sm:$0xff]
            %319 = vst [vmem:[%s315 + $0x8] sm:$0xff] %v318
            %v320 = vld [vmem:[%s314 + $0x10] sm:$0xff]
            %321 = vst [vmem:[%s315 + $0x10] sm:$0xff] %v320
            %v322 = vld [vmem:[%s314 + $0x18] sm:$0xff]
            %323 = vst [vmem:[%s315 + $0x18] sm:$0xff] %v322
            %v324 = vld [vmem:[%s314 + $0x20] sm:$0xff]
            %325 = vst [vmem:[%s315 + $0x20] sm:$0xff] %v324
            %v326 = vld [vmem:[%s314 + $0x28] sm:$0xff]
            %327 = vst [vmem:[%s315 + $0x28] sm:$0xff] %v326
            %v328 = vld [vmem:[%s314 + $0x30] sm:$0xff]
            %329 = vst [vmem:[%s315 + $0x30] sm:$0xff] %v328
            %v330 = vld [vmem:[%s314 + $0x38] sm:$0xff]
            %331 = vst [vmem:[%s315 + $0x38] sm:$0xff] %v330
            %v332 = vld [vmem:[%s314 + $0x40] sm:$0xff]
            %333 = vst [vmem:[%s315 + $0x40] sm:$0xff] %v332
          $region60: #{resnet_block_forward.5} parent=54 // loop_footer
            %s313 = sadd.s32 1, %s309
          $region61: #{resnet_block_forward.5} parent=54 // loop_footer_branch
            %308 = sbr.rel target = $region57
          $region62: #{resnet_block_forward.5} parent=54 // loop_exit
            _
        $region55: #{resnet_block_forward.5} parent=39 // pred_fallthru
          _
        %p334 = pneg %p304
        // Predicated region
        $region63: #{resnet_block_forward.5} parent=39 // pred_check
          _
        $region64: #{resnet_block_forward.5} parent=39 // pred_check_branch
          %336 = sbr.rel (%p304) target = $region66
        $region65: #{resnet_block_forward.5} parent=39 // pred_region
          %s337 = sand.u32 72, 7
        $region66: #{resnet_block_forward.5} parent=39 // pred_fallthru
          _
      $region40: #{resnet_block_forward.5} parent=35 // pred_fallthru
        _
      // Predicated region
      $region41: #{resnet_block_forward.5} parent=35 // pred_check
        %p289 = pneg %p285
      $region42: #{resnet_block_forward.5} parent=35 // pred_check_branch
        %291 = sbr.rel (%p289) target = $region44
      $region43: #{resnet_block_forward.5} parent=35 // pred_region
        %s292 = sshllo.u32 0, 72
        loop: start=0, step=1, limit=1
        $region45: #{resnet_block_forward.5} parent=43 // loop_pre_header
          _
        $region46: #{resnet_block_forward.5} parent=43 // loop_header
          %s294 = sphi 0, %s298
          %p295 = scmp.ge.s32.totalorder %s294, 1
          %s299 = sphi %s283, %s283
          %s300 = sphi [#allocation2], [#allocation2]
        $region47: #{resnet_block_forward.5} parent=43 // loop_header_branch
          %297 = sbr.rel (%p295) target = $region51
        $region48: #{resnet_block_forward.5} parent=43 // loop_body
          %v301 = vld [vmem:[%s299] sm:%s292]
          %302 = vst [vmem:[%s300] sm:%s292] %v301
        $region49: #{resnet_block_forward.5} parent=43 // loop_footer
          %s298 = sadd.s32 1, %s294
        $region50: #{resnet_block_forward.5} parent=43 // loop_footer_branch
          %293 = sbr.rel target = $region46
        $region51: #{resnet_block_forward.5} parent=43 // loop_exit
          _
      $region44: #{resnet_block_forward.5} parent=35 // pred_fallthru
        _
      // Predicated region
      $region67: #{resnet_block_forward.5} parent=35 // pred_check
        _
      $region68: #{resnet_block_forward.5} parent=35 // pred_check_branch
        %340 = sbr.rel (0) target = $region70
      $region69: #{resnet_block_forward.5} parent=35 // pred_region
        %341 = vsyncadd [#allocation4], 1152
      $region70: #{resnet_block_forward.5} parent=35 // pred_fallthru
        _
      %s342 = smul.u32 4, 18
      %s343 = smul.u32 %s342, 1
      %s344 = sshll.u32 %s343, 4
      %345 = dma.done [#allocation4], %s344
      %v346 = vld [vmem:[#allocation2] sm:$0xff]
      %v347 = vld [vmem:[#allocation2 + $0x8] sm:$0xff]
      %v348 = vld [vmem:[#allocation2 + $0x10] sm:$0xff]
      %v349 = vld [vmem:[#allocation2 + $0x18] sm:$0xff]
      %v350 = vld [vmem:[#allocation2 + $0x20] sm:$0xff]
      %v351 = vld [vmem:[#allocation2 + $0x28] sm:$0xff]
      %v352 = vld [vmem:[#allocation2 + $0x30] sm:$0xff]
      %v353 = vld [vmem:[%s253] sm:$0xf]
      %v354 = vld [vmem:[%s253 + $0x4] sm:$0xf]
      %v355 = vld [vmem:[%s253 + $0x8] sm:$0xf]
      %v356 = vld [vmem:[%s253 + $0xc] sm:$0xf]
      %v357 = vld [vmem:[%s253 + $0x10] sm:$0xf]
      %v358 = vld [vmem:[%s253 + $0x14] sm:$0xf]
      %v359 = vld [vmem:[%s253 + $0x18] sm:$0xf]
      %v360 = vld [vmem:[%s253 + $0x1c] sm:$0xf]
      %v361 = vld [vmem:[%s253 + $0x20] sm:$0xf]
      %v362 = vld [vmem:[%s253 + $0x24] sm:$0xf]
      %v363 = vld [vmem:[%s253 + $0x28] sm:$0xf]
      %v364 = vld [vmem:[%s253 + $0x2c] sm:$0xf]
      %v365 = vld [vmem:[%s253 + $0x30] sm:$0xf]
      %v366 = vld [vmem:[%s253 + $0x34] sm:$0xf]
      %v367 = vld [vmem:[%s253 + $0x38] sm:$0xf]
      %v368 = vld [vmem:[%s253 + $0x3c] sm:$0xf]
      %v385 = vunpack.c.l.b16 %v353
      %v386 = vunpack.c.l.b16 %v354
      %v387 = vunpack.c.l.b16 %v355
      %v388 = vunpack.c.l.b16 %v356
      %v389 = vunpack.c.l.b16 %v357
      %v390 = vunpack.c.l.b16 %v358
      %v391 = vunpack.c.l.b16 %v359
      %v392 = vunpack.c.l.b16 %v360
      %v393 = vunpack.c.l.b16 %v361
      %v394 = vunpack.c.l.b16 %v362
      %v395 = vunpack.c.l.b16 %v363
      %v396 = vunpack.c.l.b16 %v364
      %v397 = vunpack.c.l.b16 %v365
      %v398 = vunpack.c.l.b16 %v366
      %v399 = vunpack.c.l.b16 %v367
      %v400 = vunpack.c.l.b16 %v368
      %v401 = vpack.c.b16 %v386, %v385
      %v402 = vpack.c.b16 %v388, %v387
      %v403 = vpack.c.b16 %v390, %v389
      %v404 = vpack.c.b16 %v392, %v391
      %v405 = vpack.c.b16 %v394, %v393
      %v406 = vpack.c.b16 %v396, %v395
      %v407 = vpack.c.b16 %v398, %v397
      %v408 = vpack.c.b16 %v400, %v399
      %417 = vmatprep.subr.bf16.mxu0 0
      %418 = vmatpush1.bf16.msra.mxu0 %v401
      %419 = vmatprep.subr.bf16.mxu0 0
      %420 = vmatpush1.bf16.msra.mxu0 %v402
      %421 = vmatprep.subr.bf16.mxu0 0
      %422 = vmatpush1.bf16.msra.mxu0 %v403
      %423 = vmatprep.subr.bf16.mxu0 0
      %424 = vmatpush1.bf16.msra.mxu0 %v404
      %425 = vmatprep.subr.bf16.mxu0 0
      %426 = vmatpush1.bf16.msra.mxu0 %v405
      %427 = vmatprep.subr.bf16.mxu0 0
      %428 = vmatpush1.bf16.msra.mxu0 %v406
      %429 = vmatprep.subr.bf16.mxu0 0
      %430 = vmatpush1.bf16.msra.mxu0 %v407
      %431 = vmatprep.subr.bf16.mxu0 0
      %432 = vmatpush1.bf16.msra.mxu0 %v408
      %433 = vmatprep.subr.bf16.mxu0 0
      %434 = vmatpush1.bf16.msra.mxu0 0
      %435 = vmatprep.subr.bf16.mxu0 0
      %436 = vmatpush1.bf16.msra.mxu0 0
      %437 = vmatprep.subr.bf16.mxu0 0
      %438 = vmatpush1.bf16.msra.mxu0 0
      %439 = vmatprep.subr.bf16.mxu0 0
      %440 = vmatpush1.bf16.msra.mxu0 0
      %441 = vmatprep.subr.bf16.mxu0 0
      %442 = vmatpush1.bf16.msra.mxu0 0
      %443 = vmatprep.subr.bf16.mxu0 0
      %444 = vmatpush1.bf16.msra.mxu0 0
      %445 = vmatprep.subr.bf16.mxu0 0
      %446 = vmatpush1.bf16.msra.mxu0 0
      %447 = vmatprep.subr.bf16.mxu0 0
      %448 = vmatpush1.bf16.msra.mxu0 0
      %449 = vmatprep.mubr.bf16.mxu0 0
      %450 = vmatmul.mubr.bf16.gmra.mrb[0].mxu0 %v346
      %v451 = vpop.f32.mrb[0].mxu0
      %v452 = vadd.f32 0.0, %v451
      %v453 = vpop.f32.mrb[0].mxu0
      %v454 = vpop.f32.mrb[0].mxu0
      %v455 = vadd.f32 0.0, %v454
      %v456 = vpop.f32.mrb[0].mxu0
      %457 = vmatprep.mubr.bf16.mxu0 0
      %458 = vmatmul.mubr.bf16.gmra.mrb[0].mxu0 %v347
      %v459 = vpop.f32.mrb[0].mxu0
      %v460 = vadd.f32 0.0, %v459
      %v461 = vpop.f32.mrb[0].mxu0
      %v462 = vpop.f32.mrb[0].mxu0
      %v463 = vadd.f32 0.0, %v462
      %v464 = vpop.f32.mrb[0].mxu0
      %465 = vmatprep.mubr.bf16.mxu0 0
      %466 = vmatmul.mubr.bf16.gmra.mrb[0].mxu0 %v348
      %v467 = vpop.f32.mrb[0].mxu0
      %v468 = vadd.f32 0.0, %v467
      %v469 = vpop.f32.mrb[0].mxu0
      %v470 = vpop.f32.mrb[0].mxu0
      %v471 = vadd.f32 0.0, %v470
      %v472 = vpop.f32.mrb[0].mxu0
      %473 = vmatprep.mubr.bf16.mxu0 0
      %474 = vmatmul.mubr.bf16.gmra.mrb[0].mxu0 %v349
      %v475 = vpop.f32.mrb[0].mxu0
      %v476 = vadd.f32 0.0, %v475
      %v477 = vpop.f32.mrb[0].mxu0
      %v478 = vpop.f32.mrb[0].mxu0
      %v479 = vadd.f32 0.0, %v478
      %v480 = vpop.f32.mrb[0].mxu0
      %481 = vmatprep.mubr.bf16.mxu0 0
      %482 = vmatmul.mubr.bf16.gmra.mrb[0].mxu0 %v350
      %v483 = vpop.f32.mrb[0].mxu0
      %v484 = vadd.f32 0.0, %v483
      %v485 = vpop.f32.mrb[0].mxu0
      %v486 = vpop.f32.mrb[0].mxu0
      %v487 = vadd.f32 0.0, %v486
      %v488 = vpop.f32.mrb[0].mxu0
      %489 = vmatprep.mubr.bf16.mxu0 0
      %490 = vmatmul.mubr.bf16.gmra.mrb[0].mxu0 %v351
      %v491 = vpop.f32.mrb[0].mxu0
      %v492 = vadd.f32 0.0, %v491
      %v493 = vpop.f32.mrb[0].mxu0
      %v494 = vpop.f32.mrb[0].mxu0
      %v495 = vadd.f32 0.0, %v494
      %v496 = vpop.f32.mrb[0].mxu0
      %497 = vmatprep.mubr.bf16.mxu0 0
      %498 = vmatmul.mubr.bf16.gmra.mrb[0].mxu0 %v352
      %v499 = vpop.f32.mrb[0].mxu0
      %v500 = vadd.f32 0.0, %v499
      %v501 = vpop.f32.mrb[0].mxu0
      %v502 = vpop.f32.mrb[0].mxu0
      %v503 = vadd.f32 0.0, %v502
      %v504 = vpop.f32.mrb[0].mxu0
      %505 = vdwg.mxu0
      %506 = vst [vmem:[#allocation3] sm:$0xff] %v452
      %507 = vst [vmem:[#allocation3 + $0x8] sm:$0xff] %v455
      %508 = vst [vmem:[#allocation3 + $0x10] sm:$0xff] %v460
      %509 = vst [vmem:[#allocation3 + $0x18] sm:$0xff] %v463
      %510 = vst [vmem:[#allocation3 + $0x20] sm:$0xff] %v468
      %511 = vst [vmem:[#allocation3 + $0x28] sm:$0xff] %v471
      %512 = vst [vmem:[#allocation3 + $0x30] sm:$0xff] %v476
      %513 = vst [vmem:[#allocation3 + $0x38] sm:$0xff] %v479
      %514 = vst [vmem:[#allocation3 + $0x40] sm:$0xff] %v484
      %515 = vst [vmem:[#allocation3 + $0x48] sm:$0xff] %v487
      %516 = vst [vmem:[#allocation3 + $0x50] sm:$0xff] %v492
      %517 = vst [vmem:[#allocation3 + $0x58] sm:$0xff] %v495
      %518 = vst [vmem:[#allocation3 + $0x60] sm:$0xff] %v500
      %519 = vst [vmem:[#allocation3 + $0x68] sm:$0xff] %v503
      %v520 = vld [vmem:[#allocation2] sm:$0xff]
      %v521 = vld [vmem:[#allocation2 + $0x8] sm:$0xff]
      %v522 = vld [vmem:[#allocation2 + $0x10] sm:$0xff]
      %v523 = vld [vmem:[#allocation2 + $0x18] sm:$0xff]
      %v524 = vld [vmem:[#allocation2 + $0x20] sm:$0xff]
      %v525 = vld [vmem:[#allocation2 + $0x28] sm:$0xff]
      %v526 = vld [vmem:[#allocation2 + $0x30] sm:$0xff]
      %v527 = vld [vmem:[#allocation2 + $0x38] sm:$0x1]
      %s528 = scalar_lea.vmem %s253, 64
      %v529 = vld [vmem:[%s528] sm:$0xf]
      %v530 = vld [vmem:[%s528 + $0x4] sm:$0xf]
      %v531 = vld [vmem:[%s528 + $0x8] sm:$0xf]
      %v532 = vld [vmem:[%s528 + $0xc] sm:$0xf]
      %v533 = vld [vmem:[%s528 + $0x10] sm:$0xf]
      %v534 = vld [vmem:[%s528 + $0x14] sm:$0xf]
      %v535 = vld [vmem:[%s528 + $0x18] sm:$0xf]
      %v536 = vld [vmem:[%s528 + $0x1c] sm:$0xf]
      %v537 = vld [vmem:[%s528 + $0x20] sm:$0xf]
      %v538 = vld [vmem:[%s528 + $0x24] sm:$0xf]
      %v539 = vld [vmem:[%s528 + $0x28] sm:$0xf]
      %v540 = vld [vmem:[%s528 + $0x2c] sm:$0xf]
      %v541 = vld [vmem:[%s528 + $0x30] sm:$0xf]
      %v542 = vld [vmem:[%s528 + $0x34] sm:$0xf]
      %v543 = vld [vmem:[%s528 + $0x38] sm:$0xf]
      %v544 = vld [vmem:[%s528 + $0x3c] sm:$0xf]
      %vm545 = vsmask.f32 7424
      %v547 = vshrl.u32 %v520, 16
      %v549 = vshll.u32 %v520, 16
      %v551 = vrot.slane %v549, 1
      %v552 = vor.u32 %v547, %v551
      %v554 = vshll.u32 %v521, 16
      %v556 = vrot.slane %v554, 1
      %v557 = vsel %vm545, %v552, %v556
      %v558 = vshrl.u32 %v521, 16
      %v560 = vor.u32 %v558, %v556
      %v562 = vshll.u32 %v522, 16
      %v564 = vrot.slane %v562, 1
      %v565 = vsel %vm545, %v560, %v564
      %v566 = vshrl.u32 %v522, 16
      %v568 = vor.u32 %v566, %v564
      %v570 = vshll.u32 %v523, 16
      %v572 = vrot.slane %v570, 1
      %v573 = vsel %vm545, %v568, %v572
      %v574 = vshrl.u32 %v523, 16
      %v576 = vor.u32 %v574, %v572
      %v578 = vshll.u32 %v524, 16
      %v580 = vrot.slane %v578, 1
      %v581 = vsel %vm545, %v576, %v580
      %v582 = vshrl.u32 %v524, 16
      %v584 = vor.u32 %v582, %v580
      %v586 = vshll.u32 %v525, 16
      %v588 = vrot.slane %v586, 1
      %v589 = vsel %vm545, %v584, %v588
      %v590 = vshrl.u32 %v525, 16
      %v592 = vor.u32 %v590, %v588
      %v594 = vshll.u32 %v526, 16
      %v596 = vrot.slane %v594, 1
      %v597 = vsel %vm545, %v592, %v596
      %v598 = vshrl.u32 %v526, 16
      %v600 = vor.u32 %v598, %v596
      %v602 = vshll.u32 %v527, 16
      %v604 = vrot.slane %v602, 1
      %v605 = vsel %vm545, %v600, %v604
      %v629 = vunpack.c.l.b16 %v529
      %v630 = vunpack.c.l.b16 %v530
      %v631 = vunpack.c.l.b16 %v531
      %v632 = vunpack.c.l.b16 %v532
      %v633 = vunpack.c.l.b16 %v533
      %v634 = vunpack.c.l.b16 %v534
      %v635 = vunpack.c.l.b16 %v535
      %v636 = vunpack.c.l.b16 %v536
      %v637 = vunpack.c.l.b16 %v537
      %v638 = vunpack.c.l.b16 %v538
      %v639 = vunpack.c.l.b16 %v539
      %v640 = vunpack.c.l.b16 %v540
      %v641 = vunpack.c.l.b16 %v541
      %v642 = vunpack.c.l.b16 %v542
      %v643 = vunpack.c.l.b16 %v543
      %v644 = vunpack.c.l.b16 %v544
      %v645 = vpack.c.b16 %v630, %v629
      %v646 = vpack.c.b16 %v632, %v631
      %v647 = vpack.c.b16 %v634, %v633
      %v648 = vpack.c.b16 %v636, %v635
      %v649 = vpack.c.b16 %v638, %v637
      %v650 = vpack.c.b16 %v640, %v639
      %v651 = vpack.c.b16 %v642, %v641
      %v652 = vpack.c.b16 %v644, %v643
      %661 = vmatprep.subr.bf16.mxu0 0
      %662 = vmatpush1.bf16.msra.mxu0 %v645
      %663 = vmatprep.subr.bf16.mxu0 0
      %664 = vmatpush1.bf16.msra.mxu0 %v646
      %665 = vmatprep.subr.bf16.mxu0 0
      %666 = vmatpush1.bf16.msra.mxu0 %v647
      %667 = vmatprep.subr.bf16.mxu0 0
      %668 = vmatpush1.bf16.msra.mxu0 %v648
      %669 = vmatprep.subr.bf16.mxu0 0
      %670 = vmatpush1.bf16.msra.mxu0 %v649
      %671 = vmatprep.subr.bf16.mxu0 0
      %672 = vmatpush1.bf16.msra.mxu0 %v650
      %673 = vmatprep.subr.bf16.mxu0 0
      %674 = vmatpush1.bf16.msra.mxu0 %v651
      %675 = vmatprep.subr.bf16.mxu0 0
      %676 = vmatpush1.bf16.msra.mxu0 %v652
      %677 = vmatprep.subr.bf16.mxu0 0
      %678 = vmatpush1.bf16.msra.mxu0 0
      %679 = vmatprep.subr.bf16.mxu0 0
      %680 = vmatpush1.bf16.msra.mxu0 0
      %681 = vmatprep.subr.bf16.mxu0 0
      %682 = vmatpush1.bf16.msra.mxu0 0
      %683 = vmatprep.subr.bf16.mxu0 0
      %684 = vmatpush1.bf16.msra.mxu0 0
      %685 = vmatprep.subr.bf16.mxu0 0
      %686 = vmatpush1.bf16.msra.mxu0 0
      %687 = vmatprep.subr.bf16.mxu0 0
      %688 = vmatpush1.bf16.msra.mxu0 0
      %689 = vmatprep.subr.bf16.mxu0 0
      %690 = vmatpush1.bf16.msra.mxu0 0
      %691 = vmatprep.subr.bf16.mxu0 0
      %692 = vmatpush1.bf16.msra.mxu0 0
      %693 = vmatprep.mubr.bf16.mxu0 0
      %694 = vmatmul.mubr.bf16.gmra.mrb[0].mxu0 %v557
      %v695 = vpop.f32.mrb[0].mxu0
      %v696 = vadd.f32 0.0, %v695
      %v697 = vpop.f32.mrb[0].mxu0
      %v698 = vpop.f32.mrb[0].mxu0
      %v699 = vadd.f32 0.0, %v698
      %v700 = vpop.f32.mrb[0].mxu0
      %701 = vmatprep.mubr.bf16.mxu0 0
      %702 = vmatmul.mubr.bf16.gmra.mrb[0].mxu0 %v565
      %v703 = vpop.f32.mrb[0].mxu0
      %v704 = vadd.f32 0.0, %v703
      %v705 = vpop.f32.mrb[0].mxu0
      %v706 = vpop.f32.mrb[0].mxu0
      %v707 = vadd.f32 0.0, %v706
      %v708 = vpop.f32.mrb[0].mxu0
      %709 = vmatprep.mubr.bf16.mxu0 0
      %710 = vmatmul.mubr.bf16.gmra.mrb[0].mxu0 %v573
      %v711 = vpop.f32.mrb[0].mxu0
      %v712 = vadd.f32 0.0, %v711
      %v713 = vpop.f32.mrb[0].mxu0
      %v714 = vpop.f32.mrb[0].mxu0
      %v715 = vadd.f32 0.0, %v714
      %v716 = vpop.f32.mrb[0].mxu0
      %717 = vmatprep.mubr.bf16.mxu0 0
      %718 = vmatmul.mubr.bf16.gmra.mrb[0].mxu0 %v581
      %v719 = vpop.f32.mrb[0].mxu0
      %v720 = vadd.f32 0.0, %v719
      %v721 = vpop.f32.mrb[0].mxu0
      %v722 = vpop.f32.mrb[0].mxu0
      %v723 = vadd.f32 0.0, %v722
      %v724 = vpop.f32.mrb[0].mxu0
      %725 = vmatprep.mubr.bf16.mxu0 0
      %726 = vmatmul.mubr.bf16.gmra.mrb[0].mxu0 %v589
      %v727 = vpop.f32.mrb[0].mxu0
      %v728 = vadd.f32 0.0, %v727
      %v729 = vpop.f32.mrb[0].mxu0
      %v730 = vpop.f32.mrb[0].mxu0
      %v731 = vadd.f32 0.0, %v730
      %v732 = vpop.f32.mrb[0].mxu0
      %733 = vmatprep.mubr.bf16.mxu0 0
      %734 = vmatmul.mubr.bf16.gmra.mrb[0].mxu0 %v597
      %v735 = vpop.f32.mrb[0].mxu0
      %v736 = vadd.f32 0.0, %v735
      %v737 = vpop.f32.mrb[0].mxu0
      %v738 = vpop.f32.mrb[0].mxu0
      %v739 = vadd.f32 0.0, %v738
      %v740 = vpop.f32.mrb[0].mxu0
      %741 = vmatprep.mubr.bf16.mxu0 0
      %742 = vmatmul.mubr.bf16.gmra.mrb[0].mxu0 %v605
      %v743 = vpop.f32.mrb[0].mxu0
      %v744 = vadd.f32 0.0, %v743
      %v745 = vpop.f32.mrb[0].mxu0
      %v746 = vpop.f32.mrb[0].mxu0
      %v747 = vadd.f32 0.0, %v746
      %v748 = vpop.f32.mrb[0].mxu0
      %749 = vdwg.mxu0
      %v750 = vld [vmem:[#allocation3] sm:$0xff]
      %v751 = vld [vmem:[#allocation3 + $0x8] sm:$0xff]
      %v752 = vld [vmem:[#allocation3 + $0x10] sm:$0xff]
      %v753 = vld [vmem:[#allocation3 + $0x18] sm:$0xff]
      %v754 = vld [vmem:[#allocation3 + $0x20] sm:$0xff]
      %v755 = vld [vmem:[#allocation3 + $0x28] sm:$0xff]
      %v756 = vld [vmem:[#allocation3 + $0x30] sm:$0xff]
      %v757 = vld [vmem:[#allocation3 + $0x38] sm:$0xff]
      %v758 = vld [vmem:[#allocation3 + $0x40] sm:$0xff]
      %v759 = vld [vmem:[#allocation3 + $0x48] sm:$0xff]
      %v760 = vld [vmem:[#allocation3 + $0x50] sm:$0xff]
      %v761 = vld [vmem:[#allocation3 + $0x58] sm:$0xff]
      %v762 = vld [vmem:[#allocation3 + $0x60] sm:$0xff]
      %v763 = vld [vmem:[#allocation3 + $0x68] sm:$0xff]
      %v764 = vadd.f32 %v750, %v696
      %v765 = vadd.f32 %v751, %v699
      %v766 = vadd.f32 %v752, %v704
      %v767 = vadd.f32 %v753, %v707
      %v768 = vadd.f32 %v754, %v712
      %v769 = vadd.f32 %v755, %v715
      %v770 = vadd.f32 %v756, %v720
      %v771 = vadd.f32 %v757, %v723
      %v772 = vadd.f32 %v758, %v728
      %v773 = vadd.f32 %v759, %v731
      %v774 = vadd.f32 %v760, %v736
      %v775 = vadd.f32 %v761, %v739
      %v776 = vadd.f32 %v762, %v744
      %v777 = vadd.f32 %v763, %v747
      %778 = vst [vmem:[#allocation3] sm:$0xff] %v764
      %779 = vst [vmem:[#allocation3 + $0x8] sm:$0xff] %v765
      %780 = vst [vmem:[#allocation3 + $0x10] sm:$0xff] %v766
      %781 = vst [vmem:[#allocation3 + $0x18] sm:$0xff] %v767
      %782 = vst [vmem:[#allocation3 + $0x20] sm:$0xff] %v768
      %783 = vst [vmem:[#allocation3 + $0x28] sm:$0xff] %v769
      %784 = vst [vmem:[#allocation3 + $0x30] sm:$0xff] %v770
      %785 = vst [vmem:[#allocation3 + $0x38] sm:$0xff] %v771
      %786 = vst [vmem:[#allocation3 + $0x40] sm:$0xff] %v772
      %787 = vst [vmem:[#allocation3 + $0x48] sm:$0xff] %v773
      %788 = vst [vmem:[#allocation3 + $0x50] sm:$0xff] %v774
      %789 = vst [vmem:[#allocation3 + $0x58] sm:$0xff] %v775
      %790 = vst [vmem:[#allocation3 + $0x60] sm:$0xff] %v776
      %791 = vst [vmem:[#allocation3 + $0x68] sm:$0xff] %v777
      %v792 = vld [vmem:[#allocation2] sm:$0xfe]
      %v793 = vld [vmem:[#allocation2 + $0x8] sm:$0xff]
      %v794 = vld [vmem:[#allocation2 + $0x10] sm:$0xff]
      %v795 = vld [vmem:[#allocation2 + $0x18] sm:$0xff]
      %v796 = vld [vmem:[#allocation2 + $0x20] sm:$0xff]
      %v797 = vld [vmem:[#allocation2 + $0x28] sm:$0xff]
      %v798 = vld [vmem:[#allocation2 + $0x30] sm:$0xff]
      %v799 = vld [vmem:[#allocation2 + $0x38] sm:$0x1]
      %s800 = scalar_lea.vmem %s253, 128
      %v801 = vld [vmem:[%s800] sm:$0xf]
      %v802 = vld [vmem:[%s800 + $0x4] sm:$0xf]
      %v803 = vld [vmem:[%s800 + $0x8] sm:$0xf]
      %v804 = vld [vmem:[%s800 + $0xc] sm:$0xf]
      %v805 = vld [vmem:[%s800 + $0x10] sm:$0xf]
      %v806 = vld [vmem:[%s800 + $0x14] sm:$0xf]
      %v807 = vld [vmem:[%s800 + $0x18] sm:$0xf]
      %v808 = vld [vmem:[%s800 + $0x1c] sm:$0xf]
      %v809 = vld [vmem:[%s800 + $0x20] sm:$0xf]
      %v810 = vld [vmem:[%s800 + $0x24] sm:$0xf]
      %v811 = vld [vmem:[%s800 + $0x28] sm:$0xf]
      %v812 = vld [vmem:[%s800 + $0x2c] sm:$0xf]
      %v813 = vld [vmem:[%s800 + $0x30] sm:$0xf]
      %v814 = vld [vmem:[%s800 + $0x34] sm:$0xf]
      %v815 = vld [vmem:[%s800 + $0x38] sm:$0xf]
      %v816 = vld [vmem:[%s800 + $0x3c] sm:$0xf]
      %vm825 = vcmask 1046528
      %v826 = vrot.slane %v792, 1
      %v827 = vrot.slane %v793, 1
      %v828 = vsel %vm825, %v826, %v827
      %v829 = vrot.slane %v794, 1
      %v830 = vsel %vm825, %v827, %v829
      %v831 = vrot.slane %v795, 1
      %v832 = vsel %vm825, %v829, %v831
      %v833 = vrot.slane %v796, 1
      %v834 = vsel %vm825, %v831, %v833
      %v835 = vrot.slane %v797, 1
      %v836 = vsel %vm825, %v833, %v835
      %v837 = vrot.slane %v798, 1
      %v838 = vsel %vm825, %v835, %v837
      %v839 = vrot.slane %v799, 1
      %v840 = vsel %vm825, %v837, %v839
      %v864 = vunpack.c.l.b16 %v801
      %v865 = vunpack.c.l.b16 %v802
      %v866 = vunpack.c.l.b16 %v803
      %v867 = vunpack.c.l.b16 %v804
      %v868 = vunpack.c.l.b16 %v805
      %v869 = vunpack.c.l.b16 %v806
      %v870 = vunpack.c.l.b16 %v807
      %v871 = vunpack.c.l.b16 %v808
      %v872 = vunpack.c.l.b16 %v809
      %v873 = vunpack.c.l.b16 %v810
      %v874 = vunpack.c.l.b16 %v811
      %v875 = vunpack.c.l.b16 %v812
      %v876 = vunpack.c.l.b16 %v813
      %v877 = vunpack.c.l.b16 %v814
      %v878 = vunpack.c.l.b16 %v815
      %v879 = vunpack.c.l.b16 %v816
      %v880 = vpack.c.b16 %v865, %v864
      %v881 = vpack.c.b16 %v867, %v866
      %v882 = vpack.c.b16 %v869, %v868
      %v883 = vpack.c.b16 %v871, %v870
      %v884 = vpack.c.b16 %v873, %v872
      %v885 = vpack.c.b16 %v875, %v874
      %v886 = vpack.c.b16 %v877, %v876
      %v887 = vpack.c.b16 %v879, %v878
      %896 = vmatprep.subr.bf16.mxu0 0
      %897 = vmatpush1.bf16.msra.mxu0 %v880
      %898 = vmatprep.subr.bf16.mxu0 0
      %899 = vmatpush1.bf16.msra.mxu0 %v881
      %900 = vmatprep.subr.bf16.mxu0 0
      %901 = vmatpush1.bf16.msra.mxu0 %v882
      %902 = vmatprep.subr.bf16.mxu0 0
      %903 = vmatpush1.bf16.msra.mxu0 %v883
      %904 = vmatprep.subr.bf16.mxu0 0
      %905 = vmatpush1.bf16.msra.mxu0 %v884
      %906 = vmatprep.subr.bf16.mxu0 0
      %907 = vmatpush1.bf16.msra.mxu0 %v885
      %908 = vmatprep.subr.bf16.mxu0 0
      %909 = vmatpush1.bf16.msra.mxu0 %v886
      %910 = vmatprep.subr.bf16.mxu0 0
      %911 = vmatpush1.bf16.msra.mxu0 %v887
      %912 = vmatprep.subr.bf16.mxu0 0
      %913 = vmatpush1.bf16.msra.mxu0 0
      %914 = vmatprep.subr.bf16.mxu0 0
      %915 = vmatpush1.bf16.msra.mxu0 0
      %916 = vmatprep.subr.bf16.mxu0 0
      %917 = vmatpush1.bf16.msra.mxu0 0
      %918 = vmatprep.subr.bf16.mxu0 0
      %919 = vmatpush1.bf16.msra.mxu0 0
      %920 = vmatprep.subr.bf16.mxu0 0
      %921 = vmatpush1.bf16.msra.mxu0 0
      %922 = vmatprep.subr.bf16.mxu0 0
      %923 = vmatpush1.bf16.msra.mxu0 0
      %924 = vmatprep.subr.bf16.mxu0 0
      %925 = vmatpush1.bf16.msra.mxu0 0
      %926 = vmatprep.subr.bf16.mxu0 0
      %927 = vmatpush1.bf16.msra.mxu0 0
      %928 = vmatprep.mubr.bf16.mxu0 0
      %929 = vmatmul.mubr.bf16.gmra.mrb[0].mxu0 %v828
      %v930 = vpop.f32.mrb[0].mxu0
      %v931 = vadd.f32 0.0, %v930
      %v932 = vpop.f32.mrb[0].mxu0
      %v933 = vpop.f32.mrb[0].mxu0
      %v934 = vadd.f32 0.0, %v933
      %v935 = vpop.f32.mrb[0].mxu0
      %936 = vmatprep.mubr.bf16.mxu0 0
      %937 = vmatmul.mubr.bf16.gmra.mrb[0].mxu0 %v830
      %v938 = vpop.f32.mrb[0].mxu0
      %v939 = vadd.f32 0.0, %v938
      %v940 = vpop.f32.mrb[0].mxu0
      %v941 = vpop.f32.mrb[0].mxu0
      %v942 = vadd.f32 0.0, %v941
      %v943 = vpop.f32.mrb[0].mxu0
      %944 = vmatprep.mubr.bf16.mxu0 0
      %945 = vmatmul.mubr.bf16.gmra.mrb[0].mxu0 %v832
      %v946 = vpop.f32.mrb[0].mxu0
      %v947 = vadd.f32 0.0, %v946
      %v948 = vpop.f32.mrb[0].mxu0
      %v949 = vpop.f32.mrb[0].mxu0
      %v950 = vadd.f32 0.0, %v949
      %v951 = vpop.f32.mrb[0].mxu0
      %952 = vmatprep.mubr.bf16.mxu0 0
      %953 = vmatmul.mubr.bf16.gmra.mrb[0].mxu0 %v834
      %v954 = vpop.f32.mrb[0].mxu0
      %v955 = vadd.f32 0.0, %v954
      %v956 = vpop.f32.mrb[0].mxu0
      %v957 = vpop.f32.mrb[0].mxu0
      %v958 = vadd.f32 0.0, %v957
      %v959 = vpop.f32.mrb[0].mxu0
      %960 = vmatprep.mubr.bf16.mxu0 0
      %961 = vmatmul.mubr.bf16.gmra.mrb[0].mxu0 %v836
      %v962 = vpop.f32.mrb[0].mxu0
      %v963 = vadd.f32 0.0, %v962
      %v964 = vpop.f32.mrb[0].mxu0
      %v965 = vpop.f32.mrb[0].mxu0
      %v966 = vadd.f32 0.0, %v965
      %v967 = vpop.f32.mrb[0].mxu0
      %968 = vmatprep.mubr.bf16.mxu0 0
      %969 = vmatmul.mubr.bf16.gmra.mrb[0].mxu0 %v838
      %v970 = vpop.f32.mrb[0].mxu0
      %v971 = vadd.f32 0.0, %v970
      %v972 = vpop.f32.mrb[0].mxu0
      %v973 = vpop.f32.mrb[0].mxu0
      %v974 = vadd.f32 0.0, %v973
      %v975 = vpop.f32.mrb[0].mxu0
      %976 = vmatprep.mubr.bf16.mxu0 0
      %977 = vmatmul.mubr.bf16.gmra.mrb[0].mxu0 %v840
      %v978 = vpop.f32.mrb[0].mxu0
      %v979 = vadd.f32 0.0, %v978
      %v980 = vpop.f32.mrb[0].mxu0
      %v981 = vpop.f32.mrb[0].mxu0
      %v982 = vadd.f32 0.0, %v981
      %v983 = vpop.f32.mrb[0].mxu0
      %984 = vdwg.mxu0
      %v985 = vld [vmem:[#allocation3] sm:$0xff]
      %v986 = vld [vmem:[#allocation3 + $0x8] sm:$0xff]
      %v987 = vld [vmem:[#allocation3 + $0x10] sm:$0xff]
      %v988 = vld [vmem:[#allocation3 + $0x18] sm:$0xff]
      %v989 = vld [vmem:[#allocation3 + $0x20] sm:$0xff]
      %v990 = vld [vmem:[#allocation3 + $0x28] sm:$0xff]
      %v991 = vld [vmem:[#allocation3 + $0x30] sm:$0xff]
      %v992 = vld [vmem:[#allocation3 + $0x38] sm:$0xff]
      %v993 = vld [vmem:[#allocation3 + $0x40] sm:$0xff]
      %v994 = vld [vmem:[#allocation3 + $0x48] sm:$0xff]
      %v995 = vld [vmem:[#allocation3 + $0x50] sm:$0xff]
      %v996 = vld [vmem:[#allocation3 + $0x58] sm:$0xff]
      %v997 = vld [vmem:[#allocation3 + $0x60] sm:$0xff]
      %v998 = vld [vmem:[#allocation3 + $0x68] sm:$0xff]
      %v999 = vadd.f32 %v985, %v931
      %v1000 = vadd.f32 %v986, %v934
      %v1001 = vadd.f32 %v987, %v939
      %v1002 = vadd.f32 %v988, %v942
      %v1003 = vadd.f32 %v989, %v947
      %v1004 = vadd.f32 %v990, %v950
      %v1005 = vadd.f32 %v991, %v955
      %v1006 = vadd.f32 %v992, %v958
      %v1007 = vadd.f32 %v993, %v963
      %v1008 = vadd.f32 %v994, %v966
      %v1009 = vadd.f32 %v995, %v971
      %v1010 = vadd.f32 %v996, %v974
      %v1011 = vadd.f32 %v997, %v979
      %v1012 = vadd.f32 %v998, %v982
      %1013 = vst [vmem:[#allocation3] sm:$0xff] %v999
      %1014 = vst [vmem:[#allocation3 + $0x8] sm:$0xff] %v1000
      %1015 = vst [vmem:[#allocation3 + $0x10] sm:$0xff] %v1001
      %1016 = vst [vmem:[#allocation3 + $0x18] sm:$0xff] %v1002
      %1017 = vst [vmem:[#allocation3 + $0x20] sm:$0xff] %v1003
      %1018 = vst [vmem:[#allocation3 + $0x28] sm:$0xff] %v1004
      %1019 = vst [vmem:[#allocation3 + $0x30] sm:$0xff] %v1005
      %1020 = vst [vmem:[#allocation3 + $0x38] sm:$0xff] %v1006
      %1021 = vst [vmem:[#allocation3 + $0x40] sm:$0xff] %v1007
      %1022 = vst [vmem:[#allocation3 + $0x48] sm:$0xff] %v1008
      %1023 = vst [vmem:[#allocation3 + $0x50] sm:$0xff] %v1009
      %1024 = vst [vmem:[#allocation3 + $0x58] sm:$0xff] %v1010
      %1025 = vst [vmem:[#allocation3 + $0x60] sm:$0xff] %v1011
      %1026 = vst [vmem:[#allocation3 + $0x68] sm:$0xff] %v1012
      %v1027 = vld [vmem:[#allocation2] sm:$0xe0]
      %v1028 = vld [vmem:[#allocation2 + $0x8] sm:$0xff]
      %v1029 = vld [vmem:[#allocation2 + $0x10] sm:$0xff]
      %v1030 = vld [vmem:[#allocation2 + $0x18] sm:$0xff]
      %v1031 = vld [vmem:[#allocation2 + $0x20] sm:$0xff]
      %v1032 = vld [vmem:[#allocation2 + $0x28] sm:$0xff]
      %v1033 = vld [vmem:[#allocation2 + $0x30] sm:$0xff]
      %v1034 = vld [vmem:[#allocation2 + $0x38] sm:$0x1f]
      %s1035 = scalar_lea.vmem %s253, 192
      %v1036 = vld [vmem:[%s1035] sm:$0xf]
      %v1037 = vld [vmem:[%s1035 + $0x4] sm:$0xf]
      %v1038 = vld [vmem:[%s1035 + $0x8] sm:$0xf]
      %v1039 = vld [vmem:[%s1035 + $0xc] sm:$0xf]
      %v1040 = vld [vmem:[%s1035 + $0x10] sm:$0xf]
      %v1041 = vld [vmem:[%s1035 + $0x14] sm:$0xf]
      %v1042 = vld [vmem:[%s1035 + $0x18] sm:$0xf]
      %v1043 = vld [vmem:[%s1035 + $0x1c] sm:$0xf]
      %v1044 = vld [vmem:[%s1035 + $0x20] sm:$0xf]
      %v1045 = vld [vmem:[%s1035 + $0x24] sm:$0xf]
      %v1046 = vld [vmem:[%s1035 + $0x28] sm:$0xf]
      %v1047 = vld [vmem:[%s1035 + $0x2c] sm:$0xf]
      %v1048 = vld [vmem:[%s1035 + $0x30] sm:$0xf]
      %v1049 = vld [vmem:[%s1035 + $0x34] sm:$0xf]
      %v1050 = vld [vmem:[%s1035 + $0x38] sm:$0xf]
      %v1051 = vld [vmem:[%s1035 + $0x3c] sm:$0xf]
      %vm1060 = vcmask 1042432
      %v1061 = vrot.slane %v1027, 5
      %v1062 = vrot.slane %v1028, 5
      %v1063 = vsel %vm1060, %v1061, %v1062
      %v1064 = vrot.slane %v1029, 5
      %v1065 = vsel %vm1060, %v1062, %v1064
      %v1066 = vrot.slane %v1030, 5
      %v1067 = vsel %vm1060, %v1064, %v1066
      %v1068 = vrot.slane %v1031, 5
      %v1069 = vsel %vm1060, %v1066, %v1068
      %v1070 = vrot.slane %v1032, 5
      %v1071 = vsel %vm1060, %v1068, %v1070
      %v1072 = vrot.slane %v1033, 5
      %v1073 = vsel %vm1060, %v1070, %v1072
      %v1074 = vrot.slane %v1034, 5
      %v1075 = vsel %vm1060, %v1072, %v1074
      %v1099 = vunpack.c.l.b16 %v1036
      %v1100 = vunpack.c.l.b16 %v1037
      %v1101 = vunpack.c.l.b16 %v1038
      %v1102 = vunpack.c.l.b16 %v1039
      %v1103 = vunpack.c.l.b16 %v1040
      %v1104 = vunpack.c.l.b16 %v1041
      %v1105 = vunpack.c.l.b16 %v1042
      %v1106 = vunpack.c.l.b16 %v1043
      %v1107 = vunpack.c.l.b16 %v1044
      %v1108 = vunpack.c.l.b16 %v1045
      %v1109 = vunpack.c.l.b16 %v1046
      %v1110 = vunpack.c.l.b16 %v1047
      %v1111 = vunpack.c.l.b16 %v1048
      %v1112 = vunpack.c.l.b16 %v1049
      %v1113 = vunpack.c.l.b16 %v1050
      %v1114 = vunpack.c.l.b16 %v1051
      %v1115 = vpack.c.b16 %v1100, %v1099
      %v1116 = vpack.c.b16 %v1102, %v1101
      %v1117 = vpack.c.b16 %v1104, %v1103
      %v1118 = vpack.c.b16 %v1106, %v1105
      %v1119 = vpack.c.b16 %v1108, %v1107
      %v1120 = vpack.c.b16 %v1110, %v1109
      %v1121 = vpack.c.b16 %v1112, %v1111
      %v1122 = vpack.c.b16 %v1114, %v1113
      %1131 = vmatprep.subr.bf16.mxu0 0
      %1132 = vmatpush1.bf16.msra.mxu0 %v1115
      %1133 = vmatprep.subr.bf16.mxu0 0
      %1134 = vmatpush1.bf16.msra.mxu0 %v1116
      %1135 = vmatprep.subr.bf16.mxu0 0
      %1136 = vmatpush1.bf16.msra.mxu0 %v1117
      %1137 = vmatprep.subr.bf16.mxu0 0
      %1138 = vmatpush1.bf16.msra.mxu0 %v1118
      %1139 = vmatprep.subr.bf16.mxu0 0
      %1140 = vmatpush1.bf16.msra.mxu0 %v1119
      %1141 = vmatprep.subr.bf16.mxu0 0
      %1142 = vmatpush1.bf16.msra.mxu0 %v1120
      %1143 = vmatprep.subr.bf16.mxu0 0
      %1144 = vmatpush1.bf16.msra.mxu0 %v1121
      %1145 = vmatprep.subr.bf16.mxu0 0
      %1146 = vmatpush1.bf16.msra.mxu0 %v1122
      %1147 = vmatprep.subr.bf16.mxu0 0
      %1148 = vmatpush1.bf16.msra.mxu0 0
      %1149 = vmatprep.subr.bf16.mxu0 0
      %1150 = vmatpush1.bf16.msra.mxu0 0
      %1151 = vmatprep.subr.bf16.mxu0 0
      %1152 = vmatpush1.bf16.msra.mxu0 0
      %1153 = vmatprep.subr.bf16.mxu0 0
      %1154 = vmatpush1.bf16.msra.mxu0 0
      %1155 = vmatprep.subr.bf16.mxu0 0
      %1156 = vmatpush1.bf16.msra.mxu0 0
      %1157 = vmatprep.subr.bf16.mxu0 0
      %1158 = vmatpush1.bf16.msra.mxu0 0
      %1159 = vmatprep.subr.bf16.mxu0 0
      %1160 = vmatpush1.bf16.msra.mxu0 0
      %1161 = vmatprep.subr.bf16.mxu0 0
      %1162 = vmatpush1.bf16.msra.mxu0 0
      %1163 = vmatprep.mubr.bf16.mxu0 0
      %1164 = vmatmul.mubr.bf16.gmra.mrb[0].mxu0 %v1063
      %v1165 = vpop.f32.mrb[0].mxu0
      %v1166 = vadd.f32 0.0, %v1165
      %v1167 = vpop.f32.mrb[0].mxu0
      %v1168 = vpop.f32.mrb[0].mxu0
      %v1169 = vadd.f32 0.0, %v1168
      %v1170 = vpop.f32.mrb[0].mxu0
      %1171 = vmatprep.mubr.bf16.mxu0 0
      %1172 = vmatmul.mubr.bf16.gmra.mrb[0].mxu0 %v1065
      %v1173 = vpop.f32.mrb[0].mxu0
      %v1174 = vadd.f32 0.0, %v1173
      %v1175 = vpop.f32.mrb[0].mxu0
      %v1176 = vpop.f32.mrb[0].mxu0
      %v1177 = vadd.f32 0.0, %v1176
      %v1178 = vpop.f32.mrb[0].mxu0
      %1179 = vmatprep.mubr.bf16.mxu0 0
      %1180 = vmatmul.mubr.bf16.gmra.mrb[0].mxu0 %v1067
      %v1181 = vpop.f32.mrb[0].mxu0
      %v1182 = vadd.f32 0.0, %v1181
      %v1183 = vpop.f32.mrb[0].mxu0
      %v1184 = vpop.f32.mrb[0].mxu0
      %v1185 = vadd.f32 0.0, %v1184
      %v1186 = vpop.f32.mrb[0].mxu0
      %1187 = vmatprep.mubr.bf16.mxu0 0
      %1188 = vmatmul.mubr.bf16.gmra.mrb[0].mxu0 %v1069
      %v1189 = vpop.f32.mrb[0].mxu0
      %v1190 = vadd.f32 0.0, %v1189
      %v1191 = vpop.f32.mrb[0].mxu0
      %v1192 = vpop.f32.mrb[0].mxu0
      %v1193 = vadd.f32 0.0, %v1192
      %v1194 = vpop.f32.mrb[0].mxu0
      %1195 = vmatprep.mubr.bf16.mxu0 0
      %1196 = vmatmul.mubr.bf16.gmra.mrb[0].mxu0 %v1071
      %v1197 = vpop.f32.mrb[0].mxu0
      %v1198 = vadd.f32 0.0, %v1197
      %v1199 = vpop.f32.mrb[0].mxu0
      %v1200 = vpop.f32.mrb[0].mxu0
      %v1201 = vadd.f32 0.0, %v1200
      %v1202 = vpop.f32.mrb[0].mxu0
      %1203 = vmatprep.mubr.bf16.mxu0 0
      %1204 = vmatmul.mubr.bf16.gmra.mrb[0].mxu0 %v1073
      %v1205 = vpop.f32.mrb[0].mxu0
      %v1206 = vadd.f32 0.0, %v1205
      %v1207 = vpop.f32.mrb[0].mxu0
      %v1208 = vpop.f32.mrb[0].mxu0
      %v1209 = vadd.f32 0.0, %v1208
      %v1210 = vpop.f32.mrb[0].mxu0
      %1211 = vmatprep.mubr.bf16.mxu0 0
      %1212 = vmatmul.mubr.bf16.gmra.mrb[0].mxu0 %v1075
      %v1213 = vpop.f32.mrb[0].mxu0
      %v1214 = vadd.f32 0.0, %v1213
      %v1215 = vpop.f32.mrb[0].mxu0
      %v1216 = vpop.f32.mrb[0].mxu0
      %v1217 = vadd.f32 0.0, %v1216
      %v1218 = vpop.f32.mrb[0].mxu0
      %1219 = vdwg.mxu0
      %v1220 = vld [vmem:[#allocation3] sm:$0xff]
      %v1221 = vld [vmem:[#allocation3 + $0x8] sm:$0xff]
      %v1222 = vld [vmem:[#allocation3 + $0x10] sm:$0xff]
      %v1223 = vld [vmem:[#allocation3 + $0x18] sm:$0xff]
      %v1224 = vld [vmem:[#allocation3 + $0x20] sm:$0xff]
      %v1225 = vld [vmem:[#allocation3 + $0x28] sm:$0xff]
      %v1226 = vld [vmem:[#allocation3 + $0x30] sm:$0xff]
      %v1227 = vld [vmem:[#allocation3 + $0x38] sm:$0xff]
      %v1228 = vld [vmem:[#allocation3 + $0x40] sm:$0xff]
      %v1229 = vld [vmem:[#allocation3 + $0x48] sm:$0xff]
      %v1230 = vld [vmem:[#allocation3 + $0x50] sm:$0xff]
      %v1231 = vld [vmem:[#allocation3 + $0x58] sm:$0xff]
      %v1232 = vld [vmem:[#allocation3 + $0x60] sm:$0xff]
      %v1233 = vld [vmem:[#allocation3 + $0x68] sm:$0xff]
      %v1234 = vadd.f32 %v1220, %v1166
      %v1235 = vadd.f32 %v1221, %v1169
      %v1236 = vadd.f32 %v1222, %v1174
      %v1237 = vadd.f32 %v1223, %v1177
      %v1238 = vadd.f32 %v1224, %v1182
      %v1239 = vadd.f32 %v1225, %v1185
      %v1240 = vadd.f32 %v1226, %v1190
      %v1241 = vadd.f32 %v1227, %v1193
      %v1242 = vadd.f32 %v1228, %v1198
      %v1243 = vadd.f32 %v1229, %v1201
      %v1244 = vadd.f32 %v1230, %v1206
      %v1245 = vadd.f32 %v1231, %v1209
      %v1246 = vadd.f32 %v1232, %v1214
      %v1247 = vadd.f32 %v1233, %v1217
      %1248 = vst [vmem:[#allocation3] sm:$0xff] %v1234
      %1249 = vst [vmem:[#allocation3 + $0x8] sm:$0xff] %v1235
      %1250 = vst [vmem:[#allocation3 + $0x10] sm:$0xff] %v1236
      %1251 = vst [vmem:[#allocation3 + $0x18] sm:$0xff] %v1237
      %1252 = vst [vmem:[#allocation3 + $0x20] sm:$0xff] %v1238
      %1253 = vst [vmem:[#allocation3 + $0x28] sm:$0xff] %v1239
      %1254 = vst [vmem:[#allocation3 + $0x30] sm:$0xff] %v1240
      %1255 = vst [vmem:[#allocation3 + $0x38] sm:$0xff] %v1241
      %1256 = vst [vmem:[#allocation3 + $0x40] sm:$0xff] %v1242
      %1257 = vst [vmem:[#allocation3 + $0x48] sm:$0xff] %v1243
      %1258 = vst [vmem:[#allocation3 + $0x50] sm:$0xff] %v1244
      %1259 = vst [vmem:[#allocation3 + $0x58] sm:$0xff] %v1245
      %1260 = vst [vmem:[#allocation3 + $0x60] sm:$0xff] %v1246
      %1261 = vst [vmem:[#allocation3 + $0x68] sm:$0xff] %v1247
      %v1262 = vld [vmem:[#allocation2] sm:$0xe0]
      %v1263 = vld [vmem:[#allocation2 + $0x8] sm:$0xff]
      %v1264 = vld [vmem:[#allocation2 + $0x10] sm:$0xff]
      %v1265 = vld [vmem:[#allocation2 + $0x18] sm:$0xff]
      %v1266 = vld [vmem:[#allocation2 + $0x20] sm:$0xff]
      %v1267 = vld [vmem:[#allocation2 + $0x28] sm:$0xff]
      %v1268 = vld [vmem:[#allocation2 + $0x30] sm:$0xff]
      %v1269 = vld [vmem:[#allocation2 + $0x38] sm:$0x3f]
      %s1270 = scalar_lea.vmem %s253, 256
      %v1271 = vld [vmem:[%s1270] sm:$0xf]
      %v1272 = vld [vmem:[%s1270 + $0x4] sm:$0xf]
      %v1273 = vld [vmem:[%s1270 + $0x8] sm:$0xf]
      %v1274 = vld [vmem:[%s1270 + $0xc] sm:$0xf]
      %v1275 = vld [vmem:[%s1270 + $0x10] sm:$0xf]
      %v1276 = vld [vmem:[%s1270 + $0x14] sm:$0xf]
      %v1277 = vld [vmem:[%s1270 + $0x18] sm:$0xf]
      %v1278 = vld [vmem:[%s1270 + $0x1c] sm:$0xf]
      %v1279 = vld [vmem:[%s1270 + $0x20] sm:$0xf]
      %v1280 = vld [vmem:[%s1270 + $0x24] sm:$0xf]
      %v1281 = vld [vmem:[%s1270 + $0x28] sm:$0xf]
      %v1282 = vld [vmem:[%s1270 + $0x2c] sm:$0xf]
      %v1283 = vld [vmem:[%s1270 + $0x30] sm:$0xf]
      %v1284 = vld [vmem:[%s1270 + $0x34] sm:$0xf]
      %v1285 = vld [vmem:[%s1270 + $0x38] sm:$0xf]
      %v1286 = vld [vmem:[%s1270 + $0x3c] sm:$0xf]
      %vm1287 = vsmask.f32 2304
      %v1289 = vshrl.u32 %v1262, 16
      %v1291 = vrot.slane %v1289, 5
      %v1292 = vshll.u32 %v1262, 16
      %v1294 = vrot.slane %v1292, 6
      %v1295 = vor.u32 %v1291, %v1294
      %v1297 = vshrl.u32 %v1263, 16
      %v1299 = vrot.slane %v1297, 5
      %v1300 = vshll.u32 %v1263, 16
      %v1302 = vrot.slane %v1300, 6
      %v1303 = vor.u32 %v1299, %v1302
      %v1304 = vsel %vm1287, %v1295, %v1303
      %v1306 = vshrl.u32 %v1264, 16
      %v1308 = vrot.slane %v1306, 5
      %v1309 = vshll.u32 %v1264, 16
      %v1311 = vrot.slane %v1309, 6
      %v1312 = vor.u32 %v1308, %v1311
      %v1313 = vsel %vm1287, %v1303, %v1312
      %v1315 = vshrl.u32 %v1265, 16
      %v1317 = vrot.slane %v1315, 5
      %v1318 = vshll.u32 %v1265, 16
      %v1320 = vrot.slane %v1318, 6
      %v1321 = vor.u32 %v1317, %v1320
      %v1322 = vsel %vm1287, %v1312, %v1321
      %v1324 = vshrl.u32 %v1266, 16
      %v1326 = vrot.slane %v1324, 5
      %v1327 = vshll.u32 %v1266, 16
      %v1329 = vrot.slane %v1327, 6
      %v1330 = vor.u32 %v1326, %v1329
      %v1331 = vsel %vm1287, %v1321, %v1330
      %v1333 = vshrl.u32 %v1267, 16
      %v1335 = vrot.slane %v1333, 5
      %v1336 = vshll.u32 %v1267, 16
      %v1338 = vrot.slane %v1336, 6
      %v1339 = vor.u32 %v1335, %v1338
      %v1340 = vsel %vm1287, %v1330, %v1339
      %v1342 = vshrl.u32 %v1268, 16
      %v1344 = vrot.slane %v1342, 5
      %v1345 = vshll.u32 %v1268, 16
      %v1347 = vrot.slane %v1345, 6
      %v1348 = vor.u32 %v1344, %v1347
      %v1349 = vsel %vm1287, %v1339, %v1348
      %v1351 = vshrl.u32 %v1269, 16
      %v1353 = vrot.slane %v1351, 5
      %v1354 = vshll.u32 %v1269, 16
      %v1356 = vrot.slane %v1354, 6
      %v1357 = vor.u32 %v1353, %v1356
      %v1358 = vsel %vm1287, %v1348, %v1357
      %v1382 = vunpack.c.l.b16 %v1271
      %v1383 = vunpack.c.l.b16 %v1272
      %v1384 = vunpack.c.l.b16 %v1273
      %v1385 = vunpack.c.l.b16 %v1274
      %v1386 = vunpack.c.l.b16 %v1275
      %v1387 = vunpack.c.l.b16 %v1276
      %v1388 = vunpack.c.l.b16 %v1277
      %v1389 = vunpack.c.l.b16 %v1278
      %v1390 = vunpack.c.l.b16 %v1279
      %v1391 = vunpack.c.l.b16 %v1280
      %v1392 = vunpack.c.l.b16 %v1281
      %v1393 = vunpack.c.l.b16 %v1282
      %v1394 = vunpack.c.l.b16 %v1283
      %v1395 = vunpack.c.l.b16 %v1284
      %v1396 = vunpack.c.l.b16 %v1285
      %v1397 = vunpack.c.l.b16 %v1286
      %v1398 = vpack.c.b16 %v1383, %v1382
      %v1399 = vpack.c.b16 %v1385, %v1384
      %v1400 = vpack.c.b16 %v1387, %v1386
      %v1401 = vpack.c.b16 %v1389, %v1388
      %v1402 = vpack.c.b16 %v1391, %v1390
      %v1403 = vpack.c.b16 %v1393, %v1392
      %v1404 = vpack.c.b16 %v1395, %v1394
      %v1405 = vpack.c.b16 %v1397, %v1396
      %1414 = vmatprep.subr.bf16.mxu0 0
      %1415 = vmatpush1.bf16.msra.mxu0 %v1398
      %1416 = vmatprep.subr.bf16.mxu0 0
      %1417 = vmatpush1.bf16.msra.mxu0 %v1399
      %1418 = vmatprep.subr.bf16.mxu0 0
      %1419 = vmatpush1.bf16.msra.mxu0 %v1400
      %1420 = vmatprep.subr.bf16.mxu0 0
      %1421 = vmatpush1.bf16.msra.mxu0 %v1401
      %1422 = vmatprep.subr.bf16.mxu0 0
      %1423 = vmatpush1.bf16.msra.mxu0 %v1402
      %1424 = vmatprep.subr.bf16.mxu0 0
      %1425 = vmatpush1.bf16.msra.mxu0 %v1403
      %1426 = vmatprep.subr.bf16.mxu0 0
      %1427 = vmatpush1.bf16.msra.mxu0 %v1404
      %1428 = vmatprep.subr.bf16.mxu0 0
      %1429 = vmatpush1.bf16.msra.mxu0 %v1405
      %1430 = vmatprep.subr.bf16.mxu0 0
      %1431 = vmatpush1.bf16.msra.mxu0 0
      %1432 = vmatprep.subr.bf16.mxu0 0
      %1433 = vmatpush1.bf16.msra.mxu0 0
      %1434 = vmatprep.subr.bf16.mxu0 0
      %1435 = vmatpush1.bf16.msra.mxu0 0
      %1436 = vmatprep.subr.bf16.mxu0 0
      %1437 = vmatpush1.bf16.msra.mxu0 0
      %1438 = vmatprep.subr.bf16.mxu0 0
      %1439 = vmatpush1.bf16.msra.mxu0 0
      %1440 = vmatprep.subr.bf16.mxu0 0
      %1441 = vmatpush1.bf16.msra.mxu0 0
      %1442 = vmatprep.subr.bf16.mxu0 0
      %1443 = vmatpush1.bf16.msra.mxu0 0
      %1444 = vmatprep.subr.bf16.mxu0 0
      %1445 = vmatpush1.bf16.msra.mxu0 0
      %1446 = vmatprep.mubr.bf16.mxu0 0
      %1447 = vmatmul.mubr.bf16.gmra.mrb[0].mxu0 %v1304
      %v1448 = vpop.f32.mrb[0].mxu0
      %v1449 = vadd.f32 0.0, %v1448
      %v1450 = vpop.f32.mrb[0].mxu0
      %v1451 = vpop.f32.mrb[0].mxu0
      %v1452 = vadd.f32 0.0, %v1451
      %v1453 = vpop.f32.mrb[0].mxu0
      %1454 = vmatprep.mubr.bf16.mxu0 0
      %1455 = vmatmul.mubr.bf16.gmra.mrb[0].mxu0 %v1313
      %v1456 = vpop.f32.mrb[0].mxu0
      %v1457 = vadd.f32 0.0, %v1456
      %v1458 = vpop.f32.mrb[0].mxu0
      %v1459 = vpop.f32.mrb[0].mxu0
      %v1460 = vadd.f32 0.0, %v1459
      %v1461 = vpop.f32.mrb[0].mxu0
      %1462 = vmatprep.mubr.bf16.mxu0 0
      %1463 = vmatmul.mubr.bf16.gmra.mrb[0].mxu0 %v1322
      %v1464 = vpop.f32.mrb[0].mxu0
      %v1465 = vadd.f32 0.0, %v1464
      %v1466 = vpop.f32.mrb[0].mxu0
      %v1467 = vpop.f32.mrb[0].mxu0
      %v1468 = vadd.f32 0.0, %v1467
      %v1469 = vpop.f32.mrb[0].mxu0
      %1470 = vmatprep.mubr.bf16.mxu0 0
      %1471 = vmatmul.mubr.bf16.gmra.mrb[0].mxu0 %v1331
      %v1472 = vpop.f32.mrb[0].mxu0
      %v1473 = vadd.f32 0.0, %v1472
      %v1474 = vpop.f32.mrb[0].mxu0
      %v1475 = vpop.f32.mrb[0].mxu0
      %v1476 = vadd.f32 0.0, %v1475
      %v1477 = vpop.f32.mrb[0].mxu0
      %1478 = vmatprep.mubr.bf16.mxu0 0
      %1479 = vmatmul.mubr.bf16.gmra.mrb[0].mxu0 %v1340
      %v1480 = vpop.f32.mrb[0].mxu0
      %v1481 = vadd.f32 0.0, %v1480
      %v1482 = vpop.f32.mrb[0].mxu0
      %v1483 = vpop.f32.mrb[0].mxu0
      %v1484 = vadd.f32 0.0, %v1483
      %v1485 = vpop.f32.mrb[0].mxu0
      %1486 = vmatprep.mubr.bf16.mxu0 0
      %1487 = vmatmul.mubr.bf16.gmra.mrb[0].mxu0 %v1349
      %v1488 = vpop.f32.mrb[0].mxu0
      %v1489 = vadd.f32 0.0, %v1488
      %v1490 = vpop.f32.mrb[0].mxu0
      %v1491 = vpop.f32.mrb[0].mxu0
      %v1492 = vadd.f32 0.0, %v1491
      %v1493 = vpop.f32.mrb[0].mxu0
      %1494 = vmatprep.mubr.bf16.mxu0 0
      %1495 = vmatmul.mubr.bf16.gmra.mrb[0].mxu0 %v1358
      %v1496 = vpop.f32.mrb[0].mxu0
      %v1497 = vadd.f32 0.0, %v1496
      %v1498 = vpop.f32.mrb[0].mxu0
      %v1499 = vpop.f32.mrb[0].mxu0
      %v1500 = vadd.f32 0.0, %v1499
      %v1501 = vpop.f32.mrb[0].mxu0
      %1502 = vdwg.mxu0
      %v1503 = vld [vmem:[#allocation3] sm:$0xff]
      %v1504 = vld [vmem:[#allocation3 + $0x8] sm:$0xff]
      %v1505 = vld [vmem:[#allocation3 + $0x10] sm:$0xff]
      %v1506 = vld [vmem:[#allocation3 + $0x18] sm:$0xff]
      %v1507 = vld [vmem:[#allocation3 + $0x20] sm:$0xff]
      %v1508 = vld [vmem:[#allocation3 + $0x28] sm:$0xff]
      %v1509 = vld [vmem:[#allocation3 + $0x30] sm:$0xff]
      %v1510 = vld [vmem:[#allocation3 + $0x38] sm:$0xff]
      %v1511 = vld [vmem:[#allocation3 + $0x40] sm:$0xff]
      %v1512 = vld [vmem:[#allocation3 + $0x48] sm:$0xff]
      %v1513 = vld [vmem:[#allocation3 + $0x50] sm:$0xff]
      %v1514 = vld [vmem:[#allocation3 + $0x58] sm:$0xff]
      %v1515 = vld [vmem:[#allocation3 + $0x60] sm:$0xff]
      %v1516 = vld [vmem:[#allocation3 + $0x68] sm:$0xff]
      %v1517 = vadd.f32 %v1503, %v1449
      %v1518 = vadd.f32 %v1504, %v1452
      %v1519 = vadd.f32 %v1505, %v1457
      %v1520 = vadd.f32 %v1506, %v1460
      %v1521 = vadd.f32 %v1507, %v1465
      %v1522 = vadd.f32 %v1508, %v1468
      %v1523 = vadd.f32 %v1509, %v1473
      %v1524 = vadd.f32 %v1510, %v1476
      %v1525 = vadd.f32 %v1511, %v1481
      %v1526 = vadd.f32 %v1512, %v1484
      %v1527 = vadd.f32 %v1513, %v1489
      %v1528 = vadd.f32 %v1514, %v1492
      %v1529 = vadd.f32 %v1515, %v1497
      %v1530 = vadd.f32 %v1516, %v1500
      %1531 = vst [vmem:[#allocation3] sm:$0xff] %v1517
      %1532 = vst [vmem:[#allocation3 + $0x8] sm:$0xff] %v1518
      %1533 = vst [vmem:[#allocation3 + $0x10] sm:$0xff] %v1519
      %1534 = vst [vmem:[#allocation3 + $0x18] sm:$0xff] %v1520
      %1535 = vst [vmem:[#allocation3 + $0x20] sm:$0xff] %v1521
      %1536 = vst [vmem:[#allocation3 + $0x28] sm:$0xff] %v1522
      %1537 = vst [vmem:[#allocation3 + $0x30] sm:$0xff] %v1523
      %1538 = vst [vmem:[#allocation3 + $0x38] sm:$0xff] %v1524
      %1539 = vst [vmem:[#allocation3 + $0x40] sm:$0xff] %v1525
      %1540 = vst [vmem:[#allocation3 + $0x48] sm:$0xff] %v1526
      %1541 = vst [vmem:[#allocation3 + $0x50] sm:$0xff] %v1527
      %1542 = vst [vmem:[#allocation3 + $0x58] sm:$0xff] %v1528
      %1543 = vst [vmem:[#allocation3 + $0x60] sm:$0xff] %v1529
      %1544 = vst [vmem:[#allocation3 + $0x68] sm:$0xff] %v1530
      %v1545 = vld [vmem:[#allocation2] sm:$0xc0]
      %v1546 = vld [vmem:[#allocation2 + $0x8] sm:$0xff]
      %v1547 = vld [vmem:[#allocation2 + $0x10] sm:$0xff]
      %v1548 = vld [vmem:[#allocation2 + $0x18] sm:$0xff]
      %v1549 = vld [vmem:[#allocation2 + $0x20] sm:$0xff]
      %v1550 = vld [vmem:[#allocation2 + $0x28] sm:$0xff]
      %v1551 = vld [vmem:[#allocation2 + $0x30] sm:$0xff]
      %v1552 = vld [vmem:[#allocation2 + $0x38] sm:$0x3f]
      %s1553 = scalar_lea.vmem %s253, 320
      %v1554 = vld [vmem:[%s1553] sm:$0xf]
      %v1555 = vld [vmem:[%s1553 + $0x4] sm:$0xf]
      %v1556 = vld [vmem:[%s1553 + $0x8] sm:$0xf]
      %v1557 = vld [vmem:[%s1553 + $0xc] sm:$0xf]
      %v1558 = vld [vmem:[%s1553 + $0x10] sm:$0xf]
      %v1559 = vld [vmem:[%s1553 + $0x14] sm:$0xf]
      %v1560 = vld [vmem:[%s1553 + $0x18] sm:$0xf]
      %v1561 = vld [vmem:[%s1553 + $0x1c] sm:$0xf]
      %v1562 = vld [vmem:[%s1553 + $0x20] sm:$0xf]
      %v1563 = vld [vmem:[%s1553 + $0x24] sm:$0xf]
      %v1564 = vld [vmem:[%s1553 + $0x28] sm:$0xf]
      %v1565 = vld [vmem:[%s1553 + $0x2c] sm:$0xf]
      %v1566 = vld [vmem:[%s1553 + $0x30] sm:$0xf]
      %v1567 = vld [vmem:[%s1553 + $0x34] sm:$0xf]
      %v1568 = vld [vmem:[%s1553 + $0x38] sm:$0xf]
      %v1569 = vld [vmem:[%s1553 + $0x3c] sm:$0xf]
      %vm1578 = vcmask 1041408
      %v1579 = vrot.slane %v1545, 6
      %v1580 = vrot.slane %v1546, 6
      %v1581 = vsel %vm1578, %v1579, %v1580
      %v1582 = vrot.slane %v1547, 6
      %v1583 = vsel %vm1578, %v1580, %v1582
      %v1584 = vrot.slane %v1548, 6
      %v1585 = vsel %vm1578, %v1582, %v1584
      %v1586 = vrot.slane %v1549, 6
      %v1587 = vsel %vm1578, %v1584, %v1586
      %v1588 = vrot.slane %v1550, 6
      %v1589 = vsel %vm1578, %v1586, %v1588
      %v1590 = vrot.slane %v1551, 6
      %v1591 = vsel %vm1578, %v1588, %v1590
      %v1592 = vrot.slane %v1552, 6
      %v1593 = vsel %vm1578, %v1590, %v1592
      %v1617 = vunpack.c.l.b16 %v1554
      %v1618 = vunpack.c.l.b16 %v1555
      %v1619 = vunpack.c.l.b16 %v1556
      %v1620 = vunpack.c.l.b16 %v1557
      %v1621 = vunpack.c.l.b16 %v1558
      %v1622 = vunpack.c.l.b16 %v1559
      %v1623 = vunpack.c.l.b16 %v1560
      %v1624 = vunpack.c.l.b16 %v1561
      %v1625 = vunpack.c.l.b16 %v1562
      %v1626 = vunpack.c.l.b16 %v1563
      %v1627 = vunpack.c.l.b16 %v1564
      %v1628 = vunpack.c.l.b16 %v1565
      %v1629 = vunpack.c.l.b16 %v1566
      %v1630 = vunpack.c.l.b16 %v1567
      %v1631 = vunpack.c.l.b16 %v1568
      %v1632 = vunpack.c.l.b16 %v1569
      %v1633 = vpack.c.b16 %v1618, %v1617
      %v1634 = vpack.c.b16 %v1620, %v1619
      %v1635 = vpack.c.b16 %v1622, %v1621
      %v1636 = vpack.c.b16 %v1624, %v1623
      %v1637 = vpack.c.b16 %v1626, %v1625
      %v1638 = vpack.c.b16 %v1628, %v1627
      %v1639 = vpack.c.b16 %v1630, %v1629
      %v1640 = vpack.c.b16 %v1632, %v1631
      %1649 = vmatprep.subr.bf16.mxu0 0
      %1650 = vmatpush1.bf16.msra.mxu0 %v1633
      %1651 = vmatprep.subr.bf16.mxu0 0
      %1652 = vmatpush1.bf16.msra.mxu0 %v1634
      %1653 = vmatprep.subr.bf16.mxu0 0
      %1654 = vmatpush1.bf16.msra.mxu0 %v1635
      %1655 = vmatprep.subr.bf16.mxu0 0
      %1656 = vmatpush1.bf16.msra.mxu0 %v1636
      %1657 = vmatprep.subr.bf16.mxu0 0
      %1658 = vmatpush1.bf16.msra.mxu0 %v1637
      %1659 = vmatprep.subr.bf16.mxu0 0
      %1660 = vmatpush1.bf16.msra.mxu0 %v1638
      %1661 = vmatprep.subr.bf16.mxu0 0
      %1662 = vmatpush1.bf16.msra.mxu0 %v1639
      %1663 = vmatprep.subr.bf16.mxu0 0
      %1664 = vmatpush1.bf16.msra.mxu0 %v1640
      %1665 = vmatprep.subr.bf16.mxu0 0
      %1666 = vmatpush1.bf16.msra.mxu0 0
      %1667 = vmatprep.subr.bf16.mxu0 0
      %1668 = vmatpush1.bf16.msra.mxu0 0
      %1669 = vmatprep.subr.bf16.mxu0 0
      %1670 = vmatpush1.bf16.msra.mxu0 0
      %1671 = vmatprep.subr.bf16.mxu0 0
      %1672 = vmatpush1.bf16.msra.mxu0 0
      %1673 = vmatprep.subr.bf16.mxu0 0
      %1674 = vmatpush1.bf16.msra.mxu0 0
      %1675 = vmatprep.subr.bf16.mxu0 0
      %1676 = vmatpush1.bf16.msra.mxu0 0
      %1677 = vmatprep.subr.bf16.mxu0 0
      %1678 = vmatpush1.bf16.msra.mxu0 0
      %1679 = vmatprep.subr.bf16.mxu0 0
      %1680 = vmatpush1.bf16.msra.mxu0 0
      %1681 = vmatprep.mubr.bf16.mxu0 0
      %1682 = vmatmul.mubr.bf16.gmra.mrb[0].mxu0 %v1581
      %v1683 = vpop.f32.mrb[0].mxu0
      %v1684 = vadd.f32 0.0, %v1683
      %v1685 = vpop.f32.mrb[0].mxu0
      %v1686 = vpop.f32.mrb[0].mxu0
      %v1687 = vadd.f32 0.0, %v1686
      %v1688 = vpop.f32.mrb[0].mxu0
      %1689 = vmatprep.mubr.bf16.mxu0 0
      %1690 = vmatmul.mubr.bf16.gmra.mrb[0].mxu0 %v1583
      %v1691 = vpop.f32.mrb[0].mxu0
      %v1692 = vadd.f32 0.0, %v1691
      %v1693 = vpop.f32.mrb[0].mxu0
      %v1694 = vpop.f32.mrb[0].mxu0
      %v1695 = vadd.f32 0.0, %v1694
      %v1696 = vpop.f32.mrb[0].mxu0
      %1697 = vmatprep.mubr.bf16.mxu0 0
      %1698 = vmatmul.mubr.bf16.gmra.mrb[0].mxu0 %v1585
      %v1699 = vpop.f32.mrb[0].mxu0
      %v1700 = vadd.f32 0.0, %v1699
      %v1701 = vpop.f32.mrb[0].mxu0
      %v1702 = vpop.f32.mrb[0].mxu0
      %v1703 = vadd.f32 0.0, %v1702
      %v1704 = vpop.f32.mrb[0].mxu0
      %1705 = vmatprep.mubr.bf16.mxu0 0
      %1706 = vmatmul.mubr.bf16.gmra.mrb[0].mxu0 %v1587
      %v1707 = vpop.f32.mrb[0].mxu0
      %v1708 = vadd.f32 0.0, %v1707
      %v1709 = vpop.f32.mrb[0].mxu0
      %v1710 = vpop.f32.mrb[0].mxu0
      %v1711 = vadd.f32 0.0, %v1710
      %v1712 = vpop.f32.mrb[0].mxu0
      %1713 = vmatprep.mubr.bf16.mxu0 0
      %1714 = vmatmul.mubr.bf16.gmra.mrb[0].mxu0 %v1589
      %v1715 = vpop.f32.mrb[0].mxu0
      %v1716 = vadd.f32 0.0, %v1715
      %v1717 = vpop.f32.mrb[0].mxu0
      %v1718 = vpop.f32.mrb[0].mxu0
      %v1719 = vadd.f32 0.0, %v1718
      %v1720 = vpop.f32.mrb[0].mxu0
      %1721 = vmatprep.mubr.bf16.mxu0 0
      %1722 = vmatmul.mubr.bf16.gmra.mrb[0].mxu0 %v1591
      %v1723 = vpop.f32.mrb[0].mxu0
      %v1724 = vadd.f32 0.0, %v1723
      %v1725 = vpop.f32.mrb[0].mxu0
      %v1726 = vpop.f32.mrb[0].mxu0
      %v1727 = vadd.f32 0.0, %v1726
      %v1728 = vpop.f32.mrb[0].mxu0
      %1729 = vmatprep.mubr.bf16.mxu0 0
      %1730 = vmatmul.mubr.bf16.gmra.mrb[0].mxu0 %v1593
      %v1731 = vpop.f32.mrb[0].mxu0
      %v1732 = vadd.f32 0.0, %v1731
      %v1733 = vpop.f32.mrb[0].mxu0
      %v1734 = vpop.f32.mrb[0].mxu0
      %v1735 = vadd.f32 0.0, %v1734
      %v1736 = vpop.f32.mrb[0].mxu0
      %1737 = vdwg.mxu0
      %v1738 = vld [vmem:[#allocation3] sm:$0xff]
      %v1739 = vld [vmem:[#allocation3 + $0x8] sm:$0xff]
      %v1740 = vld [vmem:[#allocation3 + $0x10] sm:$0xff]
      %v1741 = vld [vmem:[#allocation3 + $0x18] sm:$0xff]
      %v1742 = vld [vmem:[#allocation3 + $0x20] sm:$0xff]
      %v1743 = vld [vmem:[#allocation3 + $0x28] sm:$0xff]
      %v1744 = vld [vmem:[#allocation3 + $0x30] sm:$0xff]
      %v1745 = vld [vmem:[#allocation3 + $0x38] sm:$0xff]
      %v1746 = vld [vmem:[#allocation3 + $0x40] sm:$0xff]
      %v1747 = vld [vmem:[#allocation3 + $0x48] sm:$0xff]
      %v1748 = vld [vmem:[#allocation3 + $0x50] sm:$0xff]
      %v1749 = vld [vmem:[#allocation3 + $0x58] sm:$0xff]
      %v1750 = vld [vmem:[#allocation3 + $0x60] sm:$0xff]
      %v1751 = vld [vmem:[#allocation3 + $0x68] sm:$0xff]
      %v1752 = vadd.f32 %v1738, %v1684
      %v1753 = vadd.f32 %v1739, %v1687
      %v1754 = vadd.f32 %v1740, %v1692
      %v1755 = vadd.f32 %v1741, %v1695
      %v1756 = vadd.f32 %v1742, %v1700
      %v1757 = vadd.f32 %v1743, %v1703
      %v1758 = vadd.f32 %v1744, %v1708
      %v1759 = vadd.f32 %v1745, %v1711
      %v1760 = vadd.f32 %v1746, %v1716
      %v1761 = vadd.f32 %v1747, %v1719
      %v1762 = vadd.f32 %v1748, %v1724
      %v1763 = vadd.f32 %v1749, %v1727
      %v1764 = vadd.f32 %v1750, %v1732
      %v1765 = vadd.f32 %v1751, %v1735
      %1766 = vst [vmem:[#allocation3] sm:$0xff] %v1752
      %1767 = vst [vmem:[#allocation3 + $0x8] sm:$0xff] %v1753
      %1768 = vst [vmem:[#allocation3 + $0x10] sm:$0xff] %v1754
      %1769 = vst [vmem:[#allocation3 + $0x18] sm:$0xff] %v1755
      %1770 = vst [vmem:[#allocation3 + $0x20] sm:$0xff] %v1756
      %1771 = vst [vmem:[#allocation3 + $0x28] sm:$0xff] %v1757
      %1772 = vst [vmem:[#allocation3 + $0x30] sm:$0xff] %v1758
      %1773 = vst [vmem:[#allocation3 + $0x38] sm:$0xff] %v1759
      %1774 = vst [vmem:[#allocation3 + $0x40] sm:$0xff] %v1760
      %1775 = vst [vmem:[#allocation3 + $0x48] sm:$0xff] %v1761
      %1776 = vst [vmem:[#allocation3 + $0x50] sm:$0xff] %v1762
      %1777 = vst [vmem:[#allocation3 + $0x58] sm:$0xff] %v1763
      %1778 = vst [vmem:[#allocation3 + $0x60] sm:$0xff] %v1764
      %1779 = vst [vmem:[#allocation3 + $0x68] sm:$0xff] %v1765
      %v1780 = vld [vmem:[#allocation2 + $0x8] sm:$0xfc]
      %v1781 = vld [vmem:[#allocation2 + $0x10] sm:$0xff]
      %v1782 = vld [vmem:[#allocation2 + $0x18] sm:$0xff]
      %v1783 = vld [vmem:[#allocation2 + $0x20] sm:$0xff]
      %v1784 = vld [vmem:[#allocation2 + $0x28] sm:$0xff]
      %v1785 = vld [vmem:[#allocation2 + $0x30] sm:$0xff]
      %v1786 = vld [vmem:[#allocation2 + $0x38] sm:$0xff]
      %v1787 = vld [vmem:[#allocation2 + $0x40] sm:$0x3]
      %s1788 = scalar_lea.vmem %s253, 384
      %v1789 = vld [vmem:[%s1788] sm:$0xf]
      %v1790 = vld [vmem:[%s1788 + $0x4] sm:$0xf]
      %v1791 = vld [vmem:[%s1788 + $0x8] sm:$0xf]
      %v1792 = vld [vmem:[%s1788 + $0xc] sm:$0xf]
      %v1793 = vld [vmem:[%s1788 + $0x10] sm:$0xf]
      %v1794 = vld [vmem:[%s1788 + $0x14] sm:$0xf]
      %v1795 = vld [vmem:[%s1788 + $0x18] sm:$0xf]
      %v1796 = vld [vmem:[%s1788 + $0x1c] sm:$0xf]
      %v1797 = vld [vmem:[%s1788 + $0x20] sm:$0xf]
      %v1798 = vld [vmem:[%s1788 + $0x24] sm:$0xf]
      %v1799 = vld [vmem:[%s1788 + $0x28] sm:$0xf]
      %v1800 = vld [vmem:[%s1788 + $0x2c] sm:$0xf]
      %v1801 = vld [vmem:[%s1788 + $0x30] sm:$0xf]
      %v1802 = vld [vmem:[%s1788 + $0x34] sm:$0xf]
      %v1803 = vld [vmem:[%s1788 + $0x38] sm:$0xf]
      %v1804 = vld [vmem:[%s1788 + $0x3c] sm:$0xf]
      %vm1813 = vcmask 1045504
      %v1814 = vrot.slane %v1780, 2
      %v1815 = vrot.slane %v1781, 2
      %v1816 = vsel %vm1813, %v1814, %v1815
      %v1817 = vrot.slane %v1782, 2
      %v1818 = vsel %vm1813, %v1815, %v1817
      %v1819 = vrot.slane %v1783, 2
      %v1820 = vsel %vm1813, %v1817, %v1819
      %v1821 = vrot.slane %v1784, 2
      %v1822 = vsel %vm1813, %v1819, %v1821
      %v1823 = vrot.slane %v1785, 2
      %v1824 = vsel %vm1813, %v1821, %v1823
      %v1825 = vrot.slane %v1786, 2
      %v1826 = vsel %vm1813, %v1823, %v1825
      %v1827 = vrot.slane %v1787, 2
      %v1828 = vsel %vm1813, %v1825, %v1827
      %v1852 = vunpack.c.l.b16 %v1789
      %v1853 = vunpack.c.l.b16 %v1790
      %v1854 = vunpack.c.l.b16 %v1791
      %v1855 = vunpack.c.l.b16 %v1792
      %v1856 = vunpack.c.l.b16 %v1793
      %v1857 = vunpack.c.l.b16 %v1794
      %v1858 = vunpack.c.l.b16 %v1795
      %v1859 = vunpack.c.l.b16 %v1796
      %v1860 = vunpack.c.l.b16 %v1797
      %v1861 = vunpack.c.l.b16 %v1798
      %v1862 = vunpack.c.l.b16 %v1799
      %v1863 = vunpack.c.l.b16 %v1800
      %v1864 = vunpack.c.l.b16 %v1801
      %v1865 = vunpack.c.l.b16 %v1802
      %v1866 = vunpack.c.l.b16 %v1803
      %v1867 = vunpack.c.l.b16 %v1804
      %v1868 = vpack.c.b16 %v1853, %v1852
      %v1869 = vpack.c.b16 %v1855, %v1854
      %v1870 = vpack.c.b16 %v1857, %v1856
      %v1871 = vpack.c.b16 %v1859, %v1858
      %v1872 = vpack.c.b16 %v1861, %v1860
      %v1873 = vpack.c.b16 %v1863, %v1862
      %v1874 = vpack.c.b16 %v1865, %v1864
      %v1875 = vpack.c.b16 %v1867, %v1866
      %1884 = vmatprep.subr.bf16.mxu0 0
      %1885 = vmatpush1.bf16.msra.mxu0 %v1868
      %1886 = vmatprep.subr.bf16.mxu0 0
      %1887 = vmatpush1.bf16.msra.mxu0 %v1869
      %1888 = vmatprep.subr.bf16.mxu0 0
      %1889 = vmatpush1.bf16.msra.mxu0 %v1870
      %1890 = vmatprep.subr.bf16.mxu0 0
      %1891 = vmatpush1.bf16.msra.mxu0 %v1871
      %1892 = vmatprep.subr.bf16.mxu0 0
      %1893 = vmatpush1.bf16.msra.mxu0 %v1872
      %1894 = vmatprep.subr.bf16.mxu0 0
      %1895 = vmatpush1.bf16.msra.mxu0 %v1873
      %1896 = vmatprep.subr.bf16.mxu0 0
      %1897 = vmatpush1.bf16.msra.mxu0 %v1874
      %1898 = vmatprep.subr.bf16.mxu0 0
      %1899 = vmatpush1.bf16.msra.mxu0 %v1875
      %1900 = vmatprep.subr.bf16.mxu0 0
      %1901 = vmatpush1.bf16.msra.mxu0 0
      %1902 = vmatprep.subr.bf16.mxu0 0
      %1903 = vmatpush1.bf16.msra.mxu0 0
      %1904 = vmatprep.subr.bf16.mxu0 0
      %1905 = vmatpush1.bf16.msra.mxu0 0
      %1906 = vmatprep.subr.bf16.mxu0 0
      %1907 = vmatpush1.bf16.msra.mxu0 0
      %1908 = vmatprep.subr.bf16.mxu0 0
      %1909 = vmatpush1.bf16.msra.mxu0 0
      %1910 = vmatprep.subr.bf16.mxu0 0
      %1911 = vmatpush1.bf16.msra.mxu0 0
      %1912 = vmatprep.subr.bf16.mxu0 0
      %1913 = vmatpush1.bf16.msra.mxu0 0
      %1914 = vmatprep.subr.bf16.mxu0 0
      %1915 = vmatpush1.bf16.msra.mxu0 0
      %1916 = vmatprep.mubr.bf16.mxu0 0
      %1917 = vmatmul.mubr.bf16.gmra.mrb[0].mxu0 %v1816
      %v1918 = vpop.f32.mrb[0].mxu0
      %v1919 = vadd.f32 0.0, %v1918
      %v1920 = vpop.f32.mrb[0].mxu0
      %v1921 = vpop.f32.mrb[0].mxu0
      %v1922 = vadd.f32 0.0, %v1921
      %v1923 = vpop.f32.mrb[0].mxu0
      %1924 = vmatprep.mubr.bf16.mxu0 0
      %1925 = vmatmul.mubr.bf16.gmra.mrb[0].mxu0 %v1818
      %v1926 = vpop.f32.mrb[0].mxu0
      %v1927 = vadd.f32 0.0, %v1926
      %v1928 = vpop.f32.mrb[0].mxu0
      %v1929 = vpop.f32.mrb[0].mxu0
      %v1930 = vadd.f32 0.0, %v1929
      %v1931 = vpop.f32.mrb[0].mxu0
      %1932 = vmatprep.mubr.bf16.mxu0 0
      %1933 = vmatmul.mubr.bf16.gmra.mrb[0].mxu0 %v1820
      %v1934 = vpop.f32.mrb[0].mxu0
      %v1935 = vadd.f32 0.0, %v1934
      %v1936 = vpop.f32.mrb[0].mxu0
      %v1937 = vpop.f32.mrb[0].mxu0
      %v1938 = vadd.f32 0.0, %v1937
      %v1939 = vpop.f32.mrb[0].mxu0
      %1940 = vmatprep.mubr.bf16.mxu0 0
      %1941 = vmatmul.mubr.bf16.gmra.mrb[0].mxu0 %v1822
      %v1942 = vpop.f32.mrb[0].mxu0
      %v1943 = vadd.f32 0.0, %v1942
      %v1944 = vpop.f32.mrb[0].mxu0
      %v1945 = vpop.f32.mrb[0].mxu0
      %v1946 = vadd.f32 0.0, %v1945
      %v1947 = vpop.f32.mrb[0].mxu0
      %1948 = vmatprep.mubr.bf16.mxu0 0
      %1949 = vmatmul.mubr.bf16.gmra.mrb[0].mxu0 %v1824
      %v1950 = vpop.f32.mrb[0].mxu0
      %v1951 = vadd.f32 0.0, %v1950
      %v1952 = vpop.f32.mrb[0].mxu0
      %v1953 = vpop.f32.mrb[0].mxu0
      %v1954 = vadd.f32 0.0, %v1953
      %v1955 = vpop.f32.mrb[0].mxu0
      %1956 = vmatprep.mubr.bf16.mxu0 0
      %1957 = vmatmul.mubr.bf16.gmra.mrb[0].mxu0 %v1826
      %v1958 = vpop.f32.mrb[0].mxu0
      %v1959 = vadd.f32 0.0, %v1958
      %v1960 = vpop.f32.mrb[0].mxu0
      %v1961 = vpop.f32.mrb[0].mxu0
      %v1962 = vadd.f32 0.0, %v1961
      %v1963 = vpop.f32.mrb[0].mxu0
      %1964 = vmatprep.mubr.bf16.mxu0 0
      %1965 = vmatmul.mubr.bf16.gmra.mrb[0].mxu0 %v1828
      %v1966 = vpop.f32.mrb[0].mxu0
      %v1967 = vadd.f32 0.0, %v1966
      %v1968 = vpop.f32.mrb[0].mxu0
      %v1969 = vpop.f32.mrb[0].mxu0
      %v1970 = vadd.f32 0.0, %v1969
      %v1971 = vpop.f32.mrb[0].mxu0
      %1972 = vdwg.mxu0
      %v1973 = vld [vmem:[#allocation3] sm:$0xff]
      %v1974 = vld [vmem:[#allocation3 + $0x8] sm:$0xff]
      %v1975 = vld [vmem:[#allocation3 + $0x10] sm:$0xff]
      %v1976 = vld [vmem:[#allocation3 + $0x18] sm:$0xff]
      %v1977 = vld [vmem:[#allocation3 + $0x20] sm:$0xff]
      %v1978 = vld [vmem:[#allocation3 + $0x28] sm:$0xff]
      %v1979 = vld [vmem:[#allocation3 + $0x30] sm:$0xff]
      %v1980 = vld [vmem:[#allocation3 + $0x38] sm:$0xff]
      %v1981 = vld [vmem:[#allocation3 + $0x40] sm:$0xff]
      %v1982 = vld [vmem:[#allocation3 + $0x48] sm:$0xff]
      %v1983 = vld [vmem:[#allocation3 + $0x50] sm:$0xff]
      %v1984 = vld [vmem:[#allocation3 + $0x58] sm:$0xff]
      %v1985 = vld [vmem:[#allocation3 + $0x60] sm:$0xff]
      %v1986 = vld [vmem:[#allocation3 + $0x68] sm:$0xff]
      %v1987 = vadd.f32 %v1973, %v1919
      %v1988 = vadd.f32 %v1974, %v1922
      %v1989 = vadd.f32 %v1975, %v1927
      %v1990 = vadd.f32 %v1976, %v1930
      %v1991 = vadd.f32 %v1977, %v1935
      %v1992 = vadd.f32 %v1978, %v1938
      %v1993 = vadd.f32 %v1979, %v1943
      %v1994 = vadd.f32 %v1980, %v1946
      %v1995 = vadd.f32 %v1981, %v1951
      %v1996 = vadd.f32 %v1982, %v1954
      %v1997 = vadd.f32 %v1983, %v1959
      %v1998 = vadd.f32 %v1984, %v1962
      %v1999 = vadd.f32 %v1985, %v1967
      %v2000 = vadd.f32 %v1986, %v1970
      %2001 = vst [vmem:[#allocation3] sm:$0xff] %v1987
      %2002 = vst [vmem:[#allocation3 + $0x8] sm:$0xff] %v1988
      %2003 = vst [vmem:[#allocation3 + $0x10] sm:$0xff] %v1989
      %2004 = vst [vmem:[#allocation3 + $0x18] sm:$0xff] %v1990
      %2005 = vst [vmem:[#allocation3 + $0x20] sm:$0xff] %v1991
      %2006 = vst [vmem:[#allocation3 + $0x28] sm:$0xff] %v1992
      %2007 = vst [vmem:[#allocation3 + $0x30] sm:$0xff] %v1993
      %2008 = vst [vmem:[#allocation3 + $0x38] sm:$0xff] %v1994
      %2009 = vst [vmem:[#allocation3 + $0x40] sm:$0xff] %v1995
      %2010 = vst [vmem:[#allocation3 + $0x48] sm:$0xff] %v1996
      %2011 = vst [vmem:[#allocation3 + $0x50] sm:$0xff] %v1997
      %2012 = vst [vmem:[#allocation3 + $0x58] sm:$0xff] %v1998
      %2013 = vst [vmem:[#allocation3 + $0x60] sm:$0xff] %v1999
      %2014 = vst [vmem:[#allocation3 + $0x68] sm:$0xff] %v2000
      %v2015 = vld [vmem:[#allocation2 + $0x8] sm:$0xfc]
      %v2016 = vld [vmem:[#allocation2 + $0x10] sm:$0xff]
      %v2017 = vld [vmem:[#allocation2 + $0x18] sm:$0xff]
      %v2018 = vld [vmem:[#allocation2 + $0x20] sm:$0xff]
      %v2019 = vld [vmem:[#allocation2 + $0x28] sm:$0xff]
      %v2020 = vld [vmem:[#allocation2 + $0x30] sm:$0xff]
      %v2021 = vld [vmem:[#allocation2 + $0x38] sm:$0xff]
      %v2022 = vld [vmem:[#allocation2 + $0x40] sm:$0x7]
      %s2023 = scalar_lea.vmem %s253, 448
      %v2024 = vld [vmem:[%s2023] sm:$0xf]
      %v2025 = vld [vmem:[%s2023 + $0x4] sm:$0xf]
      %v2026 = vld [vmem:[%s2023 + $0x8] sm:$0xf]
      %v2027 = vld [vmem:[%s2023 + $0xc] sm:$0xf]
      %v2028 = vld [vmem:[%s2023 + $0x10] sm:$0xf]
      %v2029 = vld [vmem:[%s2023 + $0x14] sm:$0xf]
      %v2030 = vld [vmem:[%s2023 + $0x18] sm:$0xf]
      %v2031 = vld [vmem:[%s2023 + $0x1c] sm:$0xf]
      %v2032 = vld [vmem:[%s2023 + $0x20] sm:$0xf]
      %v2033 = vld [vmem:[%s2023 + $0x24] sm:$0xf]
      %v2034 = vld [vmem:[%s2023 + $0x28] sm:$0xf]
      %v2035 = vld [vmem:[%s2023 + $0x2c] sm:$0xf]
      %v2036 = vld [vmem:[%s2023 + $0x30] sm:$0xf]
      %v2037 = vld [vmem:[%s2023 + $0x34] sm:$0xf]
      %v2038 = vld [vmem:[%s2023 + $0x38] sm:$0xf]
      %v2039 = vld [vmem:[%s2023 + $0x3c] sm:$0xf]
      %vm2040 = vsmask.f32 5376
      %v2042 = vshrl.u32 %v2015, 16
      %v2044 = vrot.slane %v2042, 2
      %v2045 = vshll.u32 %v2015, 16
      %v2047 = vrot.slane %v2045, 3
      %v2048 = vor.u32 %v2044, %v2047
      %v2050 = vshrl.u32 %v2016, 16
      %v2052 = vrot.slane %v2050, 2
      %v2053 = vshll.u32 %v2016, 16
      %v2055 = vrot.slane %v2053, 3
      %v2056 = vor.u32 %v2052, %v2055
      %v2057 = vsel %vm2040, %v2048, %v2056
      %v2059 = vshrl.u32 %v2017, 16
      %v2061 = vrot.slane %v2059, 2
      %v2062 = vshll.u32 %v2017, 16
      %v2064 = vrot.slane %v2062, 3
      %v2065 = vor.u32 %v2061, %v2064
      %v2066 = vsel %vm2040, %v2056, %v2065
      %v2068 = vshrl.u32 %v2018, 16
      %v2070 = vrot.slane %v2068, 2
      %v2071 = vshll.u32 %v2018, 16
      %v2073 = vrot.slane %v2071, 3
      %v2074 = vor.u32 %v2070, %v2073
      %v2075 = vsel %vm2040, %v2065, %v2074
      %v2077 = vshrl.u32 %v2019, 16
      %v2079 = vrot.slane %v2077, 2
      %v2080 = vshll.u32 %v2019, 16
      %v2082 = vrot.slane %v2080, 3
      %v2083 = vor.u32 %v2079, %v2082
      %v2084 = vsel %vm2040, %v2074, %v2083
      %v2086 = vshrl.u32 %v2020, 16
      %v2088 = vrot.slane %v2086, 2
      %v2089 = vshll.u32 %v2020, 16
      %v2091 = vrot.slane %v2089, 3
      %v2092 = vor.u32 %v2088, %v2091
      %v2093 = vsel %vm2040, %v2083, %v2092
      %v2095 = vshrl.u32 %v2021, 16
      %v2097 = vrot.slane %v2095, 2
      %v2098 = vshll.u32 %v2021, 16
      %v2100 = vrot.slane %v2098, 3
      %v2101 = vor.u32 %v2097, %v2100
      %v2102 = vsel %vm2040, %v2092, %v2101
      %v2104 = vshrl.u32 %v2022, 16
      %v2106 = vrot.slane %v2104, 2
      %v2107 = vshll.u32 %v2022, 16
      %v2109 = vrot.slane %v2107, 3
      %v2110 = vor.u32 %v2106, %v2109
      %v2111 = vsel %vm2040, %v2101, %v2110
      %v2135 = vunpack.c.l.b16 %v2024
      %v2136 = vunpack.c.l.b16 %v2025
      %v2137 = vunpack.c.l.b16 %v2026
      %v2138 = vunpack.c.l.b16 %v2027
      %v2139 = vunpack.c.l.b16 %v2028
      %v2140 = vunpack.c.l.b16 %v2029
      %v2141 = vunpack.c.l.b16 %v2030
      %v2142 = vunpack.c.l.b16 %v2031
      %v2143 = vunpack.c.l.b16 %v2032
      %v2144 = vunpack.c.l.b16 %v2033
      %v2145 = vunpack.c.l.b16 %v2034
      %v2146 = vunpack.c.l.b16 %v2035
      %v2147 = vunpack.c.l.b16 %v2036
      %v2148 = vunpack.c.l.b16 %v2037
      %v2149 = vunpack.c.l.b16 %v2038
      %v2150 = vunpack.c.l.b16 %v2039
      %v2151 = vpack.c.b16 %v2136, %v2135
      %v2152 = vpack.c.b16 %v2138, %v2137
      %v2153 = vpack.c.b16 %v2140, %v2139
      %v2154 = vpack.c.b16 %v2142, %v2141
      %v2155 = vpack.c.b16 %v2144, %v2143
      %v2156 = vpack.c.b16 %v2146, %v2145
      %v2157 = vpack.c.b16 %v2148, %v2147
      %v2158 = vpack.c.b16 %v2150, %v2149
      %2167 = vmatprep.subr.bf16.mxu0 0
      %2168 = vmatpush1.bf16.msra.mxu0 %v2151
      %2169 = vmatprep.subr.bf16.mxu0 0
      %2170 = vmatpush1.bf16.msra.mxu0 %v2152
      %2171 = vmatprep.subr.bf16.mxu0 0
      %2172 = vmatpush1.bf16.msra.mxu0 %v2153
      %2173 = vmatprep.subr.bf16.mxu0 0
      %2174 = vmatpush1.bf16.msra.mxu0 %v2154
      %2175 = vmatprep.subr.bf16.mxu0 0
      %2176 = vmatpush1.bf16.msra.mxu0 %v2155
      %2177 = vmatprep.subr.bf16.mxu0 0
      %2178 = vmatpush1.bf16.msra.mxu0 %v2156
      %2179 = vmatprep.subr.bf16.mxu0 0
      %2180 = vmatpush1.bf16.msra.mxu0 %v2157
      %2181 = vmatprep.subr.bf16.mxu0 0
      %2182 = vmatpush1.bf16.msra.mxu0 %v2158
      %2183 = vmatprep.subr.bf16.mxu0 0
      %2184 = vmatpush1.bf16.msra.mxu0 0
      %2185 = vmatprep.subr.bf16.mxu0 0
      %2186 = vmatpush1.bf16.msra.mxu0 0
      %2187 = vmatprep.subr.bf16.mxu0 0
      %2188 = vmatpush1.bf16.msra.mxu0 0
      %2189 = vmatprep.subr.bf16.mxu0 0
      %2190 = vmatpush1.bf16.msra.mxu0 0
      %2191 = vmatprep.subr.bf16.mxu0 0
      %2192 = vmatpush1.bf16.msra.mxu0 0
      %2193 = vmatprep.subr.bf16.mxu0 0
      %2194 = vmatpush1.bf16.msra.mxu0 0
      %2195 = vmatprep.subr.bf16.mxu0 0
      %2196 = vmatpush1.bf16.msra.mxu0 0
      %2197 = vmatprep.subr.bf16.mxu0 0
      %2198 = vmatpush1.bf16.msra.mxu0 0
      %2199 = vmatprep.mubr.bf16.mxu0 0
      %2200 = vmatmul.mubr.bf16.gmra.mrb[0].mxu0 %v2057
      %v2201 = vpop.f32.mrb[0].mxu0
      %v2202 = vadd.f32 0.0, %v2201
      %v2203 = vpop.f32.mrb[0].mxu0
      %v2204 = vpop.f32.mrb[0].mxu0
      %v2205 = vadd.f32 0.0, %v2204
      %v2206 = vpop.f32.mrb[0].mxu0
      %2207 = vmatprep.mubr.bf16.mxu0 0
      %2208 = vmatmul.mubr.bf16.gmra.mrb[0].mxu0 %v2066
      %v2209 = vpop.f32.mrb[0].mxu0
      %v2210 = vadd.f32 0.0, %v2209
      %v2211 = vpop.f32.mrb[0].mxu0
      %v2212 = vpop.f32.mrb[0].mxu0
      %v2213 = vadd.f32 0.0, %v2212
      %v2214 = vpop.f32.mrb[0].mxu0
      %2215 = vmatprep.mubr.bf16.mxu0 0
      %2216 = vmatmul.mubr.bf16.gmra.mrb[0].mxu0 %v2075
      %v2217 = vpop.f32.mrb[0].mxu0
      %v2218 = vadd.f32 0.0, %v2217
      %v2219 = vpop.f32.mrb[0].mxu0
      %v2220 = vpop.f32.mrb[0].mxu0
      %v2221 = vadd.f32 0.0, %v2220
      %v2222 = vpop.f32.mrb[0].mxu0
      %2223 = vmatprep.mubr.bf16.mxu0 0
      %2224 = vmatmul.mubr.bf16.gmra.mrb[0].mxu0 %v2084
      %v2225 = vpop.f32.mrb[0].mxu0
      %v2226 = vadd.f32 0.0, %v2225
      %v2227 = vpop.f32.mrb[0].mxu0
      %v2228 = vpop.f32.mrb[0].mxu0
      %v2229 = vadd.f32 0.0, %v2228
      %v2230 = vpop.f32.mrb[0].mxu0
      %2231 = vmatprep.mubr.bf16.mxu0 0
      %2232 = vmatmul.mubr.bf16.gmra.mrb[0].mxu0 %v2093
      %v2233 = vpop.f32.mrb[0].mxu0
      %v2234 = vadd.f32 0.0, %v2233
      %v2235 = vpop.f32.mrb[0].mxu0
      %v2236 = vpop.f32.mrb[0].mxu0
      %v2237 = vadd.f32 0.0, %v2236
      %v2238 = vpop.f32.mrb[0].mxu0
      %2239 = vmatprep.mubr.bf16.mxu0 0
      %2240 = vmatmul.mubr.bf16.gmra.mrb[0].mxu0 %v2102
      %v2241 = vpop.f32.mrb[0].mxu0
      %v2242 = vadd.f32 0.0, %v2241
      %v2243 = vpop.f32.mrb[0].mxu0
      %v2244 = vpop.f32.mrb[0].mxu0
      %v2245 = vadd.f32 0.0, %v2244
      %v2246 = vpop.f32.mrb[0].mxu0
      %2247 = vmatprep.mubr.bf16.mxu0 0
      %2248 = vmatmul.mubr.bf16.gmra.mrb[0].mxu0 %v2111
      %v2249 = vpop.f32.mrb[0].mxu0
      %v2250 = vadd.f32 0.0, %v2249
      %v2251 = vpop.f32.mrb[0].mxu0
      %v2252 = vpop.f32.mrb[0].mxu0
      %v2253 = vadd.f32 0.0, %v2252
      %v2254 = vpop.f32.mrb[0].mxu0
      %2255 = vdwg.mxu0
      %v2256 = vld [vmem:[#allocation3] sm:$0xff]
      %v2257 = vld [vmem:[#allocation3 + $0x8] sm:$0xff]
      %v2258 = vld [vmem:[#allocation3 + $0x10] sm:$0xff]
      %v2259 = vld [vmem:[#allocation3 + $0x18] sm:$0xff]
      %v2260 = vld [vmem:[#allocation3 + $0x20] sm:$0xff]
      %v2261 = vld [vmem:[#allocation3 + $0x28] sm:$0xff]
      %v2262 = vld [vmem:[#allocation3 + $0x30] sm:$0xff]
      %v2263 = vld [vmem:[#allocation3 + $0x38] sm:$0xff]
      %v2264 = vld [vmem:[#allocation3 + $0x40] sm:$0xff]
      %v2265 = vld [vmem:[#allocation3 + $0x48] sm:$0xff]
      %v2266 = vld [vmem:[#allocation3 + $0x50] sm:$0xff]
      %v2267 = vld [vmem:[#allocation3 + $0x58] sm:$0xff]
      %v2268 = vld [vmem:[#allocation3 + $0x60] sm:$0xff]
      %v2269 = vld [vmem:[#allocation3 + $0x68] sm:$0xff]
      %v2270 = vadd.f32 %v2256, %v2202
      %v2271 = vadd.f32 %v2257, %v2205
      %v2272 = vadd.f32 %v2258, %v2210
      %v2273 = vadd.f32 %v2259, %v2213
      %v2274 = vadd.f32 %v2260, %v2218
      %v2275 = vadd.f32 %v2261, %v2221
      %v2276 = vadd.f32 %v2262, %v2226
      %v2277 = vadd.f32 %v2263, %v2229
      %v2278 = vadd.f32 %v2264, %v2234
      %v2279 = vadd.f32 %v2265, %v2237
      %v2280 = vadd.f32 %v2266, %v2242
      %v2281 = vadd.f32 %v2267, %v2245
      %v2282 = vadd.f32 %v2268, %v2250
      %v2283 = vadd.f32 %v2269, %v2253
      %2284 = vst [vmem:[#allocation3] sm:$0xff] %v2270
      %2285 = vst [vmem:[#allocation3 + $0x8] sm:$0xff] %v2271
      %2286 = vst [vmem:[#allocation3 + $0x10] sm:$0xff] %v2272
      %2287 = vst [vmem:[#allocation3 + $0x18] sm:$0xff] %v2273
      %2288 = vst [vmem:[#allocation3 + $0x20] sm:$0xff] %v2274
      %2289 = vst [vmem:[#allocation3 + $0x28] sm:$0xff] %v2275
      %2290 = vst [vmem:[#allocation3 + $0x30] sm:$0xff] %v2276
      %2291 = vst [vmem:[#allocation3 + $0x38] sm:$0xff] %v2277
      %2292 = vst [vmem:[#allocation3 + $0x40] sm:$0xff] %v2278
      %2293 = vst [vmem:[#allocation3 + $0x48] sm:$0xff] %v2279
      %2294 = vst [vmem:[#allocation3 + $0x50] sm:$0xff] %v2280
      %2295 = vst [vmem:[#allocation3 + $0x58] sm:$0xff] %v2281
      %2296 = vst [vmem:[#allocation3 + $0x60] sm:$0xff] %v2282
      %2297 = vst [vmem:[#allocation3 + $0x68] sm:$0xff] %v2283
      %v2298 = vld [vmem:[#allocation2 + $0x8] sm:$0xf8]
      %v2299 = vld [vmem:[#allocation2 + $0x10] sm:$0xff]
      %v2300 = vld [vmem:[#allocation2 + $0x18] sm:$0xff]
      %v2301 = vld [vmem:[#allocation2 + $0x20] sm:$0xff]
      %v2302 = vld [vmem:[#allocation2 + $0x28] sm:$0xff]
      %v2303 = vld [vmem:[#allocation2 + $0x30] sm:$0xff]
      %v2304 = vld [vmem:[#allocation2 + $0x38] sm:$0xff]
      %v2305 = vld [vmem:[#allocation2 + $0x40] sm:$0x7]
      %s2306 = scalar_lea.vmem %s253, 512
      %v2307 = vld [vmem:[%s2306] sm:$0xf]
      %v2308 = vld [vmem:[%s2306 + $0x4] sm:$0xf]
      %v2309 = vld [vmem:[%s2306 + $0x8] sm:$0xf]
      %v2310 = vld [vmem:[%s2306 + $0xc] sm:$0xf]
      %v2311 = vld [vmem:[%s2306 + $0x10] sm:$0xf]
      %v2312 = vld [vmem:[%s2306 + $0x14] sm:$0xf]
      %v2313 = vld [vmem:[%s2306 + $0x18] sm:$0xf]
      %v2314 = vld [vmem:[%s2306 + $0x1c] sm:$0xf]
      %v2315 = vld [vmem:[%s2306 + $0x20] sm:$0xf]
      %v2316 = vld [vmem:[%s2306 + $0x24] sm:$0xf]
      %v2317 = vld [vmem:[%s2306 + $0x28] sm:$0xf]
      %v2318 = vld [vmem:[%s2306 + $0x2c] sm:$0xf]
      %v2319 = vld [vmem:[%s2306 + $0x30] sm:$0xf]
      %v2320 = vld [vmem:[%s2306 + $0x34] sm:$0xf]
      %v2321 = vld [vmem:[%s2306 + $0x38] sm:$0xf]
      %v2322 = vld [vmem:[%s2306 + $0x3c] sm:$0xf]
      %vm2331 = vcmask 1044480
      %v2332 = vrot.slane %v2298, 3
      %v2333 = vrot.slane %v2299, 3
      %v2334 = vsel %vm2331, %v2332, %v2333
      %v2335 = vrot.slane %v2300, 3
      %v2336 = vsel %vm2331, %v2333, %v2335
      %v2337 = vrot.slane %v2301, 3
      %v2338 = vsel %vm2331, %v2335, %v2337
      %v2339 = vrot.slane %v2302, 3
      %v2340 = vsel %vm2331, %v2337, %v2339
      %v2341 = vrot.slane %v2303, 3
      %v2342 = vsel %vm2331, %v2339, %v2341
      %v2343 = vrot.slane %v2304, 3
      %v2344 = vsel %vm2331, %v2341, %v2343
      %v2345 = vrot.slane %v2305, 3
      %v2346 = vsel %vm2331, %v2343, %v2345
      %v2370 = vunpack.c.l.b16 %v2307
      %v2371 = vunpack.c.l.b16 %v2308
      %v2372 = vunpack.c.l.b16 %v2309
      %v2373 = vunpack.c.l.b16 %v2310
      %v2374 = vunpack.c.l.b16 %v2311
      %v2375 = vunpack.c.l.b16 %v2312
      %v2376 = vunpack.c.l.b16 %v2313
      %v2377 = vunpack.c.l.b16 %v2314
      %v2378 = vunpack.c.l.b16 %v2315
      %v2379 = vunpack.c.l.b16 %v2316
      %v2380 = vunpack.c.l.b16 %v2317
      %v2381 = vunpack.c.l.b16 %v2318
      %v2382 = vunpack.c.l.b16 %v2319
      %v2383 = vunpack.c.l.b16 %v2320
      %v2384 = vunpack.c.l.b16 %v2321
      %v2385 = vunpack.c.l.b16 %v2322
      %v2386 = vpack.c.b16 %v2371, %v2370
      %v2387 = vpack.c.b16 %v2373, %v2372
      %v2388 = vpack.c.b16 %v2375, %v2374
      %v2389 = vpack.c.b16 %v2377, %v2376
      %v2390 = vpack.c.b16 %v2379, %v2378
      %v2391 = vpack.c.b16 %v2381, %v2380
      %v2392 = vpack.c.b16 %v2383, %v2382
      %v2393 = vpack.c.b16 %v2385, %v2384
      %2402 = vmatprep.subr.bf16.mxu0 0
      %2403 = vmatpush1.bf16.msra.mxu0 %v2386
      %2404 = vmatprep.subr.bf16.mxu0 0
      %2405 = vmatpush1.bf16.msra.mxu0 %v2387
      %2406 = vmatprep.subr.bf16.mxu0 0
      %2407 = vmatpush1.bf16.msra.mxu0 %v2388
      %2408 = vmatprep.subr.bf16.mxu0 0
      %2409 = vmatpush1.bf16.msra.mxu0 %v2389
      %2410 = vmatprep.subr.bf16.mxu0 0
      %2411 = vmatpush1.bf16.msra.mxu0 %v2390
      %2412 = vmatprep.subr.bf16.mxu0 0
      %2413 = vmatpush1.bf16.msra.mxu0 %v2391
      %2414 = vmatprep.subr.bf16.mxu0 0
      %2415 = vmatpush1.bf16.msra.mxu0 %v2392
      %2416 = vmatprep.subr.bf16.mxu0 0
      %2417 = vmatpush1.bf16.msra.mxu0 %v2393
      %2418 = vmatprep.subr.bf16.mxu0 0
      %2419 = vmatpush1.bf16.msra.mxu0 0
      %2420 = vmatprep.subr.bf16.mxu0 0
      %2421 = vmatpush1.bf16.msra.mxu0 0
      %2422 = vmatprep.subr.bf16.mxu0 0
      %2423 = vmatpush1.bf16.msra.mxu0 0
      %2424 = vmatprep.subr.bf16.mxu0 0
      %2425 = vmatpush1.bf16.msra.mxu0 0
      %2426 = vmatprep.subr.bf16.mxu0 0
      %2427 = vmatpush1.bf16.msra.mxu0 0
      %2428 = vmatprep.subr.bf16.mxu0 0
      %2429 = vmatpush1.bf16.msra.mxu0 0
      %2430 = vmatprep.subr.bf16.mxu0 0
      %2431 = vmatpush1.bf16.msra.mxu0 0
      %2432 = vmatprep.subr.bf16.mxu0 0
      %2433 = vmatpush1.bf16.msra.mxu0 0
      %2434 = vmatprep.mubr.bf16.mxu0 0
      %2435 = vmatmul.mubr.bf16.gmra.mrb[0].mxu0 %v2334
      %v2436 = vpop.f32.mrb[0].mxu0
      %v2437 = vadd.f32 0.0, %v2436
      %v2438 = vpop.f32.mrb[0].mxu0
      %v2439 = vpop.f32.mrb[0].mxu0
      %v2440 = vadd.f32 0.0, %v2439
      %v2441 = vpop.f32.mrb[0].mxu0
      %2442 = vmatprep.mubr.bf16.mxu0 0
      %2443 = vmatmul.mubr.bf16.gmra.mrb[0].mxu0 %v2336
      %v2444 = vpop.f32.mrb[0].mxu0
      %v2445 = vadd.f32 0.0, %v2444
      %v2446 = vpop.f32.mrb[0].mxu0
      %v2447 = vpop.f32.mrb[0].mxu0
      %v2448 = vadd.f32 0.0, %v2447
      %v2449 = vpop.f32.mrb[0].mxu0
      %2450 = vmatprep.mubr.bf16.mxu0 0
      %2451 = vmatmul.mubr.bf16.gmra.mrb[0].mxu0 %v2338
      %v2452 = vpop.f32.mrb[0].mxu0
      %v2453 = vadd.f32 0.0, %v2452
      %v2454 = vpop.f32.mrb[0].mxu0
      %v2455 = vpop.f32.mrb[0].mxu0
      %v2456 = vadd.f32 0.0, %v2455
      %v2457 = vpop.f32.mrb[0].mxu0
      %2458 = vmatprep.mubr.bf16.mxu0 0
      %2459 = vmatmul.mubr.bf16.gmra.mrb[0].mxu0 %v2340
      %v2460 = vpop.f32.mrb[0].mxu0
      %v2461 = vadd.f32 0.0, %v2460
      %v2462 = vpop.f32.mrb[0].mxu0
      %v2463 = vpop.f32.mrb[0].mxu0
      %v2464 = vadd.f32 0.0, %v2463
      %v2465 = vpop.f32.mrb[0].mxu0
      %2466 = vmatprep.mubr.bf16.mxu0 0
      %2467 = vmatmul.mubr.bf16.gmra.mrb[0].mxu0 %v2342
      %v2468 = vpop.f32.mrb[0].mxu0
      %v2469 = vadd.f32 0.0, %v2468
      %v2470 = vpop.f32.mrb[0].mxu0
      %v2471 = vpop.f32.mrb[0].mxu0
      %v2472 = vadd.f32 0.0, %v2471
      %v2473 = vpop.f32.mrb[0].mxu0
      %2474 = vmatprep.mubr.bf16.mxu0 0
      %2475 = vmatmul.mubr.bf16.gmra.mrb[0].mxu0 %v2344
      %v2476 = vpop.f32.mrb[0].mxu0
      %v2477 = vadd.f32 0.0, %v2476
      %v2478 = vpop.f32.mrb[0].mxu0
      %v2479 = vpop.f32.mrb[0].mxu0
      %v2480 = vadd.f32 0.0, %v2479
      %v2481 = vpop.f32.mrb[0].mxu0
      %2482 = vmatprep.mubr.bf16.mxu0 0
      %2483 = vmatmul.mubr.bf16.gmra.mrb[0].mxu0 %v2346
      %v2484 = vpop.f32.mrb[0].mxu0
      %v2485 = vadd.f32 0.0, %v2484
      %v2486 = vpop.f32.mrb[0].mxu0
      %v2487 = vpop.f32.mrb[0].mxu0
      %v2488 = vadd.f32 0.0, %v2487
      %v2489 = vpop.f32.mrb[0].mxu0
      %2490 = vdwg.mxu0
      %v2491 = vld [vmem:[#allocation3] sm:$0xff]
      %v2492 = vld [vmem:[#allocation3 + $0x8] sm:$0xff]
      %v2493 = vld [vmem:[#allocation3 + $0x10] sm:$0xff]
      %v2494 = vld [vmem:[#allocation3 + $0x18] sm:$0xff]
      %v2495 = vld [vmem:[#allocation3 + $0x20] sm:$0xff]
      %v2496 = vld [vmem:[#allocation3 + $0x28] sm:$0xff]
      %v2497 = vld [vmem:[#allocation3 + $0x30] sm:$0xff]
      %v2498 = vld [vmem:[#allocation3 + $0x38] sm:$0xff]
      %v2499 = vld [vmem:[#allocation3 + $0x40] sm:$0xff]
      %v2500 = vld [vmem:[#allocation3 + $0x48] sm:$0xff]
      %v2501 = vld [vmem:[#allocation3 + $0x50] sm:$0xff]
      %v2502 = vld [vmem:[#allocation3 + $0x58] sm:$0xff]
      %v2503 = vld [vmem:[#allocation3 + $0x60] sm:$0xff]
      %v2504 = vld [vmem:[#allocation3 + $0x68] sm:$0xff]
      %v2505 = vadd.f32 %v2491, %v2437
      %v2506 = vadd.f32 %v2492, %v2440
      %v2507 = vadd.f32 %v2493, %v2445
      %v2508 = vadd.f32 %v2494, %v2448
      %v2509 = vadd.f32 %v2495, %v2453
      %v2510 = vadd.f32 %v2496, %v2456
      %v2511 = vadd.f32 %v2497, %v2461
      %v2512 = vadd.f32 %v2498, %v2464
      %v2513 = vadd.f32 %v2499, %v2469
      %v2514 = vadd.f32 %v2500, %v2472
      %v2515 = vadd.f32 %v2501, %v2477
      %v2516 = vadd.f32 %v2502, %v2480
      %v2517 = vadd.f32 %v2503, %v2485
      %v2518 = vadd.f32 %v2504, %v2488
      %2519 = vst [vmem:[#allocation3] sm:$0xff] %v2505
      %2520 = vst [vmem:[#allocation3 + $0x8] sm:$0xff] %v2506
      %2521 = vst [vmem:[#allocation3 + $0x10] sm:$0xff] %v2507
      %2522 = vst [vmem:[#allocation3 + $0x18] sm:$0xff] %v2508
      %2523 = vst [vmem:[#allocation3 + $0x20] sm:$0xff] %v2509
      %2524 = vst [vmem:[#allocation3 + $0x28] sm:$0xff] %v2510
      %2525 = vst [vmem:[#allocation3 + $0x30] sm:$0xff] %v2511
      %2526 = vst [vmem:[#allocation3 + $0x38] sm:$0xff] %v2512
      %2527 = vst [vmem:[#allocation3 + $0x40] sm:$0xff] %v2513
      %2528 = vst [vmem:[#allocation3 + $0x48] sm:$0xff] %v2514
      %2529 = vst [vmem:[#allocation3 + $0x50] sm:$0xff] %v2515
      %2530 = vst [vmem:[#allocation3 + $0x58] sm:$0xff] %v2516
      %2531 = vst [vmem:[#allocation3 + $0x60] sm:$0xff] %v2517
      %2532 = vst [vmem:[#allocation3 + $0x68] sm:$0xff] %v2518
      %v2533 = vld [vmem:[#allocation3] sm:$0xff]
      %v2534 = vld [vmem:[#allocation3 + $0x8] sm:$0xff]
      %v2535 = vld [vmem:[#allocation3 + $0x10] sm:$0xff]
      %v2536 = vld [vmem:[#allocation3 + $0x18] sm:$0xff]
      %v2537 = vld [vmem:[#allocation3 + $0x20] sm:$0xff]
      %v2538 = vld [vmem:[#allocation3 + $0x28] sm:$0xff]
      %v2539 = vld [vmem:[#allocation3 + $0x30] sm:$0xff]
      %v2540 = vld [vmem:[#allocation3 + $0x38] sm:$0xff]
      %v2541 = vld [vmem:[#allocation3 + $0x40] sm:$0xff]
      %v2542 = vld [vmem:[#allocation3 + $0x48] sm:$0xff]
      %v2543 = vld [vmem:[#allocation3 + $0x50] sm:$0xff]
      %v2544 = vld [vmem:[#allocation3 + $0x58] sm:$0xff]
      %v2545 = vld [vmem:[#allocation3 + $0x60] sm:$0xff]
      %v2546 = vld [vmem:[#allocation3 + $0x68] sm:$0xff]
      %v2547 = vld [vmem:[%s256] sm:$0x1]
      %v2549 = vlaneseq
      %v2550 = vshrl.u32 %v2549, 7
      %v2551 = vsub.s32 0, %v2550
      %v2552 = vrot.slane %v2547, %v2551
      %v2554 = vmul.f32 %v2533, %v2552
      %v2555 = vmul.f32 %v2534, %v2552
      %v2556 = vmul.f32 %v2535, %v2552
      %v2557 = vmul.f32 %v2536, %v2552
      %v2558 = vmul.f32 %v2537, %v2552
      %v2559 = vmul.f32 %v2538, %v2552
      %v2560 = vmul.f32 %v2539, %v2552
      %v2561 = vmul.f32 %v2540, %v2552
      %v2562 = vmul.f32 %v2541, %v2552
      %v2563 = vmul.f32 %v2542, %v2552
      %v2564 = vmul.f32 %v2543, %v2552
      %v2565 = vmul.f32 %v2544, %v2552
      %v2566 = vmul.f32 %v2545, %v2552
      %v2567 = vmul.f32 %v2546, %v2552
      %v2568 = vld [vmem:[%s259] sm:$0x1]
      %v2570 = vlaneseq
      %v2571 = vshrl.u32 %v2570, 7
      %v2572 = vsub.s32 0, %v2571
      %v2573 = vrot.slane %v2568, %v2572
      %v2575 = vadd.f32 %v2554, %v2573
      %v2576 = vadd.f32 %v2555, %v2573
      %v2577 = vadd.f32 %v2556, %v2573
      %v2578 = vadd.f32 %v2557, %v2573
      %v2579 = vadd.f32 %v2558, %v2573
      %v2580 = vadd.f32 %v2559, %v2573
      %v2581 = vadd.f32 %v2560, %v2573
      %v2582 = vadd.f32 %v2561, %v2573
      %v2583 = vadd.f32 %v2562, %v2573
      %v2584 = vadd.f32 %v2563, %v2573
      %v2585 = vadd.f32 %v2564, %v2573
      %v2586 = vadd.f32 %v2565, %v2573
      %v2587 = vadd.f32 %v2566, %v2573
      %v2588 = vadd.f32 %v2567, %v2573
      %vm2589 = vcmp.ge.f32.partialorder %v2575, 0.0
      %vm2590 = vcmp.ge.f32.partialorder %v2576, 0.0
      %vm2591 = vcmp.ge.f32.partialorder %v2577, 0.0
      %vm2592 = vcmp.ge.f32.partialorder %v2578, 0.0
      %vm2593 = vcmp.ge.f32.partialorder %v2579, 0.0
      %vm2594 = vcmp.ge.f32.partialorder %v2580, 0.0
      %vm2595 = vcmp.ge.f32.partialorder %v2581, 0.0
      %vm2596 = vcmp.ge.f32.partialorder %v2582, 0.0
      %vm2597 = vcmp.ge.f32.partialorder %v2583, 0.0
      %vm2598 = vcmp.ge.f32.partialorder %v2584, 0.0
      %vm2599 = vcmp.ge.f32.partialorder %v2585, 0.0
      %vm2600 = vcmp.ge.f32.partialorder %v2586, 0.0
      %vm2601 = vcmp.ge.f32.partialorder %v2587, 0.0
      %vm2602 = vcmp.ge.f32.partialorder %v2588, 0.0
      %v2603 = vmul.f32 %v2575, 0.01
      %v2604 = vmul.f32 %v2576, 0.01
      %v2605 = vmul.f32 %v2577, 0.01
      %v2606 = vmul.f32 %v2578, 0.01
      %v2607 = vmul.f32 %v2579, 0.01
      %v2608 = vmul.f32 %v2580, 0.01
      %v2609 = vmul.f32 %v2581, 0.01
      %v2610 = vmul.f32 %v2582, 0.01
      %v2611 = vmul.f32 %v2583, 0.01
      %v2612 = vmul.f32 %v2584, 0.01
      %v2613 = vmul.f32 %v2585, 0.01
      %v2614 = vmul.f32 %v2586, 0.01
      %v2615 = vmul.f32 %v2587, 0.01
      %v2616 = vmul.f32 %v2588, 0.01
      %v2617 = vsel %vm2589, %v2575, %v2603
      %v2618 = vsel %vm2590, %v2576, %v2604
      %v2619 = vsel %vm2591, %v2577, %v2605
      %v2620 = vsel %vm2592, %v2578, %v2606
      %v2621 = vsel %vm2593, %v2579, %v2607
      %v2622 = vsel %vm2594, %v2580, %v2608
      %v2623 = vsel %vm2595, %v2581, %v2609
      %v2624 = vsel %vm2596, %v2582, %v2610
      %v2625 = vsel %vm2597, %v2583, %v2611
      %v2626 = vsel %vm2598, %v2584, %v2612
      %v2627 = vsel %vm2599, %v2585, %v2613
      %v2628 = vsel %vm2600, %v2586, %v2614
      %v2629 = vsel %vm2601, %v2587, %v2615
      %v2630 = vsel %vm2602, %v2588, %v2616
      %v2631 = vld [vmem:[%s267] sm:$0xf]
      %v2632 = vld [vmem:[%s267 + $0x4] sm:$0xf]
      %v2633 = vld [vmem:[%s267 + $0x8] sm:$0xf]
      %v2634 = vld [vmem:[%s267 + $0xc] sm:$0xf]
      %v2635 = vld [vmem:[%s267 + $0x10] sm:$0xf]
      %v2636 = vld [vmem:[%s267 + $0x14] sm:$0xf]
      %v2637 = vld [vmem:[%s267 + $0x18] sm:$0xf]
      %v2638 = vld [vmem:[%s267 + $0x1c] sm:$0xf]
      %v2639 = vld [vmem:[%s267 + $0x20] sm:$0xf]
      %v2640 = vld [vmem:[%s267 + $0x24] sm:$0xf]
      %v2641 = vld [vmem:[%s267 + $0x28] sm:$0xf]
      %v2642 = vld [vmem:[%s267 + $0x2c] sm:$0xf]
      %v2643 = vld [vmem:[%s267 + $0x30] sm:$0xf]
      %v2644 = vld [vmem:[%s267 + $0x34] sm:$0xf]
      %v2645 = vunpack.c.l.bf16 %v2631
      %v2646 = vunpack.c.l.bf16 %v2632
      %v2647 = vunpack.c.l.bf16 %v2633
      %v2648 = vunpack.c.l.bf16 %v2634
      %v2649 = vunpack.c.l.bf16 %v2635
      %v2650 = vunpack.c.l.bf16 %v2636
      %v2651 = vunpack.c.l.bf16 %v2637
      %v2652 = vunpack.c.l.bf16 %v2638
      %v2653 = vunpack.c.l.bf16 %v2639
      %v2654 = vunpack.c.l.bf16 %v2640
      %v2655 = vunpack.c.l.bf16 %v2641
      %v2656 = vunpack.c.l.bf16 %v2642
      %v2657 = vunpack.c.l.bf16 %v2643
      %v2658 = vunpack.c.l.bf16 %v2644
      %v2659 = vadd.f32 %v2617, %v2645
      %v2660 = vadd.f32 %v2618, %v2646
      %v2661 = vadd.f32 %v2619, %v2647
      %v2662 = vadd.f32 %v2620, %v2648
      %v2663 = vadd.f32 %v2621, %v2649
      %v2664 = vadd.f32 %v2622, %v2650
      %v2665 = vadd.f32 %v2623, %v2651
      %v2666 = vadd.f32 %v2624, %v2652
      %v2667 = vadd.f32 %v2625, %v2653
      %v2668 = vadd.f32 %v2626, %v2654
      %v2669 = vadd.f32 %v2627, %v2655
      %v2670 = vadd.f32 %v2628, %v2656
      %v2671 = vadd.f32 %v2629, %v2657
      %v2672 = vadd.f32 %v2630, %v2658
      %vm2673 = vcmp.ge.f32.partialorder %v2659, 0.0
      %vm2674 = vcmp.ge.f32.partialorder %v2660, 0.0
      %vm2675 = vcmp.ge.f32.partialorder %v2661, 0.0
      %vm2676 = vcmp.ge.f32.partialorder %v2662, 0.0
      %vm2677 = vcmp.ge.f32.partialorder %v2663, 0.0
      %vm2678 = vcmp.ge.f32.partialorder %v2664, 0.0
      %vm2679 = vcmp.ge.f32.partialorder %v2665, 0.0
      %vm2680 = vcmp.ge.f32.partialorder %v2666, 0.0
      %vm2681 = vcmp.ge.f32.partialorder %v2667, 0.0
      %vm2682 = vcmp.ge.f32.partialorder %v2668, 0.0
      %vm2683 = vcmp.ge.f32.partialorder %v2669, 0.0
      %vm2684 = vcmp.ge.f32.partialorder %v2670, 0.0
      %vm2685 = vcmp.ge.f32.partialorder %v2671, 0.0
      %vm2686 = vcmp.ge.f32.partialorder %v2672, 0.0
      %v2687 = vmul.f32 %v2659, 0.01
      %v2688 = vmul.f32 %v2660, 0.01
      %v2689 = vmul.f32 %v2661, 0.01
      %v2690 = vmul.f32 %v2662, 0.01
      %v2691 = vmul.f32 %v2663, 0.01
      %v2692 = vmul.f32 %v2664, 0.01
      %v2693 = vmul.f32 %v2665, 0.01
      %v2694 = vmul.f32 %v2666, 0.01
      %v2695 = vmul.f32 %v2667, 0.01
      %v2696 = vmul.f32 %v2668, 0.01
      %v2697 = vmul.f32 %v2669, 0.01
      %v2698 = vmul.f32 %v2670, 0.01
      %v2699 = vmul.f32 %v2671, 0.01
      %v2700 = vmul.f32 %v2672, 0.01
      %v2701 = vsel %vm2673, %v2659, %v2687
      %v2702 = vsel %vm2674, %v2660, %v2688
      %v2703 = vsel %vm2675, %v2661, %v2689
      %v2704 = vsel %vm2676, %v2662, %v2690
      %v2705 = vsel %vm2677, %v2663, %v2691
      %v2706 = vsel %vm2678, %v2664, %v2692
      %v2707 = vsel %vm2679, %v2665, %v2693
      %v2708 = vsel %vm2680, %v2666, %v2694
      %v2709 = vsel %vm2681, %v2667, %v2695
      %v2710 = vsel %vm2682, %v2668, %v2696
      %v2711 = vsel %vm2683, %v2669, %v2697
      %v2712 = vsel %vm2684, %v2670, %v2698
      %v2713 = vsel %vm2685, %v2671, %v2699
      %v2714 = vsel %vm2686, %v2672, %v2700
      %2715 = vst [vmem:[%s276] sm:$0xff] %v2701
      %2716 = vst [vmem:[%s276 + $0x8] sm:$0xff] %v2702
      %2717 = vst [vmem:[%s276 + $0x10] sm:$0xff] %v2703
      %2718 = vst [vmem:[%s276 + $0x18] sm:$0xff] %v2704
      %2719 = vst [vmem:[%s276 + $0x20] sm:$0xff] %v2705
      %2720 = vst [vmem:[%s276 + $0x28] sm:$0xff] %v2706
      %2721 = vst [vmem:[%s276 + $0x30] sm:$0xff] %v2707
      %2722 = vst [vmem:[%s276 + $0x38] sm:$0xff] %v2708
      %2723 = vst [vmem:[%s276 + $0x40] sm:$0xff] %v2709
      %2724 = vst [vmem:[%s276 + $0x48] sm:$0xff] %v2710
      %2725 = vst [vmem:[%s276 + $0x50] sm:$0xff] %v2711
      %2726 = vst [vmem:[%s276 + $0x58] sm:$0xff] %v2712
      %2727 = vst [vmem:[%s276 + $0x60] sm:$0xff] %v2713
      %2728 = vst [vmem:[%s276 + $0x68] sm:$0xff] %v2714
      %s2729 = smul.u32 14, %s20
      %p2730 = scmp.lt.s32.totalorder %s2729, 27
      %s2731 = scalar_select %p2730, %s2729, 27
      %p2732 = scmp.lt.s32.totalorder %s21, 0
      %s2733 = scalar_select %p2732, %s21, 0
      %s2734 = sadd.s32 %s2733, %s2731
      %s2735 = smul.addr %s2734, 8
      %s2736 = scalar_lea.vmem %s5, %s2735
      // Predicated region
      $region71: #{resnet_block_forward.5} parent=35 // pred_check
        %p2737 = pneg %p154
      $region72: #{resnet_block_forward.5} parent=35 // pred_check_branch
        %2739 = sbr.rel (%p2737) target = $region74
      $region73: #{resnet_block_forward.5} parent=35 // pred_region
        %s2740 = smul.u32 14, %s20
      $region74: #{resnet_block_forward.5} parent=35 // pred_fallthru
        _
    $region36: #{resnet_block_forward.5} parent=5 // pred_fallthru
      _
    %p2741 = scmp.le.s32.totalorder 2, %s11
    // Predicated region
    $region75: #{resnet_block_forward.5} parent=5 // pred_check
      %p2742 = pneg %p2741
    $region76: #{resnet_block_forward.5} parent=5 // pred_check_branch
      %2744 = sbr.rel (%p2742) target = $region78
    $region77: #{resnet_block_forward.5} parent=5 // pred_region
      %s2745 = ssub.s32 %s11, 2
      // Predicated region
      $region79: #{resnet_block_forward.5} parent=77 // pred_check
        %p2746 = pneg %p160
      $region80: #{resnet_block_forward.5} parent=77 // pred_check_branch
        %2748 = sbr.rel (%p2746) target = $region82
      $region81: #{resnet_block_forward.5} parent=77 // pred_region
        %s2749 = smul.u32 14, %s22
        %p2750 = scmp.lt.s32.totalorder %s2749, 27
        %s2751 = scalar_select %p2750, %s2749, 27
        %p2752 = scmp.lt.s32.totalorder %s23, 0
        %s2753 = scalar_select %p2752, %s23, 0
        %s2754 = sadd.s32 %s2753, %s2751
        %s2755 = smul.addr %s2754, 8
        %s2756 = scalar_lea.vmem %s5, %s2755
      $region82: #{resnet_block_forward.5} parent=77 // pred_fallthru
        _
    $region78: #{resnet_block_forward.5} parent=5 // pred_fallthru
      _
  $region6: #{resnet_block_forward.5} parent=0 // loop_footer
    %s15 = sadd.s32 1, %s11
  $region7: #{resnet_block_forward.5} parent=0 // loop_footer_branch
    %10 = sbr.rel target = $region3
  $region8: #{resnet_block_forward.5} parent=0 // loop_exit
    _
  %2757 = vsyncmov [#allocation4]
  %s2758 = vpop.sfrf %2757
  %p2759 = scmp.eq.s32.totalorder %s2758, 0
  %p2760 = pneg %p2759
  %2762 = shalt.err (%p2760)

</llo_original>
